<compile_context>
chip_gen: v7x
topology: tpu7x:2x2x1
jax: 0.10.0
libtpu: 0.0.40
codegen_flags: <defaults>
</compile_context>

<pallas_src>
import math

import jax
import jax.numpy as jnp
from jax.experimental import pallas as pl
from jax.experimental.pallas import tpu as pltpu

# ---- problem sizes (small, consistent with the module) ----
B, T, S = 2, 8, 8           # batch, tgt seq len, src seq len
D, H, DFF = 64, 4, 128      # d_model, heads, d_ff
DK = D // H
L = 2                       # number of decoder layers in the ModuleList
N = B * T                   # merged query rows (16)
M = B * S                   # merged key rows for cross-attention (16)
EPS = 10000.0               # LayerNormalization default eps in the reference
NEG = -1e9
SCALE = 1.0 / math.sqrt(DK)

# ---- packed-slab layout (static offsets used inside the kernel) ----
# Wmain: (D, L*WCOLS) bf16; per-layer chunk of WCOLS columns:
#   [ self_wqkv(3D, Q pre-scaled) | self_wo(D) | cross_wq(D, pre-scaled)
#     | cross_wo(D) | ffn_w1(DFF) ]
QKV_W = 3 * D
QKV_OFF = 0
SWO_OFF = QKV_OFF + QKV_W          # 192
CWQ_OFF = SWO_OFF + D              # 256
CWO_OFF = CWQ_OFF + D              # 320
W1_OFF = CWO_OFF + D               # 384
WCOLS = W1_OFF + DFF               # 512

# bias slab: (1, L*BCOLS + L*2D) f32; per-layer chunk:
#   [ self_bqkv(3D) | self_bo(D) | cross_bq(D) | cross_bo(D)
#     | ffn_b1(DFF) | ffn_b2(D) ]
# followed by the L*2D cross K/V biases for the hoisted projection.
B_QKV = 0
B_SBO = B_QKV + QKV_W              # 192
B_CBQ = B_SBO + D                  # 256
B_CBO = B_CBQ + D                  # 320
B_B1 = B_CBO + D                   # 384
B_B2 = B_B1 + DFF                  # 512
BCOLS = B_B2 + D                   # 576
BKV_OFF = L * BCOLS                # 1152
NBIAS = BKV_OFF + L * 2 * D        # 1408


# ----------------- in-kernel building blocks (pure jnp, traced) ---------------
def _layer_norm(x):
    # torch: mean/std over last dim, std unbiased (N-1); alpha = bias = 1.0
    mean = jnp.mean(x, axis=-1, keepdims=True)
    diff = x - mean
    var = jnp.sum(diff * diff, axis=-1, keepdims=True) * (1.0 / (x.shape[-1] - 1))
    std = jnp.sqrt(var)
    return diff * pl.reciprocal(std + EPS, approx=True) + 1.0


def _split_heads(x):
    # (rows, D) -> (H, rows, DK); heads on a leading batch dim for batched einsum
    return jnp.concatenate(
        [x[:, h * DK:(h + 1) * DK][None, :, :] for h in range(H)], axis=0)


def _attention(q, k, v, bias_h, wo, bo):
    # q: (Nq, D) f32 (score scale already folded into Q); k, v: (Nk, D) f32
    # bias_h: (H, Nq, Nk) f32 additive mask (-1e9 at masked / cross-batch)
    # wo: (D, D) bf16; bo: (1, D) f32
    qh = _split_heads(q).astype(jnp.bfloat16)
    kh = _split_heads(k).astype(jnp.bfloat16)
    vh = _split_heads(v).astype(jnp.bfloat16)
    s = jnp.einsum('hqd,hkd->hqk', qh, kh,
                   preferred_element_type=jnp.float32) + bias_h
    m = jnp.max(s, axis=-1, keepdims=True)
    e = jnp.exp(s - m)                                      # f32: masked -> exactly 0
    p = e * pl.reciprocal(jnp.sum(e, axis=-1, keepdims=True), approx=True)
    ctx = jnp.einsum('hqk,hkd->hqd', p.astype(jnp.bfloat16), vh,
                     preferred_element_type=jnp.float32)
    # single lane-concat of heads + one (Nq, D) @ (D, D) MXU pass
    ctx_flat = jnp.concatenate([ctx[h] for h in range(H)], axis=-1)
    return jnp.dot(ctx_flat.astype(jnp.bfloat16), wo,
                   preferred_element_type=jnp.float32) + bo


# ----------------- the Pallas kernel: whole Decoder in one call ---------------
def decoder_kernel(act_ref, maskb_ref, wmain_ref, wckv_ref, w2_ref, bias_ref,
                   o_ref):
    bf16 = jnp.bfloat16

    act = act_ref[...]                       # (N + M, D) f32
    x = act[:N, :]                           # (16, 64) target activations
    enc = act[N:, :]                         # (16, 64) encoder output

    # merged block-diagonal additive masks, head-broadcast once for all layers
    maskb = maskb_ref[...]                   # (N + N, 16) f32
    self_bias = jnp.broadcast_to(maskb[:N, :][None, :, :], (H, N, N))
    cross_bias = jnp.broadcast_to(maskb[N:, :][None, :, :], (H, N, M))

    # layer-invariant cross K/V projection, hoisted out of the layer loop
    kv_all = jnp.dot(enc.astype(bf16), wckv_ref[...],
                     preferred_element_type=jnp.float32)
    kv_all = kv_all + bias_ref[:, BKV_OFF:BKV_OFF + L * 2 * D]   # (16, L*2D)

    for l in range(L):
        wbase = l * WCOLS
        bbase = l * BCOLS

        # --- self-attention sublayer (pre-norm residual) ------------------
        nx = _layer_norm(x)
        qkv = jnp.dot(nx.astype(bf16),
                      wmain_ref[:, wbase + QKV_OFF:wbase + QKV_OFF + QKV_W],
                      preferred_element_type=jnp.float32)
        qkv = qkv + bias_ref[:, bbase + B_QKV:bbase + B_QKV + QKV_W]
        attn = _attention(qkv[:, :D], qkv[:, D:2 * D], qkv[:, 2 * D:],
                          self_bias,
                          wmain_ref[:, wbase + SWO_OFF:wbase + SWO_OFF + D],
                          bias_ref[:, bbase + B_SBO:bbase + B_SBO + D])
        x = x + attn

        # --- cross-attention: queries from norm(x), K/V precomputed -------
        nx = _layer_norm(x)
        q = jnp.dot(nx.astype(bf16),
                    wmain_ref[:, wbase + CWQ_OFF:wbase + CWQ_OFF + D],
                    preferred_element_type=jnp.float32)
        q = q + bias_ref[:, bbase + B_CBQ:bbase + B_CBQ + D]
        k = kv_all[:, l * 2 * D:l * 2 * D + D]
        v = kv_all[:, l * 2 * D + D:(l + 1) * 2 * D]
        attn = _attention(q, k, v, cross_bias,
                          wmain_ref[:, wbase + CWO_OFF:wbase + CWO_OFF + D],
                          bias_ref[:, bbase + B_CBO:bbase + B_CBO + D])
        x = x + attn

        # --- feed-forward sublayer -----------------------------------------
        nx = _layer_norm(x)
        hid = jnp.dot(nx.astype(bf16),
                      wmain_ref[:, wbase + W1_OFF:wbase + W1_OFF + DFF],
                      preferred_element_type=jnp.float32)
        hid = jnp.maximum(hid + bias_ref[:, bbase + B_B1:bbase + B_B1 + DFF],
                          0.0)
        x = x + jnp.dot(hid.astype(bf16), w2_ref[:, l * D:(l + 1) * D],
                        preferred_element_type=jnp.float32) \
              + bias_ref[:, bbase + B_B2:bbase + B_B2 + D]

    # Decoder's final LayerNormalization
    x = _layer_norm(x)

    # lane-dense (T, B*D) = (8, 128) output slab (full-width unmasked stores)
    o_ref[...] = jnp.concatenate([x[b * T:(b + 1) * T, :] for b in range(B)],
                                 axis=1)


# ----------------- host-side packing & wrapper --------------------------------
def _pack_params(layers):
    cat = jnp.concatenate
    wmain, wckv, bias_layers, bias_kv = [], [], [], []
    w2_cols = []
    for p in layers:
        swqkv = cat([p['self_wq'] * SCALE, p['self_wk'], p['self_wv']], axis=1)
        wmain.append(cat([swqkv, p['self_wo'], p['cross_wq'] * SCALE,
                          p['cross_wo'], p['ffn_w1']], axis=1))      # (D, 512)
        wckv.append(cat([p['cross_wk'], p['cross_wv']], axis=1))     # (D, 2D)
        w2_cols.append(p['ffn_w2'])                                  # (DFF, D)
        bias_layers.append(cat([p['self_bq'] * SCALE, p['self_bk'], p['self_bv'],
                                p['self_bo'],
                                p['cross_bq'] * SCALE,
                                p['cross_bo'],
                                p['ffn_b1'], p['ffn_b2']]))          # (576,)
        bias_kv.append(cat([p['cross_bk'], p['cross_bv']]))          # (128,)
    wmain = cat(wmain, axis=1).astype(jnp.bfloat16)                  # (D, L*512)
    wckv = cat(wckv, axis=1).astype(jnp.bfloat16)                    # (D, L*2D)
    w2 = cat(w2_cols, axis=1).astype(jnp.bfloat16)                   # (DFF, L*D)
    bias = cat(bias_layers + bias_kv)[None, :]                       # (1, NBIAS) f32
    return wmain, wckv, w2, bias


def _merged_bias_mask(mask, nq, nk):
    # mask: (B, nq, nk) floats, 0 = masked out.  Returns (B*nq, B*nk) additive
    # bias: 0 where attended, -1e9 at masked / cross-batch positions
    # (block-diagonal merge of the batch; exp underflows to exactly 0 in f32).
    full = jnp.full((B * nq, B * nk), NEG, jnp.float32)
    for b in range(B):
        blk = jnp.where(mask[b] == 0.0, NEG, 0.0)
        full = full.at[b * nq:(b + 1) * nq, b * nk:(b + 1) * nk].set(blk)
    return full


def decoder_forward(x, encoder_output, src_mask, tgt_mask, layers):
    wmain, wckv, w2, bias = _pack_params(layers)
    act = jnp.concatenate([x.reshape(N, D), encoder_output.reshape(M, D)],
                          axis=0)                                    # (32, 64)
    maskb = jnp.concatenate([_merged_bias_mask(tgt_mask, T, T),
                             _merged_bias_mask(src_mask, T, S)], axis=0)  # (32,16)

    args = (act, maskb, wmain, wckv, w2, bias)
    vmem = pl.BlockSpec(memory_space=pltpu.MemorySpace.VMEM)
    out = pl.pallas_call(
        decoder_kernel,
        out_shape=jax.ShapeDtypeStruct((T, B * D), jnp.float32),
        in_specs=[vmem] * len(args),
        out_specs=vmem,
    )(*args)
    # undo the lane-dense (T, B*D) packing -> (B, T, D)
    return jnp.transpose(out.reshape(T, B, D), (1, 0, 2))


# ----------------- pure-JAX reference (faithful torch math) -------------------
def _reference(x, encoder_output, src_mask, tgt_mask, layers):
    def layer_norm(v):
        mean = v.mean(axis=-1, keepdims=True)
        var = jnp.sum((v - mean) ** 2, axis=-1, keepdims=True) / (v.shape[-1] - 1)
        return (v - mean) / (jnp.sqrt(var) + EPS) + 1.0

    def mha(q_in, kv_in, mask, wq, bq, wk, bk, wv, bv, wo, bo):
        q = q_in @ wq + bq
        k = kv_in @ wk + bk
        v = kv_in @ wv + bv
        qh = q.reshape(-1, H, DK).transpose(1, 0, 2)
        kh = k.reshape(-1, H, DK).transpose(1, 0, 2)
        vh = v.reshape(-1, H, DK).transpose(1, 0, 2)
        s = jnp.einsum('hqd,hkd->hqk', qh, kh) / math.sqrt(DK)
        s = jnp.where(mask[None, :, :] == 0, NEG, s)
        p = jax.nn.softmax(s, axis=-1)
        ctx = jnp.einsum('hqk,hkd->hqd', p, vh)
        ctx = ctx.transpose(1, 0, 2).reshape(-1, D)
        return ctx @ wo + bo

    def one(xb, eb, sm, tm):
        for p in layers:
            nx = layer_norm(xb)
            xb = xb + mha(nx, nx, tm,
                          p['self_wq'], p['self_bq'], p['self_wk'], p['self_bk'],
                          p['self_wv'], p['self_bv'], p['self_wo'], p['self_bo'])
            nx = layer_norm(xb)
            xb = xb + mha(nx, eb, sm,
                          p['cross_wq'], p['cross_bq'], p['cross_wk'], p['cross_bk'],
                          p['cross_wv'], p['cross_bv'], p['cross_wo'], p['cross_bo'])
            nx = layer_norm(xb)
            hid = jnp.maximum(nx @ p['ffn_w1'] + p['ffn_b1'], 0.0)
            xb = xb + hid @ p['ffn_w2'] + p['ffn_b2']
        return layer_norm(xb)

    return jax.vmap(one)(x, encoder_output, src_mask, tgt_mask)


# ----------------- deterministic parameter / input construction ---------------
def _make_layer_params(key):
    ks = jax.random.split(key, 20)
    sc = 0.02

    def w(k, shape):
        return sc * jax.random.normal(k, shape, jnp.float32)

    return dict(
        self_wq=w(ks[0], (D, D)), self_wk=w(ks[1], (D, D)),
        self_wv=w(ks[2], (D, D)), self_wo=w(ks[3], (D, D)),
        self_bq=w(ks[4], (D,)), self_bk=w(ks[5], (D,)),
        self_bv=w(ks[6], (D,)), self_bo=w(ks[7], (D,)),
        cross_wq=w(ks[8], (D, D)), cross_wk=w(ks[9], (D, D)),
        cross_wv=w(ks[10], (D, D)), cross_wo=w(ks[11], (D, D)),
        cross_bq=w(ks[12], (D,)), cross_bk=w(ks[13], (D,)),
        cross_bv=w(ks[14], (D,)), cross_bo=w(ks[15], (D,)),
        ffn_w1=w(ks[16], (D, DFF)), ffn_b1=w(ks[17], (DFF,)),
        ffn_w2=w(ks[18], (DFF, D)), ffn_b2=w(ks[19], (D,)),
    )


if __name__ == "__main__":
    key = jax.random.PRNGKey(0)
    kx, ke, kp = jax.random.split(key, 3)

    x = jax.random.normal(kx, (B, T, D), jnp.float32)
    enc = jax.random.normal(ke, (B, S, D), jnp.float32)

    # causal target mask; source mask pads the last 2 keys of batch element 1
    # (0/1 floats, matching the `mask == 0` masked_fill semantics)
    tgt_mask = jnp.broadcast_to(jnp.tril(jnp.ones((T, T), jnp.float32)), (B, T, T))
    src_mask = jnp.ones((B, T, S), jnp.float32).at[1, :, S - 2:].set(0.0)

    layer_keys = jax.random.split(kp, L)
    layers = [_make_layer_params(k) for k in layer_keys]

    out = decoder_forward(x, enc, src_mask, tgt_mask, layers)
    out = jax.block_until_ready(out)

    ref = _reference(x, enc, src_mask, tgt_mask, layers)
    assert out.shape == (B, T, D)
    assert jnp.allclose(out, ref, atol=2e-3, rtol=2e-3), "mismatch vs JAX reference"

    print("KERNEL_OK")
</pallas_src>

<mosaic_0001>
module attributes {stable_mosaic.version = 11 : i64} {
  func.func @decoder_kernel(%arg0: memref<32x64xf32, #tpu.memory_space<vmem>>, %arg1: memref<32x16xf32, #tpu.memory_space<vmem>>, %arg2: memref<64x1024xbf16, #tpu.memory_space<vmem>>, %arg3: memref<64x256xbf16, #tpu.memory_space<vmem>>, %arg4: memref<128x128xbf16, #tpu.memory_space<vmem>>, %arg5: memref<1x1408xf32, #tpu.memory_space<vmem>>, %arg6: memref<8x128xf32, #tpu.memory_space<vmem>>) attributes {dimension_semantics = [], scalar_prefetch = 0 : i64, scratch_operands = 0 : i64, tpu.core_type = #tpu.core_type<tc>} {
    %c0 = arith.constant 0 : index
    %c0_0 = arith.constant 0 : index
    %0 = vector.load %arg0[%c0, %c0_0] : memref<32x64xf32, #tpu.memory_space<vmem>>, vector<32x64xf32>
    %1 = vector.extract_strided_slice %0 {offsets = [0, 0], sizes = [16, 64], strides = [1, 1]} : vector<32x64xf32> to vector<16x64xf32>
    %2 = vector.extract_strided_slice %0 {offsets = [16, 0], sizes = [16, 64], strides = [1, 1]} : vector<32x64xf32> to vector<16x64xf32>
    %c0_1 = arith.constant 0 : index
    %c0_2 = arith.constant 0 : index
    %3 = vector.load %arg1[%c0_1, %c0_2] : memref<32x16xf32, #tpu.memory_space<vmem>>, vector<32x16xf32>
    %4 = vector.extract_strided_slice %3 {offsets = [0, 0], sizes = [16, 16], strides = [1, 1]} : vector<32x16xf32> to vector<16x16xf32>
    %5 = vector.shape_cast %4 : vector<16x16xf32> to vector<1x16x16xf32>
    %6 = vector.shape_cast %5 : vector<1x16x16xf32> to vector<1x16x16xf32>
    %7 = vector.broadcast %6 : vector<1x16x16xf32> to vector<4x16x16xf32>
    %8 = vector.extract_strided_slice %3 {offsets = [16, 0], sizes = [16, 16], strides = [1, 1]} : vector<32x16xf32> to vector<16x16xf32>
    %9 = vector.shape_cast %8 : vector<16x16xf32> to vector<1x16x16xf32>
    %10 = vector.shape_cast %9 : vector<1x16x16xf32> to vector<1x16x16xf32>
    %11 = vector.broadcast %10 : vector<1x16x16xf32> to vector<4x16x16xf32>
    %12 = arith.truncf %2 : vector<16x64xf32> to vector<16x64xbf16>
    %c0_3 = arith.constant 0 : index
    %c0_4 = arith.constant 0 : index
    %13 = vector.load %arg3[%c0_3, %c0_4] : memref<64x256xbf16, #tpu.memory_space<vmem>>, vector<64x256xbf16>
    %cst = arith.constant dense<0.000000e+00> : vector<16x256xf32>
    %14 = tpu.matmul %12, %13, %cst {dimension_numbers = #tpu.dot_dimension_numbers<[1], [0], [0], [1], [0, 0, 1, 1], [], []>} : vector<16x64xbf16>, vector<64x256xbf16>, vector<16x256xf32> -> vector<16x256xf32>
    %c0_5 = arith.constant 0 : index
    %c1152 = arith.constant 1152 : index
    %15 = vector.load %arg5[%c0_5, %c1152] : memref<1x1408xf32, #tpu.memory_space<vmem>>, vector<1x256xf32>
    %16 = vector.broadcast %15 : vector<1x256xf32> to vector<16x256xf32>
    %17 = arith.addf %14, %16 : vector<16x256xf32>
    %cst_6 = arith.constant dense<0.000000e+00> : vector<16xf32>
    %18 = vector.multi_reduction <add>, %1, %cst_6 [1] : vector<16x64xf32> to vector<16xf32>
    %19 = vector.shape_cast %18 : vector<16xf32> to vector<16x1xf32>
    %cst_7 = arith.constant 6.400000e+01 : f32
    %20 = vector.broadcast %cst_7 : f32 to vector<16x1xf32>
    %21 = arith.divf %19, %20 : vector<16x1xf32>
    %22 = vector.broadcast %21 : vector<16x1xf32> to vector<16x64xf32>
    %23 = arith.subf %1, %22 : vector<16x64xf32>
    %24 = arith.mulf %23, %23 : vector<16x64xf32>
    %cst_8 = arith.constant dense<0.000000e+00> : vector<16xf32>
    %25 = vector.multi_reduction <add>, %24, %cst_8 [1] : vector<16x64xf32> to vector<16xf32>
    %26 = vector.shape_cast %25 : vector<16xf32> to vector<16x1xf32>
    %cst_9 = arith.constant 0.0158730168 : f32
    %27 = vector.broadcast %cst_9 : f32 to vector<16x1xf32>
    %28 = arith.mulf %26, %27 : vector<16x1xf32>
    %29 = math.sqrt %28 : vector<16x1xf32>
    %cst_10 = arith.constant 1.000000e+04 : f32
    %30 = vector.broadcast %cst_10 : f32 to vector<16x1xf32>
    %31 = arith.addf %29, %30 : vector<16x1xf32>
    %32 = tpu.reciprocal %31 {approx = true} : vector<16x1xf32> -> vector<16x1xf32>
    %33 = vector.broadcast %32 : vector<16x1xf32> to vector<16x64xf32>
    %34 = arith.mulf %23, %33 : vector<16x64xf32>
    %cst_11 = arith.constant 1.000000e+00 : f32
    %35 = vector.broadcast %cst_11 : f32 to vector<16x64xf32>
    %36 = arith.addf %34, %35 : vector<16x64xf32>
    %37 = arith.truncf %36 : vector<16x64xf32> to vector<16x64xbf16>
    %c0_12 = arith.constant 0 : index
    %c0_13 = arith.constant 0 : index
    %38 = vector.load %arg2[%c0_12, %c0_13] : memref<64x1024xbf16, #tpu.memory_space<vmem>>, vector<64x192xbf16>
    %cst_14 = arith.constant dense<0.000000e+00> : vector<16x192xf32>
    %39 = tpu.matmul %37, %38, %cst_14 {dimension_numbers = #tpu.dot_dimension_numbers<[1], [0], [0], [1], [0, 0, 1, 1], [], []>} : vector<16x64xbf16>, vector<64x192xbf16>, vector<16x192xf32> -> vector<16x192xf32>
    %c0_15 = arith.constant 0 : index
    %c0_16 = arith.constant 0 : index
    %40 = vector.load %arg5[%c0_15, %c0_16] : memref<1x1408xf32, #tpu.memory_space<vmem>>, vector<1x192xf32>
    %41 = vector.broadcast %40 : vector<1x192xf32> to vector<16x192xf32>
    %42 = arith.addf %39, %41 : vector<16x192xf32>
    %43 = vector.extract_strided_slice %42 {offsets = [0, 0], sizes = [16, 64], strides = [1, 1]} : vector<16x192xf32> to vector<16x64xf32>
    %44 = vector.extract_strided_slice %42 {offsets = [0, 64], sizes = [16, 64], strides = [1, 1]} : vector<16x192xf32> to vector<16x64xf32>
    %45 = vector.extract_strided_slice %42 {offsets = [0, 128], sizes = [16, 64], strides = [1, 1]} : vector<16x192xf32> to vector<16x64xf32>
    %c0_17 = arith.constant 0 : index
    %c192 = arith.constant 192 : index
    %46 = vector.load %arg2[%c0_17, %c192] : memref<64x1024xbf16, #tpu.memory_space<vmem>>, vector<64x64xbf16>
    %c0_18 = arith.constant 0 : index
    %c192_19 = arith.constant 192 : index
    %47 = vector.load %arg5[%c0_18, %c192_19] : memref<1x1408xf32, #tpu.memory_space<vmem>>, vector<1x64xf32>
    %48 = vector.extract_strided_slice %43 {offsets = [0, 0], sizes = [16, 16], strides = [1, 1]} : vector<16x64xf32> to vector<16x16xf32>
    %49 = vector.shape_cast %48 : vector<16x16xf32> to vector<1x16x16xf32>
    %50 = vector.extract_strided_slice %43 {offsets = [0, 16], sizes = [16, 16], strides = [1, 1]} : vector<16x64xf32> to vector<16x16xf32>
    %51 = vector.shape_cast %50 : vector<16x16xf32> to vector<1x16x16xf32>
    %52 = vector.extract_strided_slice %43 {offsets = [0, 32], sizes = [16, 16], strides = [1, 1]} : vector<16x64xf32> to vector<16x16xf32>
    %53 = vector.shape_cast %52 : vector<16x16xf32> to vector<1x16x16xf32>
    %54 = vector.extract_strided_slice %43 {offsets = [0, 48], sizes = [16, 16], strides = [1, 1]} : vector<16x64xf32> to vector<16x16xf32>
    %55 = vector.shape_cast %54 : vector<16x16xf32> to vector<1x16x16xf32>
    %56 = tpu.concatenate %49, %51, %53, %55 in 0 : vector<1x16x16xf32>, vector<1x16x16xf32>, vector<1x16x16xf32>, vector<1x16x16xf32> -> vector<4x16x16xf32>
    %57 = arith.truncf %56 : vector<4x16x16xf32> to vector<4x16x16xbf16>
    %58 = vector.extract_strided_slice %44 {offsets = [0, 0], sizes = [16, 16], strides = [1, 1]} : vector<16x64xf32> to vector<16x16xf32>
    %59 = vector.shape_cast %58 : vector<16x16xf32> to vector<1x16x16xf32>
    %60 = vector.extract_strided_slice %44 {offsets = [0, 16], sizes = [16, 16], strides = [1, 1]} : vector<16x64xf32> to vector<16x16xf32>
    %61 = vector.shape_cast %60 : vector<16x16xf32> to vector<1x16x16xf32>
    %62 = vector.extract_strided_slice %44 {offsets = [0, 32], sizes = [16, 16], strides = [1, 1]} : vector<16x64xf32> to vector<16x16xf32>
    %63 = vector.shape_cast %62 : vector<16x16xf32> to vector<1x16x16xf32>
    %64 = vector.extract_strided_slice %44 {offsets = [0, 48], sizes = [16, 16], strides = [1, 1]} : vector<16x64xf32> to vector<16x16xf32>
    %65 = vector.shape_cast %64 : vector<16x16xf32> to vector<1x16x16xf32>
    %66 = tpu.concatenate %59, %61, %63, %65 in 0 : vector<1x16x16xf32>, vector<1x16x16xf32>, vector<1x16x16xf32>, vector<1x16x16xf32> -> vector<4x16x16xf32>
    %67 = arith.truncf %66 : vector<4x16x16xf32> to vector<4x16x16xbf16>
    %68 = vector.extract_strided_slice %45 {offsets = [0, 0], sizes = [16, 16], strides = [1, 1]} : vector<16x64xf32> to vector<16x16xf32>
    %69 = vector.shape_cast %68 : vector<16x16xf32> to vector<1x16x16xf32>
    %70 = vector.extract_strided_slice %45 {offsets = [0, 16], sizes = [16, 16], strides = [1, 1]} : vector<16x64xf32> to vector<16x16xf32>
    %71 = vector.shape_cast %70 : vector<16x16xf32> to vector<1x16x16xf32>
    %72 = vector.extract_strided_slice %45 {offsets = [0, 32], sizes = [16, 16], strides = [1, 1]} : vector<16x64xf32> to vector<16x16xf32>
    %73 = vector.shape_cast %72 : vector<16x16xf32> to vector<1x16x16xf32>
    %74 = vector.extract_strided_slice %45 {offsets = [0, 48], sizes = [16, 16], strides = [1, 1]} : vector<16x64xf32> to vector<16x16xf32>
    %75 = vector.shape_cast %74 : vector<16x16xf32> to vector<1x16x16xf32>
    %76 = tpu.concatenate %69, %71, %73, %75 in 0 : vector<1x16x16xf32>, vector<1x16x16xf32>, vector<1x16x16xf32>, vector<1x16x16xf32> -> vector<4x16x16xf32>
    %77 = arith.truncf %76 : vector<4x16x16xf32> to vector<4x16x16xbf16>
    "tpu.trace_start"() <{level = 10 : i32, message = "hqd,hkd->hqk"}> : () -> ()
    %cst_20 = arith.constant dense<0.000000e+00> : vector<4x16x16xf32>
    %78 = tpu.matmul %57, %67, %cst_20 {dimension_numbers = #tpu.dot_dimension_numbers<[2], [2], [1], [1], [0, 0, 0, 1, 1, 1], [0], [0]>} : vector<4x16x16xbf16>, vector<4x16x16xbf16>, vector<4x16x16xf32> -> vector<4x16x16xf32>
    "tpu.trace_stop"() : () -> ()
    %79 = arith.addf %78, %7 : vector<4x16x16xf32>
    %cst_21 = arith.constant dense<0xFF800000> : vector<4x16xf32>
    %80 = vector.multi_reduction <maximumf>, %79, %cst_21 [2] : vector<4x16x16xf32> to vector<4x16xf32>
    %81 = vector.shape_cast %80 : vector<4x16xf32> to vector<4x16x1xf32>
    %82 = vector.broadcast %81 : vector<4x16x1xf32> to vector<4x16x16xf32>
    %83 = arith.subf %79, %82 : vector<4x16x16xf32>
    %84 = math.exp %83 : vector<4x16x16xf32>
    %cst_22 = arith.constant dense<0.000000e+00> : vector<4x16xf32>
    %85 = vector.multi_reduction <add>, %84, %cst_22 [2] : vector<4x16x16xf32> to vector<4x16xf32>
    %86 = vector.shape_cast %85 : vector<4x16xf32> to vector<4x16x1xf32>
    %87 = tpu.reciprocal %86 {approx = true} : vector<4x16x1xf32> -> vector<4x16x1xf32>
    %88 = vector.broadcast %87 : vector<4x16x1xf32> to vector<4x16x16xf32>
    %89 = arith.mulf %84, %88 : vector<4x16x16xf32>
    %90 = arith.truncf %89 : vector<4x16x16xf32> to vector<4x16x16xbf16>
    "tpu.trace_start"() <{level = 10 : i32, message = "hqk,hkd->hqd"}> : () -> ()
    %cst_23 = arith.constant dense<0.000000e+00> : vector<4x16x16xf32>
    %91 = tpu.matmul %90, %77, %cst_23 {dimension_numbers = #tpu.dot_dimension_numbers<[2], [1], [1], [2], [0, 0, 0, 1, 1, 2], [0], [0]>} : vector<4x16x16xbf16>, vector<4x16x16xbf16>, vector<4x16x16xf32> -> vector<4x16x16xf32>
    "tpu.trace_stop"() : () -> ()
    %92 = vector.extract_strided_slice %91 {offsets = [0, 0, 0], sizes = [1, 16, 16], strides = [1, 1, 1]} : vector<4x16x16xf32> to vector<1x16x16xf32>
    %93 = vector.shape_cast %92 : vector<1x16x16xf32> to vector<16x16xf32>
    %94 = vector.extract_strided_slice %91 {offsets = [1, 0, 0], sizes = [1, 16, 16], strides = [1, 1, 1]} : vector<4x16x16xf32> to vector<1x16x16xf32>
    %95 = vector.shape_cast %94 : vector<1x16x16xf32> to vector<16x16xf32>
    %96 = vector.extract_strided_slice %91 {offsets = [2, 0, 0], sizes = [1, 16, 16], strides = [1, 1, 1]} : vector<4x16x16xf32> to vector<1x16x16xf32>
    %97 = vector.shape_cast %96 : vector<1x16x16xf32> to vector<16x16xf32>
    %98 = vector.extract_strided_slice %91 {offsets = [3, 0, 0], sizes = [1, 16, 16], strides = [1, 1, 1]} : vector<4x16x16xf32> to vector<1x16x16xf32>
    %99 = vector.shape_cast %98 : vector<1x16x16xf32> to vector<16x16xf32>
    %100 = tpu.concatenate %93, %95, %97, %99 in 1 : vector<16x16xf32>, vector<16x16xf32>, vector<16x16xf32>, vector<16x16xf32> -> vector<16x64xf32>
    %101 = arith.truncf %100 : vector<16x64xf32> to vector<16x64xbf16>
    %cst_24 = arith.constant dense<0.000000e+00> : vector<16x64xf32>
    %102 = tpu.matmul %101, %46, %cst_24 {dimension_numbers = #tpu.dot_dimension_numbers<[1], [0], [0], [1], [0, 0, 1, 1], [], []>} : vector<16x64xbf16>, vector<64x64xbf16>, vector<16x64xf32> -> vector<16x64xf32>
    %103 = vector.broadcast %47 : vector<1x64xf32> to vector<16x64xf32>
    %104 = arith.addf %102, %103 : vector<16x64xf32>
    %105 = arith.addf %1, %104 : vector<16x64xf32>
    %cst_25 = arith.constant dense<0.000000e+00> : vector<16xf32>
    %106 = vector.multi_reduction <add>, %105, %cst_25 [1] : vector<16x64xf32> to vector<16xf32>
    %107 = vector.shape_cast %106 : vector<16xf32> to vector<16x1xf32>
    %cst_26 = arith.constant 6.400000e+01 : f32
    %108 = vector.broadcast %cst_26 : f32 to vector<16x1xf32>
    %109 = arith.divf %107, %108 : vector<16x1xf32>
    %110 = vector.broadcast %109 : vector<16x1xf32> to vector<16x64xf32>
    %111 = arith.subf %105, %110 : vector<16x64xf32>
    %112 = arith.mulf %111, %111 : vector<16x64xf32>
    %cst_27 = arith.constant dense<0.000000e+00> : vector<16xf32>
    %113 = vector.multi_reduction <add>, %112, %cst_27 [1] : vector<16x64xf32> to vector<16xf32>
    %114 = vector.shape_cast %113 : vector<16xf32> to vector<16x1xf32>
    %cst_28 = arith.constant 0.0158730168 : f32
    %115 = vector.broadcast %cst_28 : f32 to vector<16x1xf32>
    %116 = arith.mulf %114, %115 : vector<16x1xf32>
    %117 = math.sqrt %116 : vector<16x1xf32>
    %cst_29 = arith.constant 1.000000e+04 : f32
    %118 = vector.broadcast %cst_29 : f32 to vector<16x1xf32>
    %119 = arith.addf %117, %118 : vector<16x1xf32>
    %120 = tpu.reciprocal %119 {approx = true} : vector<16x1xf32> -> vector<16x1xf32>
    %121 = vector.broadcast %120 : vector<16x1xf32> to vector<16x64xf32>
    %122 = arith.mulf %111, %121 : vector<16x64xf32>
    %cst_30 = arith.constant 1.000000e+00 : f32
    %123 = vector.broadcast %cst_30 : f32 to vector<16x64xf32>
    %124 = arith.addf %122, %123 : vector<16x64xf32>
    %125 = arith.truncf %124 : vector<16x64xf32> to vector<16x64xbf16>
    %c0_31 = arith.constant 0 : index
    %c256 = arith.constant 256 : index
    %126 = vector.load %arg2[%c0_31, %c256] : memref<64x1024xbf16, #tpu.memory_space<vmem>>, vector<64x64xbf16>
    %cst_32 = arith.constant dense<0.000000e+00> : vector<16x64xf32>
    %127 = tpu.matmul %125, %126, %cst_32 {dimension_numbers = #tpu.dot_dimension_numbers<[1], [0], [0], [1], [0, 0, 1, 1], [], []>} : vector<16x64xbf16>, vector<64x64xbf16>, vector<16x64xf32> -> vector<16x64xf32>
    %c0_33 = arith.constant 0 : index
    %c256_34 = arith.constant 256 : index
    %128 = vector.load %arg5[%c0_33, %c256_34] : memref<1x1408xf32, #tpu.memory_space<vmem>>, vector<1x64xf32>
    %129 = vector.broadcast %128 : vector<1x64xf32> to vector<16x64xf32>
    %130 = arith.addf %127, %129 : vector<16x64xf32>
    %131 = vector.extract_strided_slice %17 {offsets = [0, 0], sizes = [16, 64], strides = [1, 1]} : vector<16x256xf32> to vector<16x64xf32>
    %132 = vector.extract_strided_slice %17 {offsets = [0, 64], sizes = [16, 64], strides = [1, 1]} : vector<16x256xf32> to vector<16x64xf32>
    %c0_35 = arith.constant 0 : index
    %c320 = arith.constant 320 : index
    %133 = vector.load %arg2[%c0_35, %c320] : memref<64x1024xbf16, #tpu.memory_space<vmem>>, vector<64x64xbf16>
    %c0_36 = arith.constant 0 : index
    %c320_37 = arith.constant 320 : index
    %134 = vector.load %arg5[%c0_36, %c320_37] : memref<1x1408xf32, #tpu.memory_space<vmem>>, vector<1x64xf32>
    %135 = vector.extract_strided_slice %130 {offsets = [0, 0], sizes = [16, 16], strides = [1, 1]} : vector<16x64xf32> to vector<16x16xf32>
    %136 = vector.shape_cast %135 : vector<16x16xf32> to vector<1x16x16xf32>
    %137 = vector.extract_strided_slice %130 {offsets = [0, 16], sizes = [16, 16], strides = [1, 1]} : vector<16x64xf32> to vector<16x16xf32>
    %138 = vector.shape_cast %137 : vector<16x16xf32> to vector<1x16x16xf32>
    %139 = vector.extract_strided_slice %130 {offsets = [0, 32], sizes = [16, 16], strides = [1, 1]} : vector<16x64xf32> to vector<16x16xf32>
    %140 = vector.shape_cast %139 : vector<16x16xf32> to vector<1x16x16xf32>
    %141 = vector.extract_strided_slice %130 {offsets = [0, 48], sizes = [16, 16], strides = [1, 1]} : vector<16x64xf32> to vector<16x16xf32>
    %142 = vector.shape_cast %141 : vector<16x16xf32> to vector<1x16x16xf32>
    %143 = tpu.concatenate %136, %138, %140, %142 in 0 : vector<1x16x16xf32>, vector<1x16x16xf32>, vector<1x16x16xf32>, vector<1x16x16xf32> -> vector<4x16x16xf32>
    %144 = arith.truncf %143 : vector<4x16x16xf32> to vector<4x16x16xbf16>
    %145 = vector.extract_strided_slice %131 {offsets = [0, 0], sizes = [16, 16], strides = [1, 1]} : vector<16x64xf32> to vector<16x16xf32>
    %146 = vector.shape_cast %145 : vector<16x16xf32> to vector<1x16x16xf32>
    %147 = vector.extract_strided_slice %131 {offsets = [0, 16], sizes = [16, 16], strides = [1, 1]} : vector<16x64xf32> to vector<16x16xf32>
    %148 = vector.shape_cast %147 : vector<16x16xf32> to vector<1x16x16xf32>
    %149 = vector.extract_strided_slice %131 {offsets = [0, 32], sizes = [16, 16], strides = [1, 1]} : vector<16x64xf32> to vector<16x16xf32>
    %150 = vector.shape_cast %149 : vector<16x16xf32> to vector<1x16x16xf32>
    %151 = vector.extract_strided_slice %131 {offsets = [0, 48], sizes = [16, 16], strides = [1, 1]} : vector<16x64xf32> to vector<16x16xf32>
    %152 = vector.shape_cast %151 : vector<16x16xf32> to vector<1x16x16xf32>
    %153 = tpu.concatenate %146, %148, %150, %152 in 0 : vector<1x16x16xf32>, vector<1x16x16xf32>, vector<1x16x16xf32>, vector<1x16x16xf32> -> vector<4x16x16xf32>
    %154 = arith.truncf %153 : vector<4x16x16xf32> to vector<4x16x16xbf16>
    %155 = vector.extract_strided_slice %132 {offsets = [0, 0], sizes = [16, 16], strides = [1, 1]} : vector<16x64xf32> to vector<16x16xf32>
    %156 = vector.shape_cast %155 : vector<16x16xf32> to vector<1x16x16xf32>
    %157 = vector.extract_strided_slice %132 {offsets = [0, 16], sizes = [16, 16], strides = [1, 1]} : vector<16x64xf32> to vector<16x16xf32>
    %158 = vector.shape_cast %157 : vector<16x16xf32> to vector<1x16x16xf32>
    %159 = vector.extract_strided_slice %132 {offsets = [0, 32], sizes = [16, 16], strides = [1, 1]} : vector<16x64xf32> to vector<16x16xf32>
    %160 = vector.shape_cast %159 : vector<16x16xf32> to vector<1x16x16xf32>
    %161 = vector.extract_strided_slice %132 {offsets = [0, 48], sizes = [16, 16], strides = [1, 1]} : vector<16x64xf32> to vector<16x16xf32>
    %162 = vector.shape_cast %161 : vector<16x16xf32> to vector<1x16x16xf32>
    %163 = tpu.concatenate %156, %158, %160, %162 in 0 : vector<1x16x16xf32>, vector<1x16x16xf32>, vector<1x16x16xf32>, vector<1x16x16xf32> -> vector<4x16x16xf32>
    %164 = arith.truncf %163 : vector<4x16x16xf32> to vector<4x16x16xbf16>
    "tpu.trace_start"() <{level = 10 : i32, message = "hqd,hkd->hqk"}> : () -> ()
    %cst_38 = arith.constant dense<0.000000e+00> : vector<4x16x16xf32>
    %165 = tpu.matmul %144, %154, %cst_38 {dimension_numbers = #tpu.dot_dimension_numbers<[2], [2], [1], [1], [0, 0, 0, 1, 1, 1], [0], [0]>} : vector<4x16x16xbf16>, vector<4x16x16xbf16>, vector<4x16x16xf32> -> vector<4x16x16xf32>
    "tpu.trace_stop"() : () -> ()
    %166 = arith.addf %165, %11 : vector<4x16x16xf32>
    %cst_39 = arith.constant dense<0xFF800000> : vector<4x16xf32>
    %167 = vector.multi_reduction <maximumf>, %166, %cst_39 [2] : vector<4x16x16xf32> to vector<4x16xf32>
    %168 = vector.shape_cast %167 : vector<4x16xf32> to vector<4x16x1xf32>
    %169 = vector.broadcast %168 : vector<4x16x1xf32> to vector<4x16x16xf32>
    %170 = arith.subf %166, %169 : vector<4x16x16xf32>
    %171 = math.exp %170 : vector<4x16x16xf32>
    %cst_40 = arith.constant dense<0.000000e+00> : vector<4x16xf32>
    %172 = vector.multi_reduction <add>, %171, %cst_40 [2] : vector<4x16x16xf32> to vector<4x16xf32>
    %173 = vector.shape_cast %172 : vector<4x16xf32> to vector<4x16x1xf32>
    %174 = tpu.reciprocal %173 {approx = true} : vector<4x16x1xf32> -> vector<4x16x1xf32>
    %175 = vector.broadcast %174 : vector<4x16x1xf32> to vector<4x16x16xf32>
    %176 = arith.mulf %171, %175 : vector<4x16x16xf32>
    %177 = arith.truncf %176 : vector<4x16x16xf32> to vector<4x16x16xbf16>
    "tpu.trace_start"() <{level = 10 : i32, message = "hqk,hkd->hqd"}> : () -> ()
    %cst_41 = arith.constant dense<0.000000e+00> : vector<4x16x16xf32>
    %178 = tpu.matmul %177, %164, %cst_41 {dimension_numbers = #tpu.dot_dimension_numbers<[2], [1], [1], [2], [0, 0, 0, 1, 1, 2], [0], [0]>} : vector<4x16x16xbf16>, vector<4x16x16xbf16>, vector<4x16x16xf32> -> vector<4x16x16xf32>
    "tpu.trace_stop"() : () -> ()
    %179 = vector.extract_strided_slice %178 {offsets = [0, 0, 0], sizes = [1, 16, 16], strides = [1, 1, 1]} : vector<4x16x16xf32> to vector<1x16x16xf32>
    %180 = vector.shape_cast %179 : vector<1x16x16xf32> to vector<16x16xf32>
    %181 = vector.extract_strided_slice %178 {offsets = [1, 0, 0], sizes = [1, 16, 16], strides = [1, 1, 1]} : vector<4x16x16xf32> to vector<1x16x16xf32>
    %182 = vector.shape_cast %181 : vector<1x16x16xf32> to vector<16x16xf32>
    %183 = vector.extract_strided_slice %178 {offsets = [2, 0, 0], sizes = [1, 16, 16], strides = [1, 1, 1]} : vector<4x16x16xf32> to vector<1x16x16xf32>
    %184 = vector.shape_cast %183 : vector<1x16x16xf32> to vector<16x16xf32>
    %185 = vector.extract_strided_slice %178 {offsets = [3, 0, 0], sizes = [1, 16, 16], strides = [1, 1, 1]} : vector<4x16x16xf32> to vector<1x16x16xf32>
    %186 = vector.shape_cast %185 : vector<1x16x16xf32> to vector<16x16xf32>
    %187 = tpu.concatenate %180, %182, %184, %186 in 1 : vector<16x16xf32>, vector<16x16xf32>, vector<16x16xf32>, vector<16x16xf32> -> vector<16x64xf32>
    %188 = arith.truncf %187 : vector<16x64xf32> to vector<16x64xbf16>
    %cst_42 = arith.constant dense<0.000000e+00> : vector<16x64xf32>
    %189 = tpu.matmul %188, %133, %cst_42 {dimension_numbers = #tpu.dot_dimension_numbers<[1], [0], [0], [1], [0, 0, 1, 1], [], []>} : vector<16x64xbf16>, vector<64x64xbf16>, vector<16x64xf32> -> vector<16x64xf32>
    %190 = vector.broadcast %134 : vector<1x64xf32> to vector<16x64xf32>
    %191 = arith.addf %189, %190 : vector<16x64xf32>
    %192 = arith.addf %105, %191 : vector<16x64xf32>
    %cst_43 = arith.constant dense<0.000000e+00> : vector<16xf32>
    %193 = vector.multi_reduction <add>, %192, %cst_43 [1] : vector<16x64xf32> to vector<16xf32>
    %194 = vector.shape_cast %193 : vector<16xf32> to vector<16x1xf32>
    %cst_44 = arith.constant 6.400000e+01 : f32
    %195 = vector.broadcast %cst_44 : f32 to vector<16x1xf32>
    %196 = arith.divf %194, %195 : vector<16x1xf32>
    %197 = vector.broadcast %196 : vector<16x1xf32> to vector<16x64xf32>
    %198 = arith.subf %192, %197 : vector<16x64xf32>
    %199 = arith.mulf %198, %198 : vector<16x64xf32>
    %cst_45 = arith.constant dense<0.000000e+00> : vector<16xf32>
    %200 = vector.multi_reduction <add>, %199, %cst_45 [1] : vector<16x64xf32> to vector<16xf32>
    %201 = vector.shape_cast %200 : vector<16xf32> to vector<16x1xf32>
    %cst_46 = arith.constant 0.0158730168 : f32
    %202 = vector.broadcast %cst_46 : f32 to vector<16x1xf32>
    %203 = arith.mulf %201, %202 : vector<16x1xf32>
    %204 = math.sqrt %203 : vector<16x1xf32>
    %cst_47 = arith.constant 1.000000e+04 : f32
    %205 = vector.broadcast %cst_47 : f32 to vector<16x1xf32>
    %206 = arith.addf %204, %205 : vector<16x1xf32>
    %207 = tpu.reciprocal %206 {approx = true} : vector<16x1xf32> -> vector<16x1xf32>
    %208 = vector.broadcast %207 : vector<16x1xf32> to vector<16x64xf32>
    %209 = arith.mulf %198, %208 : vector<16x64xf32>
    %cst_48 = arith.constant 1.000000e+00 : f32
    %210 = vector.broadcast %cst_48 : f32 to vector<16x64xf32>
    %211 = arith.addf %209, %210 : vector<16x64xf32>
    %212 = arith.truncf %211 : vector<16x64xf32> to vector<16x64xbf16>
    %c0_49 = arith.constant 0 : index
    %c384 = arith.constant 384 : index
    %213 = vector.load %arg2[%c0_49, %c384] : memref<64x1024xbf16, #tpu.memory_space<vmem>>, vector<64x128xbf16>
    %cst_50 = arith.constant dense<0.000000e+00> : vector<16x128xf32>
    %214 = tpu.matmul %212, %213, %cst_50 {dimension_numbers = #tpu.dot_dimension_numbers<[1], [0], [0], [1], [0, 0, 1, 1], [], []>} : vector<16x64xbf16>, vector<64x128xbf16>, vector<16x128xf32> -> vector<16x128xf32>
    %c0_51 = arith.constant 0 : index
    %c384_52 = arith.constant 384 : index
    %215 = vector.load %arg5[%c0_51, %c384_52] : memref<1x1408xf32, #tpu.memory_space<vmem>>, vector<1x128xf32>
    %216 = vector.broadcast %215 : vector<1x128xf32> to vector<16x128xf32>
    %217 = arith.addf %214, %216 : vector<16x128xf32>
    %cst_53 = arith.constant 0.000000e+00 : f32
    %218 = vector.broadcast %cst_53 : f32 to vector<16x128xf32>
    %219 = arith.maximumf %217, %218 : vector<16x128xf32>
    %220 = arith.truncf %219 : vector<16x128xf32> to vector<16x128xbf16>
    %c0_54 = arith.constant 0 : index
    %c0_55 = arith.constant 0 : index
    %221 = vector.load %arg4[%c0_54, %c0_55] : memref<128x128xbf16, #tpu.memory_space<vmem>>, vector<128x64xbf16>
    %cst_56 = arith.constant dense<0.000000e+00> : vector<16x64xf32>
    %222 = tpu.matmul %220, %221, %cst_56 {dimension_numbers = #tpu.dot_dimension_numbers<[1], [0], [0], [1], [0, 0, 1, 1], [], []>} : vector<16x128xbf16>, vector<128x64xbf16>, vector<16x64xf32> -> vector<16x64xf32>
    %223 = arith.addf %192, %222 : vector<16x64xf32>
    %c0_57 = arith.constant 0 : index
    %c512 = arith.constant 512 : index
    %224 = vector.load %arg5[%c0_57, %c512] : memref<1x1408xf32, #tpu.memory_space<vmem>>, vector<1x64xf32>
    %225 = vector.broadcast %224 : vector<1x64xf32> to vector<16x64xf32>
    %226 = arith.addf %223, %225 : vector<16x64xf32>
    %cst_58 = arith.constant dense<0.000000e+00> : vector<16xf32>
    %227 = vector.multi_reduction <add>, %226, %cst_58 [1] : vector<16x64xf32> to vector<16xf32>
    %228 = vector.shape_cast %227 : vector<16xf32> to vector<16x1xf32>
    %cst_59 = arith.constant 6.400000e+01 : f32
    %229 = vector.broadcast %cst_59 : f32 to vector<16x1xf32>
    %230 = arith.divf %228, %229 : vector<16x1xf32>
    %231 = vector.broadcast %230 : vector<16x1xf32> to vector<16x64xf32>
    %232 = arith.subf %226, %231 : vector<16x64xf32>
    %233 = arith.mulf %232, %232 : vector<16x64xf32>
    %cst_60 = arith.constant dense<0.000000e+00> : vector<16xf32>
    %234 = vector.multi_reduction <add>, %233, %cst_60 [1] : vector<16x64xf32> to vector<16xf32>
    %235 = vector.shape_cast %234 : vector<16xf32> to vector<16x1xf32>
    %cst_61 = arith.constant 0.0158730168 : f32
    %236 = vector.broadcast %cst_61 : f32 to vector<16x1xf32>
    %237 = arith.mulf %235, %236 : vector<16x1xf32>
    %238 = math.sqrt %237 : vector<16x1xf32>
    %cst_62 = arith.constant 1.000000e+04 : f32
    %239 = vector.broadcast %cst_62 : f32 to vector<16x1xf32>
    %240 = arith.addf %238, %239 : vector<16x1xf32>
    %241 = tpu.reciprocal %240 {approx = true} : vector<16x1xf32> -> vector<16x1xf32>
    %242 = vector.broadcast %241 : vector<16x1xf32> to vector<16x64xf32>
    %243 = arith.mulf %232, %242 : vector<16x64xf32>
    %cst_63 = arith.constant 1.000000e+00 : f32
    %244 = vector.broadcast %cst_63 : f32 to vector<16x64xf32>
    %245 = arith.addf %243, %244 : vector<16x64xf32>
    %246 = arith.truncf %245 : vector<16x64xf32> to vector<16x64xbf16>
    %c0_64 = arith.constant 0 : index
    %c512_65 = arith.constant 512 : index
    %247 = vector.load %arg2[%c0_64, %c512_65] : memref<64x1024xbf16, #tpu.memory_space<vmem>>, vector<64x192xbf16>
    %cst_66 = arith.constant dense<0.000000e+00> : vector<16x192xf32>
    %248 = tpu.matmul %246, %247, %cst_66 {dimension_numbers = #tpu.dot_dimension_numbers<[1], [0], [0], [1], [0, 0, 1, 1], [], []>} : vector<16x64xbf16>, vector<64x192xbf16>, vector<16x192xf32> -> vector<16x192xf32>
    %c0_67 = arith.constant 0 : index
    %c576 = arith.constant 576 : index
    %249 = vector.load %arg5[%c0_67, %c576] : memref<1x1408xf32, #tpu.memory_space<vmem>>, vector<1x192xf32>
    %250 = vector.broadcast %249 : vector<1x192xf32> to vector<16x192xf32>
    %251 = arith.addf %248, %250 : vector<16x192xf32>
    %252 = vector.extract_strided_slice %251 {offsets = [0, 0], sizes = [16, 64], strides = [1, 1]} : vector<16x192xf32> to vector<16x64xf32>
    %253 = vector.extract_strided_slice %251 {offsets = [0, 64], sizes = [16, 64], strides = [1, 1]} : vector<16x192xf32> to vector<16x64xf32>
    %254 = vector.extract_strided_slice %251 {offsets = [0, 128], sizes = [16, 64], strides = [1, 1]} : vector<16x192xf32> to vector<16x64xf32>
    %c0_68 = arith.constant 0 : index
    %c704 = arith.constant 704 : index
    %255 = vector.load %arg2[%c0_68, %c704] : memref<64x1024xbf16, #tpu.memory_space<vmem>>, vector<64x64xbf16>
    %c0_69 = arith.constant 0 : index
    %c768 = arith.constant 768 : index
    %256 = vector.load %arg5[%c0_69, %c768] : memref<1x1408xf32, #tpu.memory_space<vmem>>, vector<1x64xf32>
    %257 = vector.extract_strided_slice %252 {offsets = [0, 0], sizes = [16, 16], strides = [1, 1]} : vector<16x64xf32> to vector<16x16xf32>
    %258 = vector.shape_cast %257 : vector<16x16xf32> to vector<1x16x16xf32>
    %259 = vector.extract_strided_slice %252 {offsets = [0, 16], sizes = [16, 16], strides = [1, 1]} : vector<16x64xf32> to vector<16x16xf32>
    %260 = vector.shape_cast %259 : vector<16x16xf32> to vector<1x16x16xf32>
    %261 = vector.extract_strided_slice %252 {offsets = [0, 32], sizes = [16, 16], strides = [1, 1]} : vector<16x64xf32> to vector<16x16xf32>
    %262 = vector.shape_cast %261 : vector<16x16xf32> to vector<1x16x16xf32>
    %263 = vector.extract_strided_slice %252 {offsets = [0, 48], sizes = [16, 16], strides = [1, 1]} : vector<16x64xf32> to vector<16x16xf32>
    %264 = vector.shape_cast %263 : vector<16x16xf32> to vector<1x16x16xf32>
    %265 = tpu.concatenate %258, %260, %262, %264 in 0 : vector<1x16x16xf32>, vector<1x16x16xf32>, vector<1x16x16xf32>, vector<1x16x16xf32> -> vector<4x16x16xf32>
    %266 = arith.truncf %265 : vector<4x16x16xf32> to vector<4x16x16xbf16>
    %267 = vector.extract_strided_slice %253 {offsets = [0, 0], sizes = [16, 16], strides = [1, 1]} : vector<16x64xf32> to vector<16x16xf32>
    %268 = vector.shape_cast %267 : vector<16x16xf32> to vector<1x16x16xf32>
    %269 = vector.extract_strided_slice %253 {offsets = [0, 16], sizes = [16, 16], strides = [1, 1]} : vector<16x64xf32> to vector<16x16xf32>
    %270 = vector.shape_cast %269 : vector<16x16xf32> to vector<1x16x16xf32>
    %271 = vector.extract_strided_slice %253 {offsets = [0, 32], sizes = [16, 16], strides = [1, 1]} : vector<16x64xf32> to vector<16x16xf32>
    %272 = vector.shape_cast %271 : vector<16x16xf32> to vector<1x16x16xf32>
    %273 = vector.extract_strided_slice %253 {offsets = [0, 48], sizes = [16, 16], strides = [1, 1]} : vector<16x64xf32> to vector<16x16xf32>
    %274 = vector.shape_cast %273 : vector<16x16xf32> to vector<1x16x16xf32>
    %275 = tpu.concatenate %268, %270, %272, %274 in 0 : vector<1x16x16xf32>, vector<1x16x16xf32>, vector<1x16x16xf32>, vector<1x16x16xf32> -> vector<4x16x16xf32>
    %276 = arith.truncf %275 : vector<4x16x16xf32> to vector<4x16x16xbf16>
    %277 = vector.extract_strided_slice %254 {offsets = [0, 0], sizes = [16, 16], strides = [1, 1]} : vector<16x64xf32> to vector<16x16xf32>
    %278 = vector.shape_cast %277 : vector<16x16xf32> to vector<1x16x16xf32>
    %279 = vector.extract_strided_slice %254 {offsets = [0, 16], sizes = [16, 16], strides = [1, 1]} : vector<16x64xf32> to vector<16x16xf32>
    %280 = vector.shape_cast %279 : vector<16x16xf32> to vector<1x16x16xf32>
    %281 = vector.extract_strided_slice %254 {offsets = [0, 32], sizes = [16, 16], strides = [1, 1]} : vector<16x64xf32> to vector<16x16xf32>
    %282 = vector.shape_cast %281 : vector<16x16xf32> to vector<1x16x16xf32>
    %283 = vector.extract_strided_slice %254 {offsets = [0, 48], sizes = [16, 16], strides = [1, 1]} : vector<16x64xf32> to vector<16x16xf32>
    %284 = vector.shape_cast %283 : vector<16x16xf32> to vector<1x16x16xf32>
    %285 = tpu.concatenate %278, %280, %282, %284 in 0 : vector<1x16x16xf32>, vector<1x16x16xf32>, vector<1x16x16xf32>, vector<1x16x16xf32> -> vector<4x16x16xf32>
    %286 = arith.truncf %285 : vector<4x16x16xf32> to vector<4x16x16xbf16>
    "tpu.trace_start"() <{level = 10 : i32, message = "hqd,hkd->hqk"}> : () -> ()
    %cst_70 = arith.constant dense<0.000000e+00> : vector<4x16x16xf32>
    %287 = tpu.matmul %266, %276, %cst_70 {dimension_numbers = #tpu.dot_dimension_numbers<[2], [2], [1], [1], [0, 0, 0, 1, 1, 1], [0], [0]>} : vector<4x16x16xbf16>, vector<4x16x16xbf16>, vector<4x16x16xf32> -> vector<4x16x16xf32>
    "tpu.trace_stop"() : () -> ()
    %288 = arith.addf %287, %7 : vector<4x16x16xf32>
    %cst_71 = arith.constant dense<0xFF800000> : vector<4x16xf32>
    %289 = vector.multi_reduction <maximumf>, %288, %cst_71 [2] : vector<4x16x16xf32> to vector<4x16xf32>
    %290 = vector.shape_cast %289 : vector<4x16xf32> to vector<4x16x1xf32>
    %291 = vector.broadcast %290 : vector<4x16x1xf32> to vector<4x16x16xf32>
    %292 = arith.subf %288, %291 : vector<4x16x16xf32>
    %293 = math.exp %292 : vector<4x16x16xf32>
    %cst_72 = arith.constant dense<0.000000e+00> : vector<4x16xf32>
    %294 = vector.multi_reduction <add>, %293, %cst_72 [2] : vector<4x16x16xf32> to vector<4x16xf32>
    %295 = vector.shape_cast %294 : vector<4x16xf32> to vector<4x16x1xf32>
    %296 = tpu.reciprocal %295 {approx = true} : vector<4x16x1xf32> -> vector<4x16x1xf32>
    %297 = vector.broadcast %296 : vector<4x16x1xf32> to vector<4x16x16xf32>
    %298 = arith.mulf %293, %297 : vector<4x16x16xf32>
    %299 = arith.truncf %298 : vector<4x16x16xf32> to vector<4x16x16xbf16>
    "tpu.trace_start"() <{level = 10 : i32, message = "hqk,hkd->hqd"}> : () -> ()
    %cst_73 = arith.constant dense<0.000000e+00> : vector<4x16x16xf32>
    %300 = tpu.matmul %299, %286, %cst_73 {dimension_numbers = #tpu.dot_dimension_numbers<[2], [1], [1], [2], [0, 0, 0, 1, 1, 2], [0], [0]>} : vector<4x16x16xbf16>, vector<4x16x16xbf16>, vector<4x16x16xf32> -> vector<4x16x16xf32>
    "tpu.trace_stop"() : () -> ()
    %301 = vector.extract_strided_slice %300 {offsets = [0, 0, 0], sizes = [1, 16, 16], strides = [1, 1, 1]} : vector<4x16x16xf32> to vector<1x16x16xf32>
    %302 = vector.shape_cast %301 : vector<1x16x16xf32> to vector<16x16xf32>
    %303 = vector.extract_strided_slice %300 {offsets = [1, 0, 0], sizes = [1, 16, 16], strides = [1, 1, 1]} : vector<4x16x16xf32> to vector<1x16x16xf32>
    %304 = vector.shape_cast %303 : vector<1x16x16xf32> to vector<16x16xf32>
    %305 = vector.extract_strided_slice %300 {offsets = [2, 0, 0], sizes = [1, 16, 16], strides = [1, 1, 1]} : vector<4x16x16xf32> to vector<1x16x16xf32>
    %306 = vector.shape_cast %305 : vector<1x16x16xf32> to vector<16x16xf32>
    %307 = vector.extract_strided_slice %300 {offsets = [3, 0, 0], sizes = [1, 16, 16], strides = [1, 1, 1]} : vector<4x16x16xf32> to vector<1x16x16xf32>
    %308 = vector.shape_cast %307 : vector<1x16x16xf32> to vector<16x16xf32>
    %309 = tpu.concatenate %302, %304, %306, %308 in 1 : vector<16x16xf32>, vector<16x16xf32>, vector<16x16xf32>, vector<16x16xf32> -> vector<16x64xf32>
    %310 = arith.truncf %309 : vector<16x64xf32> to vector<16x64xbf16>
    %cst_74 = arith.constant dense<0.000000e+00> : vector<16x64xf32>
    %311 = tpu.matmul %310, %255, %cst_74 {dimension_numbers = #tpu.dot_dimension_numbers<[1], [0], [0], [1], [0, 0, 1, 1], [], []>} : vector<16x64xbf16>, vector<64x64xbf16>, vector<16x64xf32> -> vector<16x64xf32>
    %312 = vector.broadcast %256 : vector<1x64xf32> to vector<16x64xf32>
    %313 = arith.addf %311, %312 : vector<16x64xf32>
    %314 = arith.addf %226, %313 : vector<16x64xf32>
    %cst_75 = arith.constant dense<0.000000e+00> : vector<16xf32>
    %315 = vector.multi_reduction <add>, %314, %cst_75 [1] : vector<16x64xf32> to vector<16xf32>
    %316 = vector.shape_cast %315 : vector<16xf32> to vector<16x1xf32>
    %cst_76 = arith.constant 6.400000e+01 : f32
    %317 = vector.broadcast %cst_76 : f32 to vector<16x1xf32>
    %318 = arith.divf %316, %317 : vector<16x1xf32>
    %319 = vector.broadcast %318 : vector<16x1xf32> to vector<16x64xf32>
    %320 = arith.subf %314, %319 : vector<16x64xf32>
    %321 = arith.mulf %320, %320 : vector<16x64xf32>
    %cst_77 = arith.constant dense<0.000000e+00> : vector<16xf32>
    %322 = vector.multi_reduction <add>, %321, %cst_77 [1] : vector<16x64xf32> to vector<16xf32>
    %323 = vector.shape_cast %322 : vector<16xf32> to vector<16x1xf32>
    %cst_78 = arith.constant 0.0158730168 : f32
    %324 = vector.broadcast %cst_78 : f32 to vector<16x1xf32>
    %325 = arith.mulf %323, %324 : vector<16x1xf32>
    %326 = math.sqrt %325 : vector<16x1xf32>
    %cst_79 = arith.constant 1.000000e+04 : f32
    %327 = vector.broadcast %cst_79 : f32 to vector<16x1xf32>
    %328 = arith.addf %326, %327 : vector<16x1xf32>
    %329 = tpu.reciprocal %328 {approx = true} : vector<16x1xf32> -> vector<16x1xf32>
    %330 = vector.broadcast %329 : vector<16x1xf32> to vector<16x64xf32>
    %331 = arith.mulf %320, %330 : vector<16x64xf32>
    %cst_80 = arith.constant 1.000000e+00 : f32
    %332 = vector.broadcast %cst_80 : f32 to vector<16x64xf32>
    %333 = arith.addf %331, %332 : vector<16x64xf32>
    %334 = arith.truncf %333 : vector<16x64xf32> to vector<16x64xbf16>
    %c0_81 = arith.constant 0 : index
    %c768_82 = arith.constant 768 : index
    %335 = vector.load %arg2[%c0_81, %c768_82] : memref<64x1024xbf16, #tpu.memory_space<vmem>>, vector<64x64xbf16>
    %cst_83 = arith.constant dense<0.000000e+00> : vector<16x64xf32>
    %336 = tpu.matmul %334, %335, %cst_83 {dimension_numbers = #tpu.dot_dimension_numbers<[1], [0], [0], [1], [0, 0, 1, 1], [], []>} : vector<16x64xbf16>, vector<64x64xbf16>, vector<16x64xf32> -> vector<16x64xf32>
    %c0_84 = arith.constant 0 : index
    %c832 = arith.constant 832 : index
    %337 = vector.load %arg5[%c0_84, %c832] : memref<1x1408xf32, #tpu.memory_space<vmem>>, vector<1x64xf32>
    %338 = vector.broadcast %337 : vector<1x64xf32> to vector<16x64xf32>
    %339 = arith.addf %336, %338 : vector<16x64xf32>
    %340 = vector.extract_strided_slice %17 {offsets = [0, 128], sizes = [16, 64], strides = [1, 1]} : vector<16x256xf32> to vector<16x64xf32>
    %341 = vector.extract_strided_slice %17 {offsets = [0, 192], sizes = [16, 64], strides = [1, 1]} : vector<16x256xf32> to vector<16x64xf32>
    %c0_85 = arith.constant 0 : index
    %c832_86 = arith.constant 832 : index
    %342 = vector.load %arg2[%c0_85, %c832_86] : memref<64x1024xbf16, #tpu.memory_space<vmem>>, vector<64x64xbf16>
    %c0_87 = arith.constant 0 : index
    %c896 = arith.constant 896 : index
    %343 = vector.load %arg5[%c0_87, %c896] : memref<1x1408xf32, #tpu.memory_space<vmem>>, vector<1x64xf32>
    %344 = vector.extract_strided_slice %339 {offsets = [0, 0], sizes = [16, 16], strides = [1, 1]} : vector<16x64xf32> to vector<16x16xf32>
    %345 = vector.shape_cast %344 : vector<16x16xf32> to vector<1x16x16xf32>
    %346 = vector.extract_strided_slice %339 {offsets = [0, 16], sizes = [16, 16], strides = [1, 1]} : vector<16x64xf32> to vector<16x16xf32>
    %347 = vector.shape_cast %346 : vector<16x16xf32> to vector<1x16x16xf32>
    %348 = vector.extract_strided_slice %339 {offsets = [0, 32], sizes = [16, 16], strides = [1, 1]} : vector<16x64xf32> to vector<16x16xf32>
    %349 = vector.shape_cast %348 : vector<16x16xf32> to vector<1x16x16xf32>
    %350 = vector.extract_strided_slice %339 {offsets = [0, 48], sizes = [16, 16], strides = [1, 1]} : vector<16x64xf32> to vector<16x16xf32>
    %351 = vector.shape_cast %350 : vector<16x16xf32> to vector<1x16x16xf32>
    %352 = tpu.concatenate %345, %347, %349, %351 in 0 : vector<1x16x16xf32>, vector<1x16x16xf32>, vector<1x16x16xf32>, vector<1x16x16xf32> -> vector<4x16x16xf32>
    %353 = arith.truncf %352 : vector<4x16x16xf32> to vector<4x16x16xbf16>
    %354 = vector.extract_strided_slice %340 {offsets = [0, 0], sizes = [16, 16], strides = [1, 1]} : vector<16x64xf32> to vector<16x16xf32>
    %355 = vector.shape_cast %354 : vector<16x16xf32> to vector<1x16x16xf32>
    %356 = vector.extract_strided_slice %340 {offsets = [0, 16], sizes = [16, 16], strides = [1, 1]} : vector<16x64xf32> to vector<16x16xf32>
    %357 = vector.shape_cast %356 : vector<16x16xf32> to vector<1x16x16xf32>
    %358 = vector.extract_strided_slice %340 {offsets = [0, 32], sizes = [16, 16], strides = [1, 1]} : vector<16x64xf32> to vector<16x16xf32>
    %359 = vector.shape_cast %358 : vector<16x16xf32> to vector<1x16x16xf32>
    %360 = vector.extract_strided_slice %340 {offsets = [0, 48], sizes = [16, 16], strides = [1, 1]} : vector<16x64xf32> to vector<16x16xf32>
    %361 = vector.shape_cast %360 : vector<16x16xf32> to vector<1x16x16xf32>
    %362 = tpu.concatenate %355, %357, %359, %361 in 0 : vector<1x16x16xf32>, vector<1x16x16xf32>, vector<1x16x16xf32>, vector<1x16x16xf32> -> vector<4x16x16xf32>
    %363 = arith.truncf %362 : vector<4x16x16xf32> to vector<4x16x16xbf16>
    %364 = vector.extract_strided_slice %341 {offsets = [0, 0], sizes = [16, 16], strides = [1, 1]} : vector<16x64xf32> to vector<16x16xf32>
    %365 = vector.shape_cast %364 : vector<16x16xf32> to vector<1x16x16xf32>
    %366 = vector.extract_strided_slice %341 {offsets = [0, 16], sizes = [16, 16], strides = [1, 1]} : vector<16x64xf32> to vector<16x16xf32>
    %367 = vector.shape_cast %366 : vector<16x16xf32> to vector<1x16x16xf32>
    %368 = vector.extract_strided_slice %341 {offsets = [0, 32], sizes = [16, 16], strides = [1, 1]} : vector<16x64xf32> to vector<16x16xf32>
    %369 = vector.shape_cast %368 : vector<16x16xf32> to vector<1x16x16xf32>
    %370 = vector.extract_strided_slice %341 {offsets = [0, 48], sizes = [16, 16], strides = [1, 1]} : vector<16x64xf32> to vector<16x16xf32>
    %371 = vector.shape_cast %370 : vector<16x16xf32> to vector<1x16x16xf32>
    %372 = tpu.concatenate %365, %367, %369, %371 in 0 : vector<1x16x16xf32>, vector<1x16x16xf32>, vector<1x16x16xf32>, vector<1x16x16xf32> -> vector<4x16x16xf32>
    %373 = arith.truncf %372 : vector<4x16x16xf32> to vector<4x16x16xbf16>
    "tpu.trace_start"() <{level = 10 : i32, message = "hqd,hkd->hqk"}> : () -> ()
    %cst_88 = arith.constant dense<0.000000e+00> : vector<4x16x16xf32>
    %374 = tpu.matmul %353, %363, %cst_88 {dimension_numbers = #tpu.dot_dimension_numbers<[2], [2], [1], [1], [0, 0, 0, 1, 1, 1], [0], [0]>} : vector<4x16x16xbf16>, vector<4x16x16xbf16>, vector<4x16x16xf32> -> vector<4x16x16xf32>
    "tpu.trace_stop"() : () -> ()
    %375 = arith.addf %374, %11 : vector<4x16x16xf32>
    %cst_89 = arith.constant dense<0xFF800000> : vector<4x16xf32>
    %376 = vector.multi_reduction <maximumf>, %375, %cst_89 [2] : vector<4x16x16xf32> to vector<4x16xf32>
    %377 = vector.shape_cast %376 : vector<4x16xf32> to vector<4x16x1xf32>
    %378 = vector.broadcast %377 : vector<4x16x1xf32> to vector<4x16x16xf32>
    %379 = arith.subf %375, %378 : vector<4x16x16xf32>
    %380 = math.exp %379 : vector<4x16x16xf32>
    %cst_90 = arith.constant dense<0.000000e+00> : vector<4x16xf32>
    %381 = vector.multi_reduction <add>, %380, %cst_90 [2] : vector<4x16x16xf32> to vector<4x16xf32>
    %382 = vector.shape_cast %381 : vector<4x16xf32> to vector<4x16x1xf32>
    %383 = tpu.reciprocal %382 {approx = true} : vector<4x16x1xf32> -> vector<4x16x1xf32>
    %384 = vector.broadcast %383 : vector<4x16x1xf32> to vector<4x16x16xf32>
    %385 = arith.mulf %380, %384 : vector<4x16x16xf32>
    %386 = arith.truncf %385 : vector<4x16x16xf32> to vector<4x16x16xbf16>
    "tpu.trace_start"() <{level = 10 : i32, message = "hqk,hkd->hqd"}> : () -> ()
    %cst_91 = arith.constant dense<0.000000e+00> : vector<4x16x16xf32>
    %387 = tpu.matmul %386, %373, %cst_91 {dimension_numbers = #tpu.dot_dimension_numbers<[2], [1], [1], [2], [0, 0, 0, 1, 1, 2], [0], [0]>} : vector<4x16x16xbf16>, vector<4x16x16xbf16>, vector<4x16x16xf32> -> vector<4x16x16xf32>
    "tpu.trace_stop"() : () -> ()
    %388 = vector.extract_strided_slice %387 {offsets = [0, 0, 0], sizes = [1, 16, 16], strides = [1, 1, 1]} : vector<4x16x16xf32> to vector<1x16x16xf32>
    %389 = vector.shape_cast %388 : vector<1x16x16xf32> to vector<16x16xf32>
    %390 = vector.extract_strided_slice %387 {offsets = [1, 0, 0], sizes = [1, 16, 16], strides = [1, 1, 1]} : vector<4x16x16xf32> to vector<1x16x16xf32>
    %391 = vector.shape_cast %390 : vector<1x16x16xf32> to vector<16x16xf32>
    %392 = vector.extract_strided_slice %387 {offsets = [2, 0, 0], sizes = [1, 16, 16], strides = [1, 1, 1]} : vector<4x16x16xf32> to vector<1x16x16xf32>
    %393 = vector.shape_cast %392 : vector<1x16x16xf32> to vector<16x16xf32>
    %394 = vector.extract_strided_slice %387 {offsets = [3, 0, 0], sizes = [1, 16, 16], strides = [1, 1, 1]} : vector<4x16x16xf32> to vector<1x16x16xf32>
    %395 = vector.shape_cast %394 : vector<1x16x16xf32> to vector<16x16xf32>
    %396 = tpu.concatenate %389, %391, %393, %395 in 1 : vector<16x16xf32>, vector<16x16xf32>, vector<16x16xf32>, vector<16x16xf32> -> vector<16x64xf32>
    %397 = arith.truncf %396 : vector<16x64xf32> to vector<16x64xbf16>
    %cst_92 = arith.constant dense<0.000000e+00> : vector<16x64xf32>
    %398 = tpu.matmul %397, %342, %cst_92 {dimension_numbers = #tpu.dot_dimension_numbers<[1], [0], [0], [1], [0, 0, 1, 1], [], []>} : vector<16x64xbf16>, vector<64x64xbf16>, vector<16x64xf32> -> vector<16x64xf32>
    %399 = vector.broadcast %343 : vector<1x64xf32> to vector<16x64xf32>
    %400 = arith.addf %398, %399 : vector<16x64xf32>
    %401 = arith.addf %314, %400 : vector<16x64xf32>
    %cst_93 = arith.constant dense<0.000000e+00> : vector<16xf32>
    %402 = vector.multi_reduction <add>, %401, %cst_93 [1] : vector<16x64xf32> to vector<16xf32>
    %403 = vector.shape_cast %402 : vector<16xf32> to vector<16x1xf32>
    %cst_94 = arith.constant 6.400000e+01 : f32
    %404 = vector.broadcast %cst_94 : f32 to vector<16x1xf32>
    %405 = arith.divf %403, %404 : vector<16x1xf32>
    %406 = vector.broadcast %405 : vector<16x1xf32> to vector<16x64xf32>
    %407 = arith.subf %401, %406 : vector<16x64xf32>
    %408 = arith.mulf %407, %407 : vector<16x64xf32>
    %cst_95 = arith.constant dense<0.000000e+00> : vector<16xf32>
    %409 = vector.multi_reduction <add>, %408, %cst_95 [1] : vector<16x64xf32> to vector<16xf32>
    %410 = vector.shape_cast %409 : vector<16xf32> to vector<16x1xf32>
    %cst_96 = arith.constant 0.0158730168 : f32
    %411 = vector.broadcast %cst_96 : f32 to vector<16x1xf32>
    %412 = arith.mulf %410, %411 : vector<16x1xf32>
    %413 = math.sqrt %412 : vector<16x1xf32>
    %cst_97 = arith.constant 1.000000e+04 : f32
    %414 = vector.broadcast %cst_97 : f32 to vector<16x1xf32>
    %415 = arith.addf %413, %414 : vector<16x1xf32>
    %416 = tpu.reciprocal %415 {approx = true} : vector<16x1xf32> -> vector<16x1xf32>
    %417 = vector.broadcast %416 : vector<16x1xf32> to vector<16x64xf32>
    %418 = arith.mulf %407, %417 : vector<16x64xf32>
    %cst_98 = arith.constant 1.000000e+00 : f32
    %419 = vector.broadcast %cst_98 : f32 to vector<16x64xf32>
    %420 = arith.addf %418, %419 : vector<16x64xf32>
    %421 = arith.truncf %420 : vector<16x64xf32> to vector<16x64xbf16>
    %c0_99 = arith.constant 0 : index
    %c896_100 = arith.constant 896 : index
    %422 = vector.load %arg2[%c0_99, %c896_100] : memref<64x1024xbf16, #tpu.memory_space<vmem>>, vector<64x128xbf16>
    %cst_101 = arith.constant dense<0.000000e+00> : vector<16x128xf32>
    %423 = tpu.matmul %421, %422, %cst_101 {dimension_numbers = #tpu.dot_dimension_numbers<[1], [0], [0], [1], [0, 0, 1, 1], [], []>} : vector<16x64xbf16>, vector<64x128xbf16>, vector<16x128xf32> -> vector<16x128xf32>
    %c0_102 = arith.constant 0 : index
    %c960 = arith.constant 960 : index
    %424 = vector.load %arg5[%c0_102, %c960] : memref<1x1408xf32, #tpu.memory_space<vmem>>, vector<1x128xf32>
    %425 = vector.broadcast %424 : vector<1x128xf32> to vector<16x128xf32>
    %426 = arith.addf %423, %425 : vector<16x128xf32>
    %cst_103 = arith.constant 0.000000e+00 : f32
    %427 = vector.broadcast %cst_103 : f32 to vector<16x128xf32>
    %428 = arith.maximumf %426, %427 : vector<16x128xf32>
    %429 = arith.truncf %428 : vector<16x128xf32> to vector<16x128xbf16>
    %c0_104 = arith.constant 0 : index
    %c64 = arith.constant 64 : index
    %430 = vector.load %arg4[%c0_104, %c64] : memref<128x128xbf16, #tpu.memory_space<vmem>>, vector<128x64xbf16>
    %cst_105 = arith.constant dense<0.000000e+00> : vector<16x64xf32>
    %431 = tpu.matmul %429, %430, %cst_105 {dimension_numbers = #tpu.dot_dimension_numbers<[1], [0], [0], [1], [0, 0, 1, 1], [], []>} : vector<16x128xbf16>, vector<128x64xbf16>, vector<16x64xf32> -> vector<16x64xf32>
    %432 = arith.addf %401, %431 : vector<16x64xf32>
    %c0_106 = arith.constant 0 : index
    %c1088 = arith.constant 1088 : index
    %433 = vector.load %arg5[%c0_106, %c1088] : memref<1x1408xf32, #tpu.memory_space<vmem>>, vector<1x64xf32>
    %434 = vector.broadcast %433 : vector<1x64xf32> to vector<16x64xf32>
    %435 = arith.addf %432, %434 : vector<16x64xf32>
    %cst_107 = arith.constant dense<0.000000e+00> : vector<16xf32>
    %436 = vector.multi_reduction <add>, %435, %cst_107 [1] : vector<16x64xf32> to vector<16xf32>
    %437 = vector.shape_cast %436 : vector<16xf32> to vector<16x1xf32>
    %cst_108 = arith.constant 6.400000e+01 : f32
    %438 = vector.broadcast %cst_108 : f32 to vector<16x1xf32>
    %439 = arith.divf %437, %438 : vector<16x1xf32>
    %440 = vector.broadcast %439 : vector<16x1xf32> to vector<16x64xf32>
    %441 = arith.subf %435, %440 : vector<16x64xf32>
    %442 = arith.mulf %441, %441 : vector<16x64xf32>
    %cst_109 = arith.constant dense<0.000000e+00> : vector<16xf32>
    %443 = vector.multi_reduction <add>, %442, %cst_109 [1] : vector<16x64xf32> to vector<16xf32>
    %444 = vector.shape_cast %443 : vector<16xf32> to vector<16x1xf32>
    %cst_110 = arith.constant 0.0158730168 : f32
    %445 = vector.broadcast %cst_110 : f32 to vector<16x1xf32>
    %446 = arith.mulf %444, %445 : vector<16x1xf32>
    %447 = math.sqrt %446 : vector<16x1xf32>
    %cst_111 = arith.constant 1.000000e+04 : f32
    %448 = vector.broadcast %cst_111 : f32 to vector<16x1xf32>
    %449 = arith.addf %447, %448 : vector<16x1xf32>
    %450 = tpu.reciprocal %449 {approx = true} : vector<16x1xf32> -> vector<16x1xf32>
    %451 = vector.broadcast %450 : vector<16x1xf32> to vector<16x64xf32>
    %452 = arith.mulf %441, %451 : vector<16x64xf32>
    %cst_112 = arith.constant 1.000000e+00 : f32
    %453 = vector.broadcast %cst_112 : f32 to vector<16x64xf32>
    %454 = arith.addf %452, %453 : vector<16x64xf32>
    %455 = vector.extract_strided_slice %454 {offsets = [0, 0], sizes = [8, 64], strides = [1, 1]} : vector<16x64xf32> to vector<8x64xf32>
    %456 = vector.extract_strided_slice %454 {offsets = [8, 0], sizes = [8, 64], strides = [1, 1]} : vector<16x64xf32> to vector<8x64xf32>
    %457 = tpu.concatenate %455, %456 in 1 : vector<8x64xf32>, vector<8x64xf32> -> vector<8x128xf32>
    %c0_113 = arith.constant 0 : index
    %c0_114 = arith.constant 0 : index
    %458 = vector.load %arg6[%c0_113, %c0_114] : memref<8x128xf32, #tpu.memory_space<vmem>>, vector<8x128xf32>
    tpu.vector_store %arg6[%c0_113, %c0_114], %457 {strides = array<i32>} : memref<8x128xf32, #tpu.memory_space<vmem>>, vector<8x128xf32>,
    return
  }
}

</mosaic_0001>

<llo_original>
// kernel: tpu_custom_call.1
$region0: #{tpu_custom_call.1}
  #allocation0 [shape = 'u32[]', space=smem, size = 0x4, offset = 0x4, fixed_abs, tag = 'smem constant byte address 0x4 - core index']
  #allocation1 [shape = 'u32[144,128]{1,0:T(1,128)}', space=vmem, size = 0x12000, scoped, tag = 'internal scratch']
  %s0 = inlined_call_operand.vmem [shape: f32[32,64], index: 0, kind: input, shape index: {}]
  %s1 = inlined_call_operand.vmem [shape: f32[32,16], index: 1, kind: input, shape index: {}]
  %s2 = inlined_call_operand.hbm [shape: bf16[64,1024], index: 2, kind: input, shape index: {}]
  %s3 = inlined_call_operand.hbm [shape: bf16[64,256], index: 3, kind: input, shape index: {}]
  %s4 = inlined_call_operand.hbm [shape: bf16[128,128], index: 4, kind: input, shape index: {}]
  %s5 = inlined_call_operand.vmem [shape: f32[1,1408], index: 5, kind: input, shape index: {}]
  %s6 = inlined_call_operand.hbm [shape: f32[8,128], index: 6, kind: output, shape index: {}]
  %s7 = sld [smem:[#allocation0]]
  $region46: #{tpu_custom_call.1} parent=0
    _
  %s9 = ssub.s32 1, %s7
  %s10 = scalar_select 0, %s9, %s7
  $region1: #{tpu_custom_call.1} parent=0
    #allocation2 [shape = 'u8[131072]{0}', space=vmem, size = 0x20000, scoped, tag = 'input window, operand 2, single buffered']
    #allocation3 [shape = 's32[1]{0}', space=sflag, size = 0x4, scoped, tag = 'scoped memory for tpu_custom_call.1']
    #allocation4 [shape = 's32[1]{0}', space=sflag, size = 0x4, scoped, tag = 'scoped memory for tpu_custom_call.1']
    #allocation5 [shape = 'u8[32768]{0}', space=vmem, size = 0x8000, scoped, tag = 'input window, operand 3, single buffered']
    #allocation6 [shape = 's32[1]{0}', space=sflag, size = 0x4, scoped, tag = 'scoped memory for tpu_custom_call.1']
    #allocation7 [shape = 'u8[32768]{0}', space=vmem, size = 0x8000, scoped, tag = 'input window, operand 4, single buffered']
    #allocation8 [shape = 'u8[4096]{0}', space=vmem, size = 0x1000, scoped, tag = 'output window, operand 0, single buffered']
    %11 = vsyncpa [#allocation3], 0
    %12 = vsyncpa [#allocation6], 0
    %13 = vsyncpa [#allocation4], 0
    // Predicated region
    $region2: #{tpu_custom_call.1} parent=1 // pred_check
      _
    $region3: #{tpu_custom_call.1} parent=1 // pred_check_branch
      %15 = sbr.rel (0) target = $region5
    $region4: #{tpu_custom_call.1} parent=1 // pred_region
      _
    $region5: #{tpu_custom_call.1} parent=1 // pred_fallthru
      _
    // Predicated region
    $region6: #{tpu_custom_call.1} parent=1 // pred_check
      _
    $region7: #{tpu_custom_call.1} parent=1 // pred_check_branch
      %17 = sbr.rel (0) target = $region9
    $region8: #{tpu_custom_call.1} parent=1 // pred_region
      _
    $region9: #{tpu_custom_call.1} parent=1 // pred_fallthru
      _
    // Predicated region
    $region10: #{tpu_custom_call.1} parent=1 // pred_check
      _
    $region11: #{tpu_custom_call.1} parent=1 // pred_check_branch
      %19 = sbr.rel (0) target = $region13
    $region12: #{tpu_custom_call.1} parent=1 // pred_region
      %s21 = ssub.s32 4096, 4096
      %22 = vsyncadd [#allocation3], %s21
      %s23 = sshll.u32 [#allocation2], 4
      %s24 = int_to_ptr.vmem [resolvable:$true] %s23
      %29 = dma.hbm_to_vmem [thread:$0]  %s2, 4096, %s24, [#allocation3], 512, 512, 32
    $region13: #{tpu_custom_call.1} parent=1 // pred_fallthru
      _
    // Predicated region
    $region14: #{tpu_custom_call.1} parent=1 // pred_check
      _
    $region15: #{tpu_custom_call.1} parent=1 // pred_check_branch
      %31 = sbr.rel (0) target = $region17
    $region16: #{tpu_custom_call.1} parent=1 // pred_region
      %s33 = ssub.s32 1024, 1024
      %34 = vsyncadd [#allocation6], %s33
      %s35 = sshll.u32 [#allocation5], 4
      %s36 = int_to_ptr.vmem [resolvable:$true] %s35
      %41 = dma.hbm_to_vmem [thread:$0]  %s3, 1024, %s36, [#allocation6], 128, 128, 8
    $region17: #{tpu_custom_call.1} parent=1 // pred_fallthru
      _
    // Predicated region
    $region18: #{tpu_custom_call.1} parent=1 // pred_check
      _
    $region19: #{tpu_custom_call.1} parent=1 // pred_check_branch
      %43 = sbr.rel (0) target = $region21
    $region20: #{tpu_custom_call.1} parent=1 // pred_region
      %s45 = ssub.s32 1024, 1024
      %46 = vsyncadd [#allocation6], %s45
      %s47 = sshll.u32 [#allocation7], 4
      %s48 = int_to_ptr.vmem [resolvable:$true] %s47
      %53 = dma.hbm_to_vmem [thread:$0]  %s4, 1024, %s48, [#allocation6], 64, 64, 4
    $region21: #{tpu_custom_call.1} parent=1 // pred_fallthru
      _
    // Predicated region
    $region22: #{tpu_custom_call.1} parent=1 // pred_check
      _
    $region23: #{tpu_custom_call.1} parent=1 // pred_check_branch
      %55 = sbr.rel (0) target = $region25
    $region24: #{tpu_custom_call.1} parent=1 // pred_region
      _
    $region25: #{tpu_custom_call.1} parent=1 // pred_fallthru
      _
    // Predicated region
    $region26: #{tpu_custom_call.1} parent=1 // pred_check
      _
    $region27: #{tpu_custom_call.1} parent=1 // pred_check_branch
      %57 = sbr.rel (0) target = $region29
    $region28: #{tpu_custom_call.1} parent=1 // pred_region
      %58 = dma.done [#allocation3], 4096
    $region29: #{tpu_custom_call.1} parent=1 // pred_fallthru
      _
    // Predicated region
    $region30: #{tpu_custom_call.1} parent=1 // pred_check
      _
    $region31: #{tpu_custom_call.1} parent=1 // pred_check_branch
      %60 = sbr.rel (0) target = $region33
    $region32: #{tpu_custom_call.1} parent=1 // pred_region
      %61 = dma.done [#allocation6], 1024
    $region33: #{tpu_custom_call.1} parent=1 // pred_fallthru
      _
    // Predicated region
    $region34: #{tpu_custom_call.1} parent=1 // pred_check
      _
    $region35: #{tpu_custom_call.1} parent=1 // pred_check_branch
      %63 = sbr.rel (0) target = $region37
    $region36: #{tpu_custom_call.1} parent=1 // pred_region
      %64 = dma.done [#allocation6], 1024
    $region37: #{tpu_custom_call.1} parent=1 // pred_fallthru
      _
    %v66 = vld [vmem:[%s0] sm:$0xff]
    %v67 = vld [vmem:[%s0 + $0x8] sm:$0xff]
    %v68 = vld [vmem:[%s0 + $0x10] sm:$0xff]
    %v69 = vld [vmem:[%s0 + $0x18] sm:$0xff]
    %v70 = vld [vmem:[%s1] sm:$0xff]
    %v71 = vld [vmem:[%s1 + $0x8] sm:$0xff]
    %v72 = vld [vmem:[%s1 + $0x10] sm:$0xff]
    %v73 = vld [vmem:[%s1 + $0x18] sm:$0xff]
    %v74 = vpack.c.bf16 %v69, %v68
    %v75 = vld [vmem:[#allocation5] sm:$0xff]
    %v76 = vld [vmem:[#allocation5 + $0x8] sm:$0xff]
    %v77 = vld [vmem:[#allocation5 + $0x10] sm:$0xff]
    %v78 = vld [vmem:[#allocation5 + $0x18] sm:$0xff]
    %v79 = vld [vmem:[#allocation5 + $0x20] sm:$0xff]
    %v80 = vld [vmem:[#allocation5 + $0x28] sm:$0xff]
    %v81 = vld [vmem:[#allocation5 + $0x30] sm:$0xff]
    %v82 = vld [vmem:[#allocation5 + $0x38] sm:$0xff]
    %v83 = vld [vmem:[%s5 + $0x9] sm:$0x3]
    %v85 = vlaneseq
    %v86 = vshrl.u32 %v85, 7
    %v87 = vsub.s32 0, %v86
    %v88 = vrot.slane %v83, %v87
    %v89 = vlaneseq
    %v90 = vshrl.u32 %v89, 7
    %v91 = vsub.s32 1, %v90
    %v92 = vrot.slane %v83, %v91
    %v103 = vunpack.c.l.b16 %v75
    %v104 = vunpack.c.h.b16 %v75
    %v105 = vunpack.c.l.b16 %v76
    %v106 = vunpack.c.h.b16 %v76
    %v107 = vunpack.c.l.b16 %v77
    %v108 = vunpack.c.h.b16 %v77
    %v109 = vunpack.c.l.b16 %v78
    %v110 = vunpack.c.h.b16 %v78
    %v111 = vunpack.c.l.b16 %v79
    %v112 = vunpack.c.h.b16 %v79
    %v113 = vunpack.c.l.b16 %v80
    %v114 = vunpack.c.h.b16 %v80
    %v115 = vunpack.c.l.b16 %v81
    %v116 = vunpack.c.h.b16 %v81
    %v117 = vunpack.c.l.b16 %v82
    %v118 = vunpack.c.h.b16 %v82
    %v119 = vpack.c.b16 %v105, %v103
    %v120 = vpack.c.b16 %v106, %v104
    %v121 = vpack.c.b16 %v109, %v107
    %v122 = vpack.c.b16 %v110, %v108
    %v123 = vpack.c.b16 %v113, %v111
    %v124 = vpack.c.b16 %v114, %v112
    %v125 = vpack.c.b16 %v117, %v115
    %v126 = vpack.c.b16 %v118, %v116
    %vm135 = vcmask 523264
    %v137 = vsel %vm135, %v74, 0
    %139 = vmatprep.subr.bf16.mxu0 %v120
    %140 = vmatpush1.bf16.msra.mxu0 %v119
    %141 = vmatprep.subr.bf16.mxu0 %v122
    %142 = vmatpush1.bf16.msra.mxu0 %v121
    %143 = vmatprep.subr.bf16.mxu0 %v124
    %144 = vmatpush1.bf16.msra.mxu0 %v123
    %145 = vmatprep.subr.bf16.mxu0 %v126
    %146 = vmatpush1.bf16.msra.mxu0 %v125
    %147 = vmatprep.subr.bf16.mxu0 0
    %148 = vmatpush1.bf16.msra.mxu0 0
    %149 = vmatprep.subr.bf16.mxu0 0
    %150 = vmatpush1.bf16.msra.mxu0 0
    %151 = vmatprep.subr.bf16.mxu0 0
    %152 = vmatpush1.bf16.msra.mxu0 0
    %153 = vmatprep.subr.bf16.mxu0 0
    %154 = vmatpush1.bf16.msra.mxu0 0
    %155 = vmatprep.subr.bf16.mxu0 0
    %156 = vmatpush1.bf16.msra.mxu0 0
    %157 = vmatprep.subr.bf16.mxu0 0
    %158 = vmatpush1.bf16.msra.mxu0 0
    %159 = vmatprep.subr.bf16.mxu0 0
    %160 = vmatpush1.bf16.msra.mxu0 0
    %161 = vmatprep.subr.bf16.mxu0 0
    %162 = vmatpush1.bf16.msra.mxu0 0
    %163 = vmatprep.subr.bf16.mxu0 0
    %164 = vmatpush1.bf16.msra.mxu0 0
    %165 = vmatprep.subr.bf16.mxu0 0
    %166 = vmatpush1.bf16.msra.mxu0 0
    %167 = vmatprep.subr.bf16.mxu0 0
    %168 = vmatpush1.bf16.msra.mxu0 0
    %169 = vmatprep.subr.bf16.mxu0 0
    %170 = vmatpush1.bf16.msra.mxu0 0
    %171 = vmatprep.mubr.bf16.mxu0 0
    %172 = vmatmul.mubr.bf16.gmra.mrb[0].mxu0 %v137
    %v173 = vpop.f32.mrb[0].mxu0
    %v174 = vadd.f32 %v88, %v173
    %v175 = vpop.f32.mrb[0].mxu0
    %v176 = vadd.f32 %v92, %v175
    %v177 = vpop.f32.mrb[0].mxu0
    %v178 = vadd.f32 %v88, %v177
    %v179 = vpop.f32.mrb[0].mxu0
    %v180 = vadd.f32 %v92, %v179
    %181 = vdwg.mxu0
    %v182 = vsel %vm135, %v66, 0.0
    %183 = vadd.xlane.f32.xlu0 %v182
    %v184 = vpop.xlane.xlu0 %183
    %v185 = vsel %vm135, %v67, 0.0
    %186 = vadd.xlane.f32.xlu0 %v185
    %v187 = vpop.xlane.xlu0 %186
    %v188 = vrcp.pop 64.0
    %v189 = vmul.f32 %v184, %v188
    %v190 = vmul.f32 %v187, %v188
    %v191 = vsub.f32 %v66, %v189
    %v192 = vsub.f32 %v67, %v190
    %v193 = vmul.f32 %v191, %v191
    %v194 = vmul.f32 %v192, %v192
    %v195 = vsel %vm135, %v193, 0.0
    %196 = vadd.xlane.f32.xlu0 %v195
    %v197 = vpop.xlane.xlu0 %196
    %v198 = vsel %vm135, %v194, 0.0
    %199 = vadd.xlane.f32.xlu0 %v198
    %v200 = vpop.xlane.xlu0 %199
    %v201 = vmul.f32 %v197, 0.015873017
    %v202 = vmul.f32 %v200, 0.015873017
    %v203 = vrsqrt.pop %v201
    %v204 = vmul.f32 %v201, %v203
    %vm205 = vcmp.eq.f32.partialorder %v201, inf
    %v206 = vsel %vm205, %v201, %v204
    %vm207 = vcmp.eq.f32.partialorder %v201, 0.0
    %v208 = vand.u32 %v201, 2147483648
    %v209 = vsel %vm207, %v208, %v206
    %v210 = vrsqrt.pop %v202
    %v211 = vmul.f32 %v202, %v210
    %vm212 = vcmp.eq.f32.partialorder %v202, inf
    %v213 = vsel %vm212, %v202, %v211
    %vm214 = vcmp.eq.f32.partialorder %v202, 0.0
    %v215 = vand.u32 %v202, 2147483648
    %v216 = vsel %vm214, %v215, %v213
    %v217 = vadd.f32 %v209, 10000.0
    %v218 = vadd.f32 %v216, 10000.0
    %v219 = vrcp.pop %v217
    %v220 = vrcp.pop %v218
    %v221 = vmul.f32 %v191, %v219
    %v222 = vmul.f32 %v192, %v220
    %v223 = vadd.f32 %v221, 1.0
    %v224 = vadd.f32 %v222, 1.0
    %v225 = vpack.c.bf16 %v224, %v223
    %v226 = vld [vmem:[#allocation2] sm:$0xff]
    %v227 = vld [vmem:[#allocation2 + $0x20] sm:$0xff]
    %v228 = vld [vmem:[#allocation2 + $0x40] sm:$0xff]
    %v229 = vld [vmem:[#allocation2 + $0x60] sm:$0xff]
    %v230 = vld [vmem:[#allocation2 + $0x80] sm:$0xff]
    %v231 = vld [vmem:[#allocation2 + $0xa0] sm:$0xff]
    %v232 = vld [vmem:[#allocation2 + $0xc0] sm:$0xff]
    %v233 = vld [vmem:[#allocation2 + $0xe0] sm:$0xff]
    %v234 = vld [vmem:[%s5] sm:$0x3]
    %v236 = vlaneseq
    %v237 = vshrl.u32 %v236, 7
    %v238 = vsub.s32 0, %v237
    %v239 = vrot.slane %v234, %v238
    %v240 = vlaneseq
    %v241 = vshrl.u32 %v240, 7
    %v242 = vsub.s32 1, %v241
    %v243 = vrot.slane %v234, %v242
    %v254 = vunpack.c.l.b16 %v226
    %v255 = vunpack.c.h.b16 %v226
    %v256 = vunpack.c.l.b16 %v227
    %v257 = vunpack.c.h.b16 %v227
    %v258 = vunpack.c.l.b16 %v228
    %v259 = vunpack.c.h.b16 %v228
    %v260 = vunpack.c.l.b16 %v229
    %v261 = vunpack.c.h.b16 %v229
    %v262 = vunpack.c.l.b16 %v230
    %v263 = vunpack.c.h.b16 %v230
    %v264 = vunpack.c.l.b16 %v231
    %v265 = vunpack.c.h.b16 %v231
    %v266 = vunpack.c.l.b16 %v232
    %v267 = vunpack.c.h.b16 %v232
    %v268 = vunpack.c.l.b16 %v233
    %v269 = vunpack.c.h.b16 %v233
    %v270 = vpack.c.b16 %v256, %v254
    %v271 = vpack.c.b16 %v257, %v255
    %v272 = vpack.c.b16 %v260, %v258
    %v273 = vpack.c.b16 %v261, %v259
    %v274 = vpack.c.b16 %v264, %v262
    %v275 = vpack.c.b16 %v265, %v263
    %v276 = vpack.c.b16 %v268, %v266
    %v277 = vpack.c.b16 %v269, %v267
    %v287 = vsel %vm135, %v225, 0
    %289 = vmatprep.subr.bf16.mxu0 %v271
    %290 = vmatpush1.bf16.msra.mxu0 %v270
    %291 = vmatprep.subr.bf16.mxu0 %v273
    %292 = vmatpush1.bf16.msra.mxu0 %v272
    %293 = vmatprep.subr.bf16.mxu0 %v275
    %294 = vmatpush1.bf16.msra.mxu0 %v274
    %295 = vmatprep.subr.bf16.mxu0 %v277
    %296 = vmatpush1.bf16.msra.mxu0 %v276
    %297 = vmatprep.subr.bf16.mxu0 0
    %298 = vmatpush1.bf16.msra.mxu0 0
    %299 = vmatprep.subr.bf16.mxu0 0
    %300 = vmatpush1.bf16.msra.mxu0 0
    %301 = vmatprep.subr.bf16.mxu0 0
    %302 = vmatpush1.bf16.msra.mxu0 0
    %303 = vmatprep.subr.bf16.mxu0 0
    %304 = vmatpush1.bf16.msra.mxu0 0
    %305 = vmatprep.subr.bf16.mxu0 0
    %306 = vmatpush1.bf16.msra.mxu0 0
    %307 = vmatprep.subr.bf16.mxu0 0
    %308 = vmatpush1.bf16.msra.mxu0 0
    %309 = vmatprep.subr.bf16.mxu0 0
    %310 = vmatpush1.bf16.msra.mxu0 0
    %311 = vmatprep.subr.bf16.mxu0 0
    %312 = vmatpush1.bf16.msra.mxu0 0
    %313 = vmatprep.subr.bf16.mxu0 0
    %314 = vmatpush1.bf16.msra.mxu0 0
    %315 = vmatprep.subr.bf16.mxu0 0
    %316 = vmatpush1.bf16.msra.mxu0 0
    %317 = vmatprep.subr.bf16.mxu0 0
    %318 = vmatpush1.bf16.msra.mxu0 0
    %319 = vmatprep.subr.bf16.mxu0 0
    %320 = vmatpush1.bf16.msra.mxu0 0
    %321 = vmatprep.mubr.bf16.mxu0 0
    %322 = vmatmul.mubr.bf16.gmra.mrb[0].mxu0 %v287
    %v323 = vpop.f32.mrb[0].mxu0
    %v324 = vadd.f32 %v239, %v323
    %v325 = vpop.f32.mrb[0].mxu0
    %v326 = vadd.f32 %v243, %v325
    %v327 = vpop.f32.mrb[0].mxu0
    %v328 = vadd.f32 %v239, %v327
    %v329 = vpop.f32.mrb[0].mxu0
    %v330 = vadd.f32 %v243, %v329
    %331 = vdwg.mxu0
    %v332 = vld [vmem:[#allocation2 + $0x4] sm:$0xf]
    %v333 = vld [vmem:[#allocation2 + $0x24] sm:$0xf]
    %v334 = vld [vmem:[#allocation2 + $0x44] sm:$0xf]
    %v335 = vld [vmem:[#allocation2 + $0x64] sm:$0xf]
    %v336 = vld [vmem:[#allocation2 + $0x84] sm:$0xf]
    %v337 = vld [vmem:[#allocation2 + $0xa4] sm:$0xf]
    %v338 = vld [vmem:[#allocation2 + $0xc4] sm:$0xf]
    %v339 = vld [vmem:[#allocation2 + $0xe4] sm:$0xf]
    %v340 = vld [vmem:[%s5 + $0x1] sm:$0x1]
    %343 = vrot.lane.b32.xlu0 %v324, 112
    %v344 = vpop.permute.xlu0 %343
    %345 = vrot.lane.b32.xlu0 %v328, 112
    %v346 = vpop.permute.xlu0 %345
    %349 = vrot.lane.b32.xlu0 %v324, 96
    %v350 = vpop.permute.xlu0 %349
    %351 = vrot.lane.b32.xlu0 %v328, 96
    %v352 = vpop.permute.xlu0 %351
    %355 = vrot.lane.b32.xlu0 %v324, 80
    %v356 = vpop.permute.xlu0 %355
    %357 = vrot.lane.b32.xlu0 %v328, 80
    %v358 = vpop.permute.xlu0 %357
    %v361 = vpack.c.bf16 %v328, %v324
    %v362 = vpack.c.bf16 %v346, %v344
    %v363 = vpack.c.bf16 %v352, %v350
    %v364 = vpack.c.bf16 %v358, %v356
    %367 = vrot.lane.b32.xlu0 %v326, 112
    %v368 = vpop.permute.xlu0 %367
    %369 = vrot.lane.b32.xlu0 %v330, 112
    %v370 = vpop.permute.xlu0 %369
    %373 = vrot.lane.b32.xlu0 %v326, 96
    %v374 = vpop.permute.xlu0 %373
    %375 = vrot.lane.b32.xlu0 %v330, 96
    %v376 = vpop.permute.xlu0 %375
    %379 = vrot.lane.b32.xlu0 %v326, 80
    %v380 = vpop.permute.xlu0 %379
    %381 = vrot.lane.b32.xlu0 %v330, 80
    %v382 = vpop.permute.xlu0 %381
    %v385 = vpack.c.bf16 %v330, %v326
    %v386 = vpack.c.bf16 %v370, %v368
    %v387 = vpack.c.bf16 %v376, %v374
    %v388 = vpack.c.bf16 %v382, %v380
    %390 = vrot.lane.b32.xlu0 %v361, 64
    %v391 = vpop.permute.xlu0 %390
    %vm392 = vcmask 130048
    %v394 = vsel %vm392, %v361, 0
    %v397 = vsel %vm392, %v391, 0
    %399 = vmatprep.subr.bf16.mxu0 0
    %400 = vmatpush1.bf16.xpose.msra.mxu0 %v397
    %401 = vmatprep.subr.bf16.mxu0 0
    %402 = vmatpush1.bf16.xpose.msra.mxu0 0
    %403 = vmatprep.subr.bf16.mxu0 0
    %404 = vmatpush1.bf16.xpose.msra.mxu0 0
    %405 = vmatprep.subr.bf16.mxu0 0
    %406 = vmatpush1.bf16.xpose.msra.mxu0 0
    %407 = vmatprep.subr.bf16.mxu0 0
    %408 = vmatpush1.bf16.xpose.msra.mxu0 0
    %409 = vmatprep.subr.bf16.mxu0 0
    %410 = vmatpush1.bf16.xpose.msra.mxu0 0
    %411 = vmatprep.subr.bf16.mxu0 0
    %412 = vmatpush1.bf16.xpose.msra.mxu0 0
    %413 = vmatprep.subr.bf16.mxu0 0
    %414 = vmatpush1.bf16.xpose.msra.mxu0 0
    %415 = vmatprep.subr.bf16.mxu0 0
    %416 = vmatpush1.bf16.xpose.msra.mxu0 0
    %417 = vmatprep.subr.bf16.mxu0 0
    %418 = vmatpush1.bf16.xpose.msra.mxu0 0
    %419 = vmatprep.subr.bf16.mxu0 0
    %420 = vmatpush1.bf16.xpose.msra.mxu0 0
    %421 = vmatprep.subr.bf16.mxu0 0
    %422 = vmatpush1.bf16.xpose.msra.mxu0 0
    %423 = vmatprep.subr.bf16.mxu0 0
    %424 = vmatpush1.bf16.xpose.msra.mxu0 0
    %425 = vmatprep.subr.bf16.mxu0 0
    %426 = vmatpush1.bf16.xpose.msra.mxu0 0
    %427 = vmatprep.subr.bf16.mxu0 0
    %428 = vmatpush1.bf16.xpose.msra.mxu0 0
    %429 = vmatprep.subr.bf16.mxu0 0
    %430 = vmatpush1.bf16.xpose.msra.mxu0 0
    %431 = vmatprep.mubr.bf16.mxu0 0
    %432 = vmatmul.mubr.bf16.gmra.mrb[0].mxu0 %v394
    %v433 = vpop.f32.mrb[0].mxu0
    %v434 = vadd.f32 %v70, %v433
    %v435 = vpop.f32.mrb[0].mxu0
    %v436 = vpop.f32.mrb[0].mxu0
    %v437 = vadd.f32 %v71, %v436
    %v438 = vpop.f32.mrb[0].mxu0
    %439 = vdwg.mxu0
    %441 = vrot.lane.b32.xlu0 %v362, 64
    %v442 = vpop.permute.xlu0 %441
    %v444 = vsel %vm392, %v362, 0
    %v447 = vsel %vm392, %v442, 0
    %449 = vmatprep.subr.bf16.mxu0 0
    %450 = vmatpush1.bf16.xpose.msra.mxu0 %v447
    %451 = vmatprep.subr.bf16.mxu0 0
    %452 = vmatpush1.bf16.xpose.msra.mxu0 0
    %453 = vmatprep.subr.bf16.mxu0 0
    %454 = vmatpush1.bf16.xpose.msra.mxu0 0
    %455 = vmatprep.subr.bf16.mxu0 0
    %456 = vmatpush1.bf16.xpose.msra.mxu0 0
    %457 = vmatprep.subr.bf16.mxu0 0
    %458 = vmatpush1.bf16.xpose.msra.mxu0 0
    %459 = vmatprep.subr.bf16.mxu0 0
    %460 = vmatpush1.bf16.xpose.msra.mxu0 0
    %461 = vmatprep.subr.bf16.mxu0 0
    %462 = vmatpush1.bf16.xpose.msra.mxu0 0
    %463 = vmatprep.subr.bf16.mxu0 0
    %464 = vmatpush1.bf16.xpose.msra.mxu0 0
    %465 = vmatprep.subr.bf16.mxu0 0
    %466 = vmatpush1.bf16.xpose.msra.mxu0 0
    %467 = vmatprep.subr.bf16.mxu0 0
    %468 = vmatpush1.bf16.xpose.msra.mxu0 0
    %469 = vmatprep.subr.bf16.mxu0 0
    %470 = vmatpush1.bf16.xpose.msra.mxu0 0
    %471 = vmatprep.subr.bf16.mxu0 0
    %472 = vmatpush1.bf16.xpose.msra.mxu0 0
    %473 = vmatprep.subr.bf16.mxu0 0
    %474 = vmatpush1.bf16.xpose.msra.mxu0 0
    %475 = vmatprep.subr.bf16.mxu0 0
    %476 = vmatpush1.bf16.xpose.msra.mxu0 0
    %477 = vmatprep.subr.bf16.mxu0 0
    %478 = vmatpush1.bf16.xpose.msra.mxu0 0
    %479 = vmatprep.subr.bf16.mxu0 0
    %480 = vmatpush1.bf16.xpose.msra.mxu0 0
    %481 = vmatprep.mubr.bf16.mxu0 0
    %482 = vmatmul.mubr.bf16.gmra.mrb[0].mxu0 %v444
    %v483 = vpop.f32.mrb[0].mxu0
    %v484 = vadd.f32 %v70, %v483
    %v485 = vpop.f32.mrb[0].mxu0
    %v486 = vpop.f32.mrb[0].mxu0
    %v487 = vadd.f32 %v71, %v486
    %v488 = vpop.f32.mrb[0].mxu0
    %489 = vdwg.mxu0
    %491 = vrot.lane.b32.xlu0 %v363, 64
    %v492 = vpop.permute.xlu0 %491
    %v494 = vsel %vm392, %v363, 0
    %v497 = vsel %vm392, %v492, 0
    %499 = vmatprep.subr.bf16.mxu0 0
    %500 = vmatpush1.bf16.xpose.msra.mxu0 %v497
    %501 = vmatprep.subr.bf16.mxu0 0
    %502 = vmatpush1.bf16.xpose.msra.mxu0 0
    %503 = vmatprep.subr.bf16.mxu0 0
    %504 = vmatpush1.bf16.xpose.msra.mxu0 0
    %505 = vmatprep.subr.bf16.mxu0 0
    %506 = vmatpush1.bf16.xpose.msra.mxu0 0
    %507 = vmatprep.subr.bf16.mxu0 0
    %508 = vmatpush1.bf16.xpose.msra.mxu0 0
    %509 = vmatprep.subr.bf16.mxu0 0
    %510 = vmatpush1.bf16.xpose.msra.mxu0 0
    %511 = vmatprep.subr.bf16.mxu0 0
    %512 = vmatpush1.bf16.xpose.msra.mxu0 0
    %513 = vmatprep.subr.bf16.mxu0 0
    %514 = vmatpush1.bf16.xpose.msra.mxu0 0
    %515 = vmatprep.subr.bf16.mxu0 0
    %516 = vmatpush1.bf16.xpose.msra.mxu0 0
    %517 = vmatprep.subr.bf16.mxu0 0
    %518 = vmatpush1.bf16.xpose.msra.mxu0 0
    %519 = vmatprep.subr.bf16.mxu0 0
    %520 = vmatpush1.bf16.xpose.msra.mxu0 0
    %521 = vmatprep.subr.bf16.mxu0 0
    %522 = vmatpush1.bf16.xpose.msra.mxu0 0
    %523 = vmatprep.subr.bf16.mxu0 0
    %524 = vmatpush1.bf16.xpose.msra.mxu0 0
    %525 = vmatprep.subr.bf16.mxu0 0
    %526 = vmatpush1.bf16.xpose.msra.mxu0 0
    %527 = vmatprep.subr.bf16.mxu0 0
    %528 = vmatpush1.bf16.xpose.msra.mxu0 0
    %529 = vmatprep.subr.bf16.mxu0 0
    %530 = vmatpush1.bf16.xpose.msra.mxu0 0
    %531 = vmatprep.mubr.bf16.mxu0 0
    %532 = vmatmul.mubr.bf16.gmra.mrb[0].mxu0 %v494
    %v533 = vpop.f32.mrb[0].mxu0
    %v534 = vadd.f32 %v70, %v533
    %v535 = vpop.f32.mrb[0].mxu0
    %v536 = vpop.f32.mrb[0].mxu0
    %v537 = vadd.f32 %v71, %v536
    %v538 = vpop.f32.mrb[0].mxu0
    %539 = vdwg.mxu0
    %541 = vrot.lane.b32.xlu0 %v364, 64
    %v542 = vpop.permute.xlu0 %541
    %v544 = vsel %vm392, %v364, 0
    %v547 = vsel %vm392, %v542, 0
    %549 = vmatprep.subr.bf16.mxu0 0
    %550 = vmatpush1.bf16.xpose.msra.mxu0 %v547
    %551 = vmatprep.subr.bf16.mxu0 0
    %552 = vmatpush1.bf16.xpose.msra.mxu0 0
    %553 = vmatprep.subr.bf16.mxu0 0
    %554 = vmatpush1.bf16.xpose.msra.mxu0 0
    %555 = vmatprep.subr.bf16.mxu0 0
    %556 = vmatpush1.bf16.xpose.msra.mxu0 0
    %557 = vmatprep.subr.bf16.mxu0 0
    %558 = vmatpush1.bf16.xpose.msra.mxu0 0
    %559 = vmatprep.subr.bf16.mxu0 0
    %560 = vmatpush1.bf16.xpose.msra.mxu0 0
    %561 = vmatprep.subr.bf16.mxu0 0
    %562 = vmatpush1.bf16.xpose.msra.mxu0 0
    %563 = vmatprep.subr.bf16.mxu0 0
    %564 = vmatpush1.bf16.xpose.msra.mxu0 0
    %565 = vmatprep.subr.bf16.mxu0 0
    %566 = vmatpush1.bf16.xpose.msra.mxu0 0
    %567 = vmatprep.subr.bf16.mxu0 0
    %568 = vmatpush1.bf16.xpose.msra.mxu0 0
    %569 = vmatprep.subr.bf16.mxu0 0
    %570 = vmatpush1.bf16.xpose.msra.mxu0 0
    %571 = vmatprep.subr.bf16.mxu0 0
    %572 = vmatpush1.bf16.xpose.msra.mxu0 0
    %573 = vmatprep.subr.bf16.mxu0 0
    %574 = vmatpush1.bf16.xpose.msra.mxu0 0
    %575 = vmatprep.subr.bf16.mxu0 0
    %576 = vmatpush1.bf16.xpose.msra.mxu0 0
    %577 = vmatprep.subr.bf16.mxu0 0
    %578 = vmatpush1.bf16.xpose.msra.mxu0 0
    %579 = vmatprep.subr.bf16.mxu0 0
    %580 = vmatpush1.bf16.xpose.msra.mxu0 0
    %581 = vmatprep.mubr.bf16.mxu0 0
    %582 = vmatmul.mubr.bf16.gmra.mrb[0].mxu0 %v544
    %v583 = vpop.f32.mrb[0].mxu0
    %v584 = vadd.f32 %v70, %v583
    %v585 = vpop.f32.mrb[0].mxu0
    %v586 = vpop.f32.mrb[0].mxu0
    %v587 = vadd.f32 %v71, %v586
    %v588 = vpop.f32.mrb[0].mxu0
    %589 = vdwg.mxu0
    %v590 = vsel %vm392, %v434, -inf
    %591 = vmax.xlane.f32.xlu0 %v590
    %v592 = vpop.xlane.xlu0 %591
    %v593 = vsel %vm392, %v437, -inf
    %594 = vmax.xlane.f32.xlu0 %v593
    %v595 = vpop.xlane.xlu0 %594
    %v596 = vsel %vm392, %v484, -inf
    %597 = vmax.xlane.f32.xlu0 %v596
    %v598 = vpop.xlane.xlu0 %597
    %v599 = vsel %vm392, %v487, -inf
    %600 = vmax.xlane.f32.xlu0 %v599
    %v601 = vpop.xlane.xlu0 %600
    %v602 = vsel %vm392, %v534, -inf
    %603 = vmax.xlane.f32.xlu0 %v602
    %v604 = vpop.xlane.xlu0 %603
    %v605 = vsel %vm392, %v537, -inf
    %606 = vmax.xlane.f32.xlu0 %v605
    %v607 = vpop.xlane.xlu0 %606
    %v608 = vsel %vm392, %v584, -inf
    %609 = vmax.xlane.f32.xlu0 %v608
    %v610 = vpop.xlane.xlu0 %609
    %v611 = vsel %vm392, %v587, -inf
    %612 = vmax.xlane.f32.xlu0 %v611
    %v613 = vpop.xlane.xlu0 %612
    %v614 = vsub.f32 %v434, %v592
    %v615 = vsub.f32 %v437, %v595
    %v616 = vsub.f32 %v484, %v598
    %v617 = vsub.f32 %v487, %v601
    %v618 = vsub.f32 %v534, %v604
    %v619 = vsub.f32 %v537, %v607
    %v620 = vsub.f32 %v584, %v610
    %v621 = vsub.f32 %v587, %v613
    %v622 = vmul.f32 %v614, 1.442695
    %v623 = vpow.pop %v622
    %v624 = vmul.f32 %v615, 1.442695
    %v625 = vpow.pop %v624
    %v626 = vmul.f32 %v616, 1.442695
    %v627 = vpow.pop %v626
    %v628 = vmul.f32 %v617, 1.442695
    %v629 = vpow.pop %v628
    %v630 = vmul.f32 %v618, 1.442695
    %v631 = vpow.pop %v630
    %v632 = vmul.f32 %v619, 1.442695
    %v633 = vpow.pop %v632
    %v634 = vmul.f32 %v620, 1.442695
    %v635 = vpow.pop %v634
    %v636 = vmul.f32 %v621, 1.442695
    %v637 = vpow.pop %v636
    %v638 = vsel %vm392, %v623, 0.0
    %639 = vadd.xlane.f32.xlu0 %v638
    %v640 = vpop.xlane.xlu0 %639
    %v641 = vsel %vm392, %v625, 0.0
    %642 = vadd.xlane.f32.xlu0 %v641
    %v643 = vpop.xlane.xlu0 %642
    %v644 = vsel %vm392, %v627, 0.0
    %645 = vadd.xlane.f32.xlu0 %v644
    %v646 = vpop.xlane.xlu0 %645
    %v647 = vsel %vm392, %v629, 0.0
    %648 = vadd.xlane.f32.xlu0 %v647
    %v649 = vpop.xlane.xlu0 %648
    %v650 = vsel %vm392, %v631, 0.0
    %651 = vadd.xlane.f32.xlu0 %v650
    %v652 = vpop.xlane.xlu0 %651
    %v653 = vsel %vm392, %v633, 0.0
    %654 = vadd.xlane.f32.xlu0 %v653
    %v655 = vpop.xlane.xlu0 %654
    %v656 = vsel %vm392, %v635, 0.0
    %657 = vadd.xlane.f32.xlu0 %v656
    %v658 = vpop.xlane.xlu0 %657
    %v659 = vsel %vm392, %v637, 0.0
    %660 = vadd.xlane.f32.xlu0 %v659
    %v661 = vpop.xlane.xlu0 %660
    %v662 = vrcp.pop %v640
    %v663 = vrcp.pop %v643
    %v664 = vrcp.pop %v646
    %v665 = vrcp.pop %v649
    %v666 = vrcp.pop %v652
    %v667 = vrcp.pop %v655
    %v668 = vrcp.pop %v658
    %v669 = vrcp.pop %v661
    %v670 = vmul.f32 %v623, %v662
    %v671 = vmul.f32 %v625, %v663
    %v672 = vmul.f32 %v627, %v664
    %v673 = vmul.f32 %v629, %v665
    %v674 = vmul.f32 %v631, %v666
    %v675 = vmul.f32 %v633, %v667
    %v676 = vmul.f32 %v635, %v668
    %v677 = vmul.f32 %v637, %v669
    %v678 = vpack.c.bf16 %v671, %v670
    %v679 = vpack.c.bf16 %v673, %v672
    %v680 = vpack.c.bf16 %v675, %v674
    %v681 = vpack.c.bf16 %v677, %v676
    %v683 = vsel %vm392, %v678, 0
    %685 = vmatprep.subr.bf16.mxu0 0
    %686 = vmatpush1.bf16.msra.mxu0 %v385
    %687 = vmatprep.subr.bf16.mxu0 0
    %688 = vmatpush1.bf16.msra.mxu0 0
    %689 = vmatprep.subr.bf16.mxu0 0
    %690 = vmatpush1.bf16.msra.mxu0 0
    %691 = vmatprep.subr.bf16.mxu0 0
    %692 = vmatpush1.bf16.msra.mxu0 0
    %693 = vmatprep.subr.bf16.mxu0 0
    %694 = vmatpush1.bf16.msra.mxu0 0
    %695 = vmatprep.subr.bf16.mxu0 0
    %696 = vmatpush1.bf16.msra.mxu0 0
    %697 = vmatprep.subr.bf16.mxu0 0
    %698 = vmatpush1.bf16.msra.mxu0 0
    %699 = vmatprep.subr.bf16.mxu0 0
    %700 = vmatpush1.bf16.msra.mxu0 0
    %701 = vmatprep.subr.bf16.mxu0 0
    %702 = vmatpush1.bf16.msra.mxu0 0
    %703 = vmatprep.subr.bf16.mxu0 0
    %704 = vmatpush1.bf16.msra.mxu0 0
    %705 = vmatprep.subr.bf16.mxu0 0
    %706 = vmatpush1.bf16.msra.mxu0 0
    %707 = vmatprep.subr.bf16.mxu0 0
    %708 = vmatpush1.bf16.msra.mxu0 0
    %709 = vmatprep.subr.bf16.mxu0 0
    %710 = vmatpush1.bf16.msra.mxu0 0
    %711 = vmatprep.subr.bf16.mxu0 0
    %712 = vmatpush1.bf16.msra.mxu0 0
    %713 = vmatprep.subr.bf16.mxu0 0
    %714 = vmatpush1.bf16.msra.mxu0 0
    %715 = vmatprep.subr.bf16.mxu0 0
    %716 = vmatpush1.bf16.msra.mxu0 0
    %717 = vmatprep.mubr.bf16.mxu0 0
    %718 = vmatmul.mubr.bf16.gmra.mrb[0].mxu0 %v683
    %v719 = vpop.f32.mrb[0].mxu0
    %v720 = vadd.f32 0.0, %v719
    %v721 = vpop.f32.mrb[0].mxu0
    %v722 = vpop.f32.mrb[0].mxu0
    %v723 = vadd.f32 0.0, %v722
    %v724 = vpop.f32.mrb[0].mxu0
    %725 = vdwg.mxu0
    %v727 = vsel %vm392, %v679, 0
    %729 = vmatprep.subr.bf16.mxu0 0
    %730 = vmatpush1.bf16.msra.mxu0 %v386
    %731 = vmatprep.subr.bf16.mxu0 0
    %732 = vmatpush1.bf16.msra.mxu0 0
    %733 = vmatprep.subr.bf16.mxu0 0
    %734 = vmatpush1.bf16.msra.mxu0 0
    %735 = vmatprep.subr.bf16.mxu0 0
    %736 = vmatpush1.bf16.msra.mxu0 0
    %737 = vmatprep.subr.bf16.mxu0 0
    %738 = vmatpush1.bf16.msra.mxu0 0
    %739 = vmatprep.subr.bf16.mxu0 0
    %740 = vmatpush1.bf16.msra.mxu0 0
    %741 = vmatprep.subr.bf16.mxu0 0
    %742 = vmatpush1.bf16.msra.mxu0 0
    %743 = vmatprep.subr.bf16.mxu0 0
    %744 = vmatpush1.bf16.msra.mxu0 0
    %745 = vmatprep.subr.bf16.mxu0 0
    %746 = vmatpush1.bf16.msra.mxu0 0
    %747 = vmatprep.subr.bf16.mxu0 0
    %748 = vmatpush1.bf16.msra.mxu0 0
    %749 = vmatprep.subr.bf16.mxu0 0
    %750 = vmatpush1.bf16.msra.mxu0 0
    %751 = vmatprep.subr.bf16.mxu0 0
    %752 = vmatpush1.bf16.msra.mxu0 0
    %753 = vmatprep.subr.bf16.mxu0 0
    %754 = vmatpush1.bf16.msra.mxu0 0
    %755 = vmatprep.subr.bf16.mxu0 0
    %756 = vmatpush1.bf16.msra.mxu0 0
    %757 = vmatprep.subr.bf16.mxu0 0
    %758 = vmatpush1.bf16.msra.mxu0 0
    %759 = vmatprep.subr.bf16.mxu0 0
    %760 = vmatpush1.bf16.msra.mxu0 0
    %761 = vmatprep.mubr.bf16.mxu0 0
    %762 = vmatmul.mubr.bf16.gmra.mrb[0].mxu0 %v727
    %v763 = vpop.f32.mrb[0].mxu0
    %v764 = vadd.f32 0.0, %v763
    %v765 = vpop.f32.mrb[0].mxu0
    %v766 = vpop.f32.mrb[0].mxu0
    %v767 = vadd.f32 0.0, %v766
    %v768 = vpop.f32.mrb[0].mxu0
    %769 = vdwg.mxu0
    %v771 = vsel %vm392, %v680, 0
    %773 = vmatprep.subr.bf16.mxu0 0
    %774 = vmatpush1.bf16.msra.mxu0 %v387
    %775 = vmatprep.subr.bf16.mxu0 0
    %776 = vmatpush1.bf16.msra.mxu0 0
    %777 = vmatprep.subr.bf16.mxu0 0
    %778 = vmatpush1.bf16.msra.mxu0 0
    %779 = vmatprep.subr.bf16.mxu0 0
    %780 = vmatpush1.bf16.msra.mxu0 0
    %781 = vmatprep.subr.bf16.mxu0 0
    %782 = vmatpush1.bf16.msra.mxu0 0
    %783 = vmatprep.subr.bf16.mxu0 0
    %784 = vmatpush1.bf16.msra.mxu0 0
    %785 = vmatprep.subr.bf16.mxu0 0
    %786 = vmatpush1.bf16.msra.mxu0 0
    %787 = vmatprep.subr.bf16.mxu0 0
    %788 = vmatpush1.bf16.msra.mxu0 0
    %789 = vmatprep.subr.bf16.mxu0 0
    %790 = vmatpush1.bf16.msra.mxu0 0
    %791 = vmatprep.subr.bf16.mxu0 0
    %792 = vmatpush1.bf16.msra.mxu0 0
    %793 = vmatprep.subr.bf16.mxu0 0
    %794 = vmatpush1.bf16.msra.mxu0 0
    %795 = vmatprep.subr.bf16.mxu0 0
    %796 = vmatpush1.bf16.msra.mxu0 0
    %797 = vmatprep.subr.bf16.mxu0 0
    %798 = vmatpush1.bf16.msra.mxu0 0
    %799 = vmatprep.subr.bf16.mxu0 0
    %800 = vmatpush1.bf16.msra.mxu0 0
    %801 = vmatprep.subr.bf16.mxu0 0
    %802 = vmatpush1.bf16.msra.mxu0 0
    %803 = vmatprep.subr.bf16.mxu0 0
    %804 = vmatpush1.bf16.msra.mxu0 0
    %805 = vmatprep.mubr.bf16.mxu0 0
    %806 = vmatmul.mubr.bf16.gmra.mrb[0].mxu0 %v771
    %v807 = vpop.f32.mrb[0].mxu0
    %v808 = vadd.f32 0.0, %v807
    %v809 = vpop.f32.mrb[0].mxu0
    %v810 = vpop.f32.mrb[0].mxu0
    %v811 = vadd.f32 0.0, %v810
    %v812 = vpop.f32.mrb[0].mxu0
    %813 = vdwg.mxu0
    %v815 = vsel %vm392, %v681, 0
    %817 = vmatprep.subr.bf16.mxu0 0
    %818 = vmatpush1.bf16.msra.mxu0 %v388
    %819 = vmatprep.subr.bf16.mxu0 0
    %820 = vmatpush1.bf16.msra.mxu0 0
    %821 = vmatprep.subr.bf16.mxu0 0
    %822 = vmatpush1.bf16.msra.mxu0 0
    %823 = vmatprep.subr.bf16.mxu0 0
    %824 = vmatpush1.bf16.msra.mxu0 0
    %825 = vmatprep.subr.bf16.mxu0 0
    %826 = vmatpush1.bf16.msra.mxu0 0
    %827 = vmatprep.subr.bf16.mxu0 0
    %828 = vmatpush1.bf16.msra.mxu0 0
    %829 = vmatprep.subr.bf16.mxu0 0
    %830 = vmatpush1.bf16.msra.mxu0 0
    %831 = vmatprep.subr.bf16.mxu0 0
    %832 = vmatpush1.bf16.msra.mxu0 0
    %833 = vmatprep.subr.bf16.mxu0 0
    %834 = vmatpush1.bf16.msra.mxu0 0
    %835 = vmatprep.subr.bf16.mxu0 0
    %836 = vmatpush1.bf16.msra.mxu0 0
    %837 = vmatprep.subr.bf16.mxu0 0
    %838 = vmatpush1.bf16.msra.mxu0 0
    %839 = vmatprep.subr.bf16.mxu0 0
    %840 = vmatpush1.bf16.msra.mxu0 0
    %841 = vmatprep.subr.bf16.mxu0 0
    %842 = vmatpush1.bf16.msra.mxu0 0
    %843 = vmatprep.subr.bf16.mxu0 0
    %844 = vmatpush1.bf16.msra.mxu0 0
    %845 = vmatprep.subr.bf16.mxu0 0
    %846 = vmatpush1.bf16.msra.mxu0 0
    %847 = vmatprep.subr.bf16.mxu0 0
    %848 = vmatpush1.bf16.msra.mxu0 0
    %849 = vmatprep.mubr.bf16.mxu0 0
    %850 = vmatmul.mubr.bf16.gmra.mrb[0].mxu0 %v815
    %v851 = vpop.f32.mrb[0].mxu0
    %v852 = vadd.f32 0.0, %v851
    %v853 = vpop.f32.mrb[0].mxu0
    %v854 = vpop.f32.mrb[0].mxu0
    %v855 = vadd.f32 0.0, %v854
    %v856 = vpop.f32.mrb[0].mxu0
    %857 = vdwg.mxu0
    %860 = vrot.lane.b32.xlu0 %v764, 16
    %v861 = vpop.permute.xlu0 %860
    %862 = vrot.lane.b32.xlu0 %v767, 16
    %v863 = vpop.permute.xlu0 %862
    %868 = vrot.lane.b32.xlu0 %v808, 32
    %v869 = vpop.permute.xlu0 %868
    %870 = vrot.lane.b32.xlu0 %v811, 32
    %v871 = vpop.permute.xlu0 %870
    %876 = vrot.lane.b32.xlu0 %v852, 48
    %v877 = vpop.permute.xlu0 %876
    %878 = vrot.lane.b32.xlu0 %v855, 48
    %v879 = vpop.permute.xlu0 %878
    %v882 = vsel %vm392, %v720, %v861
    %v883 = vsel %vm392, %v723, %v863
    %vm884 = vcmask 261120
    %v885 = vsel %vm884, %v882, %v869
    %v886 = vsel %vm884, %v883, %v871
    %vm887 = vcmask 392192
    %v888 = vsel %vm887, %v885, %v877
    %v889 = vsel %vm887, %v886, %v879
    %v890 = vpack.c.bf16 %v889, %v888
    %v892 = vlaneseq
    %v893 = vshrl.u32 %v892, 7
    %v894 = vsub.s32 0, %v893
    %v895 = vrot.slane %v340, %v894
    %v904 = vunpack.c.l.b16 %v332
    %v905 = vunpack.c.l.b16 %v333
    %v906 = vunpack.c.l.b16 %v334
    %v907 = vunpack.c.l.b16 %v335
    %v908 = vunpack.c.l.b16 %v336
    %v909 = vunpack.c.l.b16 %v337
    %v910 = vunpack.c.l.b16 %v338
    %v911 = vunpack.c.l.b16 %v339
    %v912 = vpack.c.b16 %v905, %v904
    %v913 = vpack.c.b16 %v907, %v906
    %v914 = vpack.c.b16 %v909, %v908
    %v915 = vpack.c.b16 %v911, %v910
    %916 = vrot.lane.b32.xlu0 %v912, 64
    %v917 = vpop.permute.xlu0 %916
    %918 = vrot.lane.b32.xlu0 %v913, 64
    %v919 = vpop.permute.xlu0 %918
    %920 = vrot.lane.b32.xlu0 %v914, 64
    %v921 = vpop.permute.xlu0 %920
    %922 = vrot.lane.b32.xlu0 %v915, 64
    %v923 = vpop.permute.xlu0 %922
    %928 = vrot.lane.b32.xlu0 %v895, 64
    %v929 = vpop.permute.xlu0 %928
    %v932 = vsel %vm135, %v890, 0
    %934 = vmatprep.subr.bf16.mxu0 0
    %935 = vmatpush1.bf16.msra.mxu0 %v917
    %936 = vmatprep.subr.bf16.mxu0 0
    %937 = vmatpush1.bf16.msra.mxu0 %v919
    %938 = vmatprep.subr.bf16.mxu0 0
    %939 = vmatpush1.bf16.msra.mxu0 %v921
    %940 = vmatprep.subr.bf16.mxu0 0
    %941 = vmatpush1.bf16.msra.mxu0 %v923
    %942 = vmatprep.subr.bf16.mxu0 0
    %943 = vmatpush1.bf16.msra.mxu0 0
    %944 = vmatprep.subr.bf16.mxu0 0
    %945 = vmatpush1.bf16.msra.mxu0 0
    %946 = vmatprep.subr.bf16.mxu0 0
    %947 = vmatpush1.bf16.msra.mxu0 0
    %948 = vmatprep.subr.bf16.mxu0 0
    %949 = vmatpush1.bf16.msra.mxu0 0
    %950 = vmatprep.subr.bf16.mxu0 0
    %951 = vmatpush1.bf16.msra.mxu0 0
    %952 = vmatprep.subr.bf16.mxu0 0
    %953 = vmatpush1.bf16.msra.mxu0 0
    %954 = vmatprep.subr.bf16.mxu0 0
    %955 = vmatpush1.bf16.msra.mxu0 0
    %956 = vmatprep.subr.bf16.mxu0 0
    %957 = vmatpush1.bf16.msra.mxu0 0
    %958 = vmatprep.subr.bf16.mxu0 0
    %959 = vmatpush1.bf16.msra.mxu0 0
    %960 = vmatprep.subr.bf16.mxu0 0
    %961 = vmatpush1.bf16.msra.mxu0 0
    %962 = vmatprep.subr.bf16.mxu0 0
    %963 = vmatpush1.bf16.msra.mxu0 0
    %964 = vmatprep.subr.bf16.mxu0 0
    %965 = vmatpush1.bf16.msra.mxu0 0
    %966 = vmatprep.mubr.bf16.mxu0 0
    %967 = vmatmul.mubr.bf16.gmra.mrb[0].mxu0 %v932
    %v968 = vpop.f32.mrb[0].mxu0
    %v969 = vadd.f32 %v929, %v968
    %v970 = vpop.f32.mrb[0].mxu0
    %v971 = vpop.f32.mrb[0].mxu0
    %v972 = vadd.f32 %v929, %v971
    %v973 = vpop.f32.mrb[0].mxu0
    %974 = vdwg.mxu0
    %v975 = vadd.f32 %v66, %v969
    %v976 = vadd.f32 %v67, %v972
    %v977 = vsel %vm135, %v975, 0.0
    %978 = vadd.xlane.f32.xlu0 %v977
    %v979 = vpop.xlane.xlu0 %978
    %v980 = vsel %vm135, %v976, 0.0
    %981 = vadd.xlane.f32.xlu0 %v980
    %v982 = vpop.xlane.xlu0 %981
    %v983 = vmul.f32 %v979, %v188
    %v984 = vmul.f32 %v982, %v188
    %v985 = vsub.f32 %v975, %v983
    %v986 = vsub.f32 %v976, %v984
    %v987 = vmul.f32 %v985, %v985
    %v988 = vmul.f32 %v986, %v986
    %v989 = vsel %vm135, %v987, 0.0
    %990 = vadd.xlane.f32.xlu0 %v989
    %v991 = vpop.xlane.xlu0 %990
    %v992 = vsel %vm135, %v988, 0.0
    %993 = vadd.xlane.f32.xlu0 %v992
    %v994 = vpop.xlane.xlu0 %993
    %v995 = vmul.f32 %v991, 0.015873017
    %v996 = vmul.f32 %v994, 0.015873017
    %v997 = vrsqrt.pop %v995
    %v998 = vmul.f32 %v995, %v997
    %vm999 = vcmp.eq.f32.partialorder %v995, inf
    %v1000 = vsel %vm999, %v995, %v998
    %vm1001 = vcmp.eq.f32.partialorder %v995, 0.0
    %v1002 = vand.u32 %v995, 2147483648
    %v1003 = vsel %vm1001, %v1002, %v1000
    %v1004 = vrsqrt.pop %v996
    %v1005 = vmul.f32 %v996, %v1004
    %vm1006 = vcmp.eq.f32.partialorder %v996, inf
    %v1007 = vsel %vm1006, %v996, %v1005
    %vm1008 = vcmp.eq.f32.partialorder %v996, 0.0
    %v1009 = vand.u32 %v996, 2147483648
    %v1010 = vsel %vm1008, %v1009, %v1007
    %v1011 = vadd.f32 %v1003, 10000.0
    %v1012 = vadd.f32 %v1010, 10000.0
    %v1013 = vrcp.pop %v1011
    %v1014 = vrcp.pop %v1012
    %v1015 = vmul.f32 %v985, %v1013
    %v1016 = vmul.f32 %v986, %v1014
    %v1017 = vadd.f32 %v1015, 1.0
    %v1018 = vadd.f32 %v1016, 1.0
    %v1019 = vpack.c.bf16 %v1018, %v1017
    %v1020 = vld [vmem:[#allocation2 + $0x8] sm:$0xf]
    %v1021 = vld [vmem:[#allocation2 + $0x28] sm:$0xf]
    %v1022 = vld [vmem:[#allocation2 + $0x48] sm:$0xf]
    %v1023 = vld [vmem:[#allocation2 + $0x68] sm:$0xf]
    %v1024 = vld [vmem:[#allocation2 + $0x88] sm:$0xf]
    %v1025 = vld [vmem:[#allocation2 + $0xa8] sm:$0xf]
    %v1026 = vld [vmem:[#allocation2 + $0xc8] sm:$0xf]
    %v1027 = vld [vmem:[#allocation2 + $0xe8] sm:$0xf]
    %v1028 = vld [vmem:[%s5 + $0x2] sm:$0x1]
    %v1030 = vlaneseq
    %v1031 = vshrl.u32 %v1030, 7
    %v1032 = vsub.s32 0, %v1031
    %v1033 = vrot.slane %v1028, %v1032
    %v1043 = vunpack.c.l.b16 %v1020
    %v1044 = vunpack.c.l.b16 %v1021
    %v1045 = vunpack.c.l.b16 %v1022
    %v1046 = vunpack.c.l.b16 %v1023
    %v1047 = vunpack.c.l.b16 %v1024
    %v1048 = vunpack.c.l.b16 %v1025
    %v1049 = vunpack.c.l.b16 %v1026
    %v1050 = vunpack.c.l.b16 %v1027
    %v1051 = vpack.c.b16 %v1044, %v1043
    %v1052 = vpack.c.b16 %v1046, %v1045
    %v1053 = vpack.c.b16 %v1048, %v1047
    %v1054 = vpack.c.b16 %v1050, %v1049
    %v1060 = vsel %vm135, %v1019, 0
    %1062 = vmatprep.subr.bf16.mxu0 0
    %1063 = vmatpush1.bf16.msra.mxu0 %v1051
    %1064 = vmatprep.subr.bf16.mxu0 0
    %1065 = vmatpush1.bf16.msra.mxu0 %v1052
    %1066 = vmatprep.subr.bf16.mxu0 0
    %1067 = vmatpush1.bf16.msra.mxu0 %v1053
    %1068 = vmatprep.subr.bf16.mxu0 0
    %1069 = vmatpush1.bf16.msra.mxu0 %v1054
    %1070 = vmatprep.subr.bf16.mxu0 0
    %1071 = vmatpush1.bf16.msra.mxu0 0
    %1072 = vmatprep.subr.bf16.mxu0 0
    %1073 = vmatpush1.bf16.msra.mxu0 0
    %1074 = vmatprep.subr.bf16.mxu0 0
    %1075 = vmatpush1.bf16.msra.mxu0 0
    %1076 = vmatprep.subr.bf16.mxu0 0
    %1077 = vmatpush1.bf16.msra.mxu0 0
    %1078 = vmatprep.subr.bf16.mxu0 0
    %1079 = vmatpush1.bf16.msra.mxu0 0
    %1080 = vmatprep.subr.bf16.mxu0 0
    %1081 = vmatpush1.bf16.msra.mxu0 0
    %1082 = vmatprep.subr.bf16.mxu0 0
    %1083 = vmatpush1.bf16.msra.mxu0 0
    %1084 = vmatprep.subr.bf16.mxu0 0
    %1085 = vmatpush1.bf16.msra.mxu0 0
    %1086 = vmatprep.subr.bf16.mxu0 0
    %1087 = vmatpush1.bf16.msra.mxu0 0
    %1088 = vmatprep.subr.bf16.mxu0 0
    %1089 = vmatpush1.bf16.msra.mxu0 0
    %1090 = vmatprep.subr.bf16.mxu0 0
    %1091 = vmatpush1.bf16.msra.mxu0 0
    %1092 = vmatprep.subr.bf16.mxu0 0
    %1093 = vmatpush1.bf16.msra.mxu0 0
    %1094 = vmatprep.mubr.bf16.mxu0 0
    %1095 = vmatmul.mubr.bf16.gmra.mrb[0].mxu0 %v1060
    %v1096 = vpop.f32.mrb[0].mxu0
    %v1097 = vadd.f32 %v1033, %v1096
    %v1098 = vpop.f32.mrb[0].mxu0
    %v1099 = vpop.f32.mrb[0].mxu0
    %v1100 = vadd.f32 %v1033, %v1099
    %v1101 = vpop.f32.mrb[0].mxu0
    %1102 = vdwg.mxu0
    %1105 = vrot.lane.b32.xlu0 %v1097, 112
    %v1106 = vpop.permute.xlu0 %1105
    %1107 = vrot.lane.b32.xlu0 %v1100, 112
    %v1108 = vpop.permute.xlu0 %1107
    %1111 = vrot.lane.b32.xlu0 %v1097, 96
    %v1112 = vpop.permute.xlu0 %1111
    %1113 = vrot.lane.b32.xlu0 %v1100, 96
    %v1114 = vpop.permute.xlu0 %1113
    %1117 = vrot.lane.b32.xlu0 %v1097, 80
    %v1118 = vpop.permute.xlu0 %1117
    %1119 = vrot.lane.b32.xlu0 %v1100, 80
    %v1120 = vpop.permute.xlu0 %1119
    %v1123 = vpack.c.bf16 %v1100, %v1097
    %v1124 = vpack.c.bf16 %v1108, %v1106
    %v1125 = vpack.c.bf16 %v1114, %v1112
    %v1126 = vpack.c.bf16 %v1120, %v1118
    %1129 = vrot.lane.b32.xlu0 %v174, 112
    %v1130 = vpop.permute.xlu0 %1129
    %1131 = vrot.lane.b32.xlu0 %v178, 112
    %v1132 = vpop.permute.xlu0 %1131
    %1135 = vrot.lane.b32.xlu0 %v174, 96
    %v1136 = vpop.permute.xlu0 %1135
    %1137 = vrot.lane.b32.xlu0 %v178, 96
    %v1138 = vpop.permute.xlu0 %1137
    %1141 = vrot.lane.b32.xlu0 %v174, 80
    %v1142 = vpop.permute.xlu0 %1141
    %1143 = vrot.lane.b32.xlu0 %v178, 80
    %v1144 = vpop.permute.xlu0 %1143
    %v1147 = vpack.c.bf16 %v178, %v174
    %v1148 = vpack.c.bf16 %v1132, %v1130
    %v1149 = vpack.c.bf16 %v1138, %v1136
    %v1150 = vpack.c.bf16 %v1144, %v1142
    %v1152 = vsel %vm392, %v1123, 0
    %v1155 = vsel %vm392, %v1147, 0
    %1157 = vmatprep.subr.bf16.mxu0 0
    %1158 = vmatpush1.bf16.xpose.msra.mxu0 %v1155
    %1159 = vmatprep.subr.bf16.mxu0 0
    %1160 = vmatpush1.bf16.xpose.msra.mxu0 0
    %1161 = vmatprep.subr.bf16.mxu0 0
    %1162 = vmatpush1.bf16.xpose.msra.mxu0 0
    %1163 = vmatprep.subr.bf16.mxu0 0
    %1164 = vmatpush1.bf16.xpose.msra.mxu0 0
    %1165 = vmatprep.subr.bf16.mxu0 0
    %1166 = vmatpush1.bf16.xpose.msra.mxu0 0
    %1167 = vmatprep.subr.bf16.mxu0 0
    %1168 = vmatpush1.bf16.xpose.msra.mxu0 0
    %1169 = vmatprep.subr.bf16.mxu0 0
    %1170 = vmatpush1.bf16.xpose.msra.mxu0 0
    %1171 = vmatprep.subr.bf16.mxu0 0
    %1172 = vmatpush1.bf16.xpose.msra.mxu0 0
    %1173 = vmatprep.subr.bf16.mxu0 0
    %1174 = vmatpush1.bf16.xpose.msra.mxu0 0
    %1175 = vmatprep.subr.bf16.mxu0 0
    %1176 = vmatpush1.bf16.xpose.msra.mxu0 0
    %1177 = vmatprep.subr.bf16.mxu0 0
    %1178 = vmatpush1.bf16.xpose.msra.mxu0 0
    %1179 = vmatprep.subr.bf16.mxu0 0
    %1180 = vmatpush1.bf16.xpose.msra.mxu0 0
    %1181 = vmatprep.subr.bf16.mxu0 0
    %1182 = vmatpush1.bf16.xpose.msra.mxu0 0
    %1183 = vmatprep.subr.bf16.mxu0 0
    %1184 = vmatpush1.bf16.xpose.msra.mxu0 0
    %1185 = vmatprep.subr.bf16.mxu0 0
    %1186 = vmatpush1.bf16.xpose.msra.mxu0 0
    %1187 = vmatprep.subr.bf16.mxu0 0
    %1188 = vmatpush1.bf16.xpose.msra.mxu0 0
    %1189 = vmatprep.mubr.bf16.mxu0 0
    %1190 = vmatmul.mubr.bf16.gmra.mrb[0].mxu0 %v1152
    %v1191 = vpop.f32.mrb[0].mxu0
    %v1192 = vadd.f32 %v72, %v1191
    %v1193 = vpop.f32.mrb[0].mxu0
    %v1194 = vpop.f32.mrb[0].mxu0
    %v1195 = vadd.f32 %v73, %v1194
    %v1196 = vpop.f32.mrb[0].mxu0
    %1197 = vdwg.mxu0
    %v1199 = vsel %vm392, %v1124, 0
    %v1202 = vsel %vm392, %v1148, 0
    %1204 = vmatprep.subr.bf16.mxu0 0
    %1205 = vmatpush1.bf16.xpose.msra.mxu0 %v1202
    %1206 = vmatprep.subr.bf16.mxu0 0
    %1207 = vmatpush1.bf16.xpose.msra.mxu0 0
    %1208 = vmatprep.subr.bf16.mxu0 0
    %1209 = vmatpush1.bf16.xpose.msra.mxu0 0
    %1210 = vmatprep.subr.bf16.mxu0 0
    %1211 = vmatpush1.bf16.xpose.msra.mxu0 0
    %1212 = vmatprep.subr.bf16.mxu0 0
    %1213 = vmatpush1.bf16.xpose.msra.mxu0 0
    %1214 = vmatprep.subr.bf16.mxu0 0
    %1215 = vmatpush1.bf16.xpose.msra.mxu0 0
    %1216 = vmatprep.subr.bf16.mxu0 0
    %1217 = vmatpush1.bf16.xpose.msra.mxu0 0
    %1218 = vmatprep.subr.bf16.mxu0 0
    %1219 = vmatpush1.bf16.xpose.msra.mxu0 0
    %1220 = vmatprep.subr.bf16.mxu0 0
    %1221 = vmatpush1.bf16.xpose.msra.mxu0 0
    %1222 = vmatprep.subr.bf16.mxu0 0
    %1223 = vmatpush1.bf16.xpose.msra.mxu0 0
    %1224 = vmatprep.subr.bf16.mxu0 0
    %1225 = vmatpush1.bf16.xpose.msra.mxu0 0
    %1226 = vmatprep.subr.bf16.mxu0 0
    %1227 = vmatpush1.bf16.xpose.msra.mxu0 0
    %1228 = vmatprep.subr.bf16.mxu0 0
    %1229 = vmatpush1.bf16.xpose.msra.mxu0 0
    %1230 = vmatprep.subr.bf16.mxu0 0
    %1231 = vmatpush1.bf16.xpose.msra.mxu0 0
    %1232 = vmatprep.subr.bf16.mxu0 0
    %1233 = vmatpush1.bf16.xpose.msra.mxu0 0
    %1234 = vmatprep.subr.bf16.mxu0 0
    %1235 = vmatpush1.bf16.xpose.msra.mxu0 0
    %1236 = vmatprep.mubr.bf16.mxu0 0
    %1237 = vmatmul.mubr.bf16.gmra.mrb[0].mxu0 %v1199
    %v1238 = vpop.f32.mrb[0].mxu0
    %v1239 = vadd.f32 %v72, %v1238
    %v1240 = vpop.f32.mrb[0].mxu0
    %v1241 = vpop.f32.mrb[0].mxu0
    %v1242 = vadd.f32 %v73, %v1241
    %v1243 = vpop.f32.mrb[0].mxu0
    %1244 = vdwg.mxu0
    %v1246 = vsel %vm392, %v1125, 0
    %v1249 = vsel %vm392, %v1149, 0
    %1251 = vmatprep.subr.bf16.mxu0 0
    %1252 = vmatpush1.bf16.xpose.msra.mxu0 %v1249
    %1253 = vmatprep.subr.bf16.mxu0 0
    %1254 = vmatpush1.bf16.xpose.msra.mxu0 0
    %1255 = vmatprep.subr.bf16.mxu0 0
    %1256 = vmatpush1.bf16.xpose.msra.mxu0 0
    %1257 = vmatprep.subr.bf16.mxu0 0
    %1258 = vmatpush1.bf16.xpose.msra.mxu0 0
    %1259 = vmatprep.subr.bf16.mxu0 0
    %1260 = vmatpush1.bf16.xpose.msra.mxu0 0
    %1261 = vmatprep.subr.bf16.mxu0 0
    %1262 = vmatpush1.bf16.xpose.msra.mxu0 0
    %1263 = vmatprep.subr.bf16.mxu0 0
    %1264 = vmatpush1.bf16.xpose.msra.mxu0 0
    %1265 = vmatprep.subr.bf16.mxu0 0
    %1266 = vmatpush1.bf16.xpose.msra.mxu0 0
    %1267 = vmatprep.subr.bf16.mxu0 0
    %1268 = vmatpush1.bf16.xpose.msra.mxu0 0
    %1269 = vmatprep.subr.bf16.mxu0 0
    %1270 = vmatpush1.bf16.xpose.msra.mxu0 0
    %1271 = vmatprep.subr.bf16.mxu0 0
    %1272 = vmatpush1.bf16.xpose.msra.mxu0 0
    %1273 = vmatprep.subr.bf16.mxu0 0
    %1274 = vmatpush1.bf16.xpose.msra.mxu0 0
    %1275 = vmatprep.subr.bf16.mxu0 0
    %1276 = vmatpush1.bf16.xpose.msra.mxu0 0
    %1277 = vmatprep.subr.bf16.mxu0 0
    %1278 = vmatpush1.bf16.xpose.msra.mxu0 0
    %1279 = vmatprep.subr.bf16.mxu0 0
    %1280 = vmatpush1.bf16.xpose.msra.mxu0 0
    %1281 = vmatprep.subr.bf16.mxu0 0
    %1282 = vmatpush1.bf16.xpose.msra.mxu0 0
    %1283 = vmatprep.mubr.bf16.mxu0 0
    %1284 = vmatmul.mubr.bf16.gmra.mrb[0].mxu0 %v1246
    %v1285 = vpop.f32.mrb[0].mxu0
    %v1286 = vadd.f32 %v72, %v1285
    %v1287 = vpop.f32.mrb[0].mxu0
    %v1288 = vpop.f32.mrb[0].mxu0
    %v1289 = vadd.f32 %v73, %v1288
    %v1290 = vpop.f32.mrb[0].mxu0
    %1291 = vdwg.mxu0
    %v1293 = vsel %vm392, %v1126, 0
    %v1296 = vsel %vm392, %v1150, 0
    %1298 = vmatprep.subr.bf16.mxu0 0
    %1299 = vmatpush1.bf16.xpose.msra.mxu0 %v1296
    %1300 = vmatprep.subr.bf16.mxu0 0
    %1301 = vmatpush1.bf16.xpose.msra.mxu0 0
    %1302 = vmatprep.subr.bf16.mxu0 0
    %1303 = vmatpush1.bf16.xpose.msra.mxu0 0
    %1304 = vmatprep.subr.bf16.mxu0 0
    %1305 = vmatpush1.bf16.xpose.msra.mxu0 0
    %1306 = vmatprep.subr.bf16.mxu0 0
    %1307 = vmatpush1.bf16.xpose.msra.mxu0 0
    %1308 = vmatprep.subr.bf16.mxu0 0
    %1309 = vmatpush1.bf16.xpose.msra.mxu0 0
    %1310 = vmatprep.subr.bf16.mxu0 0
    %1311 = vmatpush1.bf16.xpose.msra.mxu0 0
    %1312 = vmatprep.subr.bf16.mxu0 0
    %1313 = vmatpush1.bf16.xpose.msra.mxu0 0
    %1314 = vmatprep.subr.bf16.mxu0 0
    %1315 = vmatpush1.bf16.xpose.msra.mxu0 0
    %1316 = vmatprep.subr.bf16.mxu0 0
    %1317 = vmatpush1.bf16.xpose.msra.mxu0 0
    %1318 = vmatprep.subr.bf16.mxu0 0
    %1319 = vmatpush1.bf16.xpose.msra.mxu0 0
    %1320 = vmatprep.subr.bf16.mxu0 0
    %1321 = vmatpush1.bf16.xpose.msra.mxu0 0
    %1322 = vmatprep.subr.bf16.mxu0 0
    %1323 = vmatpush1.bf16.xpose.msra.mxu0 0
    %1324 = vmatprep.subr.bf16.mxu0 0
    %1325 = vmatpush1.bf16.xpose.msra.mxu0 0
    %1326 = vmatprep.subr.bf16.mxu0 0
    %1327 = vmatpush1.bf16.xpose.msra.mxu0 0
    %1328 = vmatprep.subr.bf16.mxu0 0
    %1329 = vmatpush1.bf16.xpose.msra.mxu0 0
    %1330 = vmatprep.mubr.bf16.mxu0 0
    %1331 = vmatmul.mubr.bf16.gmra.mrb[0].mxu0 %v1293
    %v1332 = vpop.f32.mrb[0].mxu0
    %v1333 = vadd.f32 %v72, %v1332
    %v1334 = vpop.f32.mrb[0].mxu0
    %v1335 = vpop.f32.mrb[0].mxu0
    %v1336 = vadd.f32 %v73, %v1335
    %v1337 = vpop.f32.mrb[0].mxu0
    %1338 = vdwg.mxu0
    %v1339 = vsel %vm392, %v1192, -inf
    %1340 = vmax.xlane.f32.xlu0 %v1339
    %v1341 = vpop.xlane.xlu0 %1340
    %v1342 = vsel %vm392, %v1195, -inf
    %1343 = vmax.xlane.f32.xlu0 %v1342
    %v1344 = vpop.xlane.xlu0 %1343
    %v1345 = vsel %vm392, %v1239, -inf
    %1346 = vmax.xlane.f32.xlu0 %v1345
    %v1347 = vpop.xlane.xlu0 %1346
    %v1348 = vsel %vm392, %v1242, -inf
    %1349 = vmax.xlane.f32.xlu0 %v1348
    %v1350 = vpop.xlane.xlu0 %1349
    %v1351 = vsel %vm392, %v1286, -inf
    %1352 = vmax.xlane.f32.xlu0 %v1351
    %v1353 = vpop.xlane.xlu0 %1352
    %v1354 = vsel %vm392, %v1289, -inf
    %1355 = vmax.xlane.f32.xlu0 %v1354
    %v1356 = vpop.xlane.xlu0 %1355
    %v1357 = vsel %vm392, %v1333, -inf
    %1358 = vmax.xlane.f32.xlu0 %v1357
    %v1359 = vpop.xlane.xlu0 %1358
    %v1360 = vsel %vm392, %v1336, -inf
    %1361 = vmax.xlane.f32.xlu0 %v1360
    %v1362 = vpop.xlane.xlu0 %1361
    %v1363 = vsub.f32 %v1192, %v1341
    %v1364 = vsub.f32 %v1195, %v1344
    %v1365 = vsub.f32 %v1239, %v1347
    %v1366 = vsub.f32 %v1242, %v1350
    %v1367 = vsub.f32 %v1286, %v1353
    %v1368 = vsub.f32 %v1289, %v1356
    %v1369 = vsub.f32 %v1333, %v1359
    %v1370 = vsub.f32 %v1336, %v1362
    %v1371 = vmul.f32 %v1363, 1.442695
    %v1372 = vpow.pop %v1371
    %v1373 = vmul.f32 %v1364, 1.442695
    %v1374 = vpow.pop %v1373
    %v1375 = vmul.f32 %v1365, 1.442695
    %v1376 = vpow.pop %v1375
    %v1377 = vmul.f32 %v1366, 1.442695
    %v1378 = vpow.pop %v1377
    %v1379 = vmul.f32 %v1367, 1.442695
    %v1380 = vpow.pop %v1379
    %v1381 = vmul.f32 %v1368, 1.442695
    %v1382 = vpow.pop %v1381
    %v1383 = vmul.f32 %v1369, 1.442695
    %v1384 = vpow.pop %v1383
    %v1385 = vmul.f32 %v1370, 1.442695
    %v1386 = vpow.pop %v1385
    %v1387 = vsel %vm392, %v1372, 0.0
    %1388 = vadd.xlane.f32.xlu0 %v1387
    %v1389 = vpop.xlane.xlu0 %1388
    %v1390 = vsel %vm392, %v1374, 0.0
    %1391 = vadd.xlane.f32.xlu0 %v1390
    %v1392 = vpop.xlane.xlu0 %1391
    %v1393 = vsel %vm392, %v1376, 0.0
    %1394 = vadd.xlane.f32.xlu0 %v1393
    %v1395 = vpop.xlane.xlu0 %1394
    %v1396 = vsel %vm392, %v1378, 0.0
    %1397 = vadd.xlane.f32.xlu0 %v1396
    %v1398 = vpop.xlane.xlu0 %1397
    %v1399 = vsel %vm392, %v1380, 0.0
    %1400 = vadd.xlane.f32.xlu0 %v1399
    %v1401 = vpop.xlane.xlu0 %1400
    %v1402 = vsel %vm392, %v1382, 0.0
    %1403 = vadd.xlane.f32.xlu0 %v1402
    %v1404 = vpop.xlane.xlu0 %1403
    %v1405 = vsel %vm392, %v1384, 0.0
    %1406 = vadd.xlane.f32.xlu0 %v1405
    %v1407 = vpop.xlane.xlu0 %1406
    %v1408 = vsel %vm392, %v1386, 0.0
    %1409 = vadd.xlane.f32.xlu0 %v1408
    %v1410 = vpop.xlane.xlu0 %1409
    %v1411 = vrcp.pop %v1389
    %v1412 = vrcp.pop %v1392
    %v1413 = vrcp.pop %v1395
    %v1414 = vrcp.pop %v1398
    %v1415 = vrcp.pop %v1401
    %v1416 = vrcp.pop %v1404
    %v1417 = vrcp.pop %v1407
    %v1418 = vrcp.pop %v1410
    %v1419 = vmul.f32 %v1372, %v1411
    %v1420 = vmul.f32 %v1374, %v1412
    %v1421 = vmul.f32 %v1376, %v1413
    %v1422 = vmul.f32 %v1378, %v1414
    %v1423 = vmul.f32 %v1380, %v1415
    %v1424 = vmul.f32 %v1382, %v1416
    %v1425 = vmul.f32 %v1384, %v1417
    %v1426 = vmul.f32 %v1386, %v1418
    %v1427 = vpack.c.bf16 %v1420, %v1419
    %v1428 = vpack.c.bf16 %v1422, %v1421
    %v1429 = vpack.c.bf16 %v1424, %v1423
    %v1430 = vpack.c.bf16 %v1426, %v1425
    %1432 = vrot.lane.b32.xlu0 %v1147, 64
    %v1433 = vpop.permute.xlu0 %1432
    %v1436 = vsel %vm392, %v1427, 0
    %1438 = vmatprep.subr.bf16.mxu0 0
    %1439 = vmatpush1.bf16.msra.mxu0 %v1433
    %1440 = vmatprep.subr.bf16.mxu0 0
    %1441 = vmatpush1.bf16.msra.mxu0 0
    %1442 = vmatprep.subr.bf16.mxu0 0
    %1443 = vmatpush1.bf16.msra.mxu0 0
    %1444 = vmatprep.subr.bf16.mxu0 0
    %1445 = vmatpush1.bf16.msra.mxu0 0
    %1446 = vmatprep.subr.bf16.mxu0 0
    %1447 = vmatpush1.bf16.msra.mxu0 0
    %1448 = vmatprep.subr.bf16.mxu0 0
    %1449 = vmatpush1.bf16.msra.mxu0 0
    %1450 = vmatprep.subr.bf16.mxu0 0
    %1451 = vmatpush1.bf16.msra.mxu0 0
    %1452 = vmatprep.subr.bf16.mxu0 0
    %1453 = vmatpush1.bf16.msra.mxu0 0
    %1454 = vmatprep.subr.bf16.mxu0 0
    %1455 = vmatpush1.bf16.msra.mxu0 0
    %1456 = vmatprep.subr.bf16.mxu0 0
    %1457 = vmatpush1.bf16.msra.mxu0 0
    %1458 = vmatprep.subr.bf16.mxu0 0
    %1459 = vmatpush1.bf16.msra.mxu0 0
    %1460 = vmatprep.subr.bf16.mxu0 0
    %1461 = vmatpush1.bf16.msra.mxu0 0
    %1462 = vmatprep.subr.bf16.mxu0 0
    %1463 = vmatpush1.bf16.msra.mxu0 0
    %1464 = vmatprep.subr.bf16.mxu0 0
    %1465 = vmatpush1.bf16.msra.mxu0 0
    %1466 = vmatprep.subr.bf16.mxu0 0
    %1467 = vmatpush1.bf16.msra.mxu0 0
    %1468 = vmatprep.subr.bf16.mxu0 0
    %1469 = vmatpush1.bf16.msra.mxu0 0
    %1470 = vmatprep.mubr.bf16.mxu0 0
    %1471 = vmatmul.mubr.bf16.gmra.mrb[0].mxu0 %v1436
    %v1472 = vpop.f32.mrb[0].mxu0
    %v1473 = vadd.f32 0.0, %v1472
    %v1474 = vpop.f32.mrb[0].mxu0
    %v1475 = vpop.f32.mrb[0].mxu0
    %v1476 = vadd.f32 0.0, %v1475
    %v1477 = vpop.f32.mrb[0].mxu0
    %1478 = vdwg.mxu0
    %1480 = vrot.lane.b32.xlu0 %v1148, 64
    %v1481 = vpop.permute.xlu0 %1480
    %v1484 = vsel %vm392, %v1428, 0
    %1486 = vmatprep.subr.bf16.mxu0 0
    %1487 = vmatpush1.bf16.msra.mxu0 %v1481
    %1488 = vmatprep.subr.bf16.mxu0 0
    %1489 = vmatpush1.bf16.msra.mxu0 0
    %1490 = vmatprep.subr.bf16.mxu0 0
    %1491 = vmatpush1.bf16.msra.mxu0 0
    %1492 = vmatprep.subr.bf16.mxu0 0
    %1493 = vmatpush1.bf16.msra.mxu0 0
    %1494 = vmatprep.subr.bf16.mxu0 0
    %1495 = vmatpush1.bf16.msra.mxu0 0
    %1496 = vmatprep.subr.bf16.mxu0 0
    %1497 = vmatpush1.bf16.msra.mxu0 0
    %1498 = vmatprep.subr.bf16.mxu0 0
    %1499 = vmatpush1.bf16.msra.mxu0 0
    %1500 = vmatprep.subr.bf16.mxu0 0
    %1501 = vmatpush1.bf16.msra.mxu0 0
    %1502 = vmatprep.subr.bf16.mxu0 0
    %1503 = vmatpush1.bf16.msra.mxu0 0
    %1504 = vmatprep.subr.bf16.mxu0 0
    %1505 = vmatpush1.bf16.msra.mxu0 0
    %1506 = vmatprep.subr.bf16.mxu0 0
    %1507 = vmatpush1.bf16.msra.mxu0 0
    %1508 = vmatprep.subr.bf16.mxu0 0
    %1509 = vmatpush1.bf16.msra.mxu0 0
    %1510 = vmatprep.subr.bf16.mxu0 0
    %1511 = vmatpush1.bf16.msra.mxu0 0
    %1512 = vmatprep.subr.bf16.mxu0 0
    %1513 = vmatpush1.bf16.msra.mxu0 0
    %1514 = vmatprep.subr.bf16.mxu0 0
    %1515 = vmatpush1.bf16.msra.mxu0 0
    %1516 = vmatprep.subr.bf16.mxu0 0
    %1517 = vmatpush1.bf16.msra.mxu0 0
    %1518 = vmatprep.mubr.bf16.mxu0 0
    %1519 = vmatmul.mubr.bf16.gmra.mrb[0].mxu0 %v1484
    %v1520 = vpop.f32.mrb[0].mxu0
    %v1521 = vadd.f32 0.0, %v1520
    %v1522 = vpop.f32.mrb[0].mxu0
    %v1523 = vpop.f32.mrb[0].mxu0
    %v1524 = vadd.f32 0.0, %v1523
    %v1525 = vpop.f32.mrb[0].mxu0
    %1526 = vdwg.mxu0
    %1528 = vrot.lane.b32.xlu0 %v1149, 64
    %v1529 = vpop.permute.xlu0 %1528
    %v1532 = vsel %vm392, %v1429, 0
    %1534 = vmatprep.subr.bf16.mxu0 0
    %1535 = vmatpush1.bf16.msra.mxu0 %v1529
    %1536 = vmatprep.subr.bf16.mxu0 0
    %1537 = vmatpush1.bf16.msra.mxu0 0
    %1538 = vmatprep.subr.bf16.mxu0 0
    %1539 = vmatpush1.bf16.msra.mxu0 0
    %1540 = vmatprep.subr.bf16.mxu0 0
    %1541 = vmatpush1.bf16.msra.mxu0 0
    %1542 = vmatprep.subr.bf16.mxu0 0
    %1543 = vmatpush1.bf16.msra.mxu0 0
    %1544 = vmatprep.subr.bf16.mxu0 0
    %1545 = vmatpush1.bf16.msra.mxu0 0
    %1546 = vmatprep.subr.bf16.mxu0 0
    %1547 = vmatpush1.bf16.msra.mxu0 0
    %1548 = vmatprep.subr.bf16.mxu0 0
    %1549 = vmatpush1.bf16.msra.mxu0 0
    %1550 = vmatprep.subr.bf16.mxu0 0
    %1551 = vmatpush1.bf16.msra.mxu0 0
    %1552 = vmatprep.subr.bf16.mxu0 0
    %1553 = vmatpush1.bf16.msra.mxu0 0
    %1554 = vmatprep.subr.bf16.mxu0 0
    %1555 = vmatpush1.bf16.msra.mxu0 0
    %1556 = vmatprep.subr.bf16.mxu0 0
    %1557 = vmatpush1.bf16.msra.mxu0 0
    %1558 = vmatprep.subr.bf16.mxu0 0
    %1559 = vmatpush1.bf16.msra.mxu0 0
    %1560 = vmatprep.subr.bf16.mxu0 0
    %1561 = vmatpush1.bf16.msra.mxu0 0
    %1562 = vmatprep.subr.bf16.mxu0 0
    %1563 = vmatpush1.bf16.msra.mxu0 0
    %1564 = vmatprep.subr.bf16.mxu0 0
    %1565 = vmatpush1.bf16.msra.mxu0 0
    %1566 = vmatprep.mubr.bf16.mxu0 0
    %1567 = vmatmul.mubr.bf16.gmra.mrb[0].mxu0 %v1532
    %v1568 = vpop.f32.mrb[0].mxu0
    %v1569 = vadd.f32 0.0, %v1568
    %v1570 = vpop.f32.mrb[0].mxu0
    %v1571 = vpop.f32.mrb[0].mxu0
    %v1572 = vadd.f32 0.0, %v1571
    %v1573 = vpop.f32.mrb[0].mxu0
    %1574 = vdwg.mxu0
    %1576 = vrot.lane.b32.xlu0 %v1150, 64
    %v1577 = vpop.permute.xlu0 %1576
    %v1580 = vsel %vm392, %v1430, 0
    %1582 = vmatprep.subr.bf16.mxu0 0
    %1583 = vmatpush1.bf16.msra.mxu0 %v1577
    %1584 = vmatprep.subr.bf16.mxu0 0
    %1585 = vmatpush1.bf16.msra.mxu0 0
    %1586 = vmatprep.subr.bf16.mxu0 0
    %1587 = vmatpush1.bf16.msra.mxu0 0
    %1588 = vmatprep.subr.bf16.mxu0 0
    %1589 = vmatpush1.bf16.msra.mxu0 0
    %1590 = vmatprep.subr.bf16.mxu0 0
    %1591 = vmatpush1.bf16.msra.mxu0 0
    %1592 = vmatprep.subr.bf16.mxu0 0
    %1593 = vmatpush1.bf16.msra.mxu0 0
    %1594 = vmatprep.subr.bf16.mxu0 0
    %1595 = vmatpush1.bf16.msra.mxu0 0
    %1596 = vmatprep.subr.bf16.mxu0 0
    %1597 = vmatpush1.bf16.msra.mxu0 0
    %1598 = vmatprep.subr.bf16.mxu0 0
    %1599 = vmatpush1.bf16.msra.mxu0 0
    %1600 = vmatprep.subr.bf16.mxu0 0
    %1601 = vmatpush1.bf16.msra.mxu0 0
    %1602 = vmatprep.subr.bf16.mxu0 0
    %1603 = vmatpush1.bf16.msra.mxu0 0
    %1604 = vmatprep.subr.bf16.mxu0 0
    %1605 = vmatpush1.bf16.msra.mxu0 0
    %1606 = vmatprep.subr.bf16.mxu0 0
    %1607 = vmatpush1.bf16.msra.mxu0 0
    %1608 = vmatprep.subr.bf16.mxu0 0
    %1609 = vmatpush1.bf16.msra.mxu0 0
    %1610 = vmatprep.subr.bf16.mxu0 0
    %1611 = vmatpush1.bf16.msra.mxu0 0
    %1612 = vmatprep.subr.bf16.mxu0 0
    %1613 = vmatpush1.bf16.msra.mxu0 0
    %1614 = vmatprep.mubr.bf16.mxu0 0
    %1615 = vmatmul.mubr.bf16.gmra.mrb[0].mxu0 %v1580
    %v1616 = vpop.f32.mrb[0].mxu0
    %v1617 = vadd.f32 0.0, %v1616
    %v1618 = vpop.f32.mrb[0].mxu0
    %v1619 = vpop.f32.mrb[0].mxu0
    %v1620 = vadd.f32 0.0, %v1619
    %v1621 = vpop.f32.mrb[0].mxu0
    %1622 = vdwg.mxu0
    %1625 = vrot.lane.b32.xlu0 %v1521, 16
    %v1626 = vpop.permute.xlu0 %1625
    %1627 = vrot.lane.b32.xlu0 %v1524, 16
    %v1628 = vpop.permute.xlu0 %1627
    %1633 = vrot.lane.b32.xlu0 %v1569, 32
    %v1634 = vpop.permute.xlu0 %1633
    %1635 = vrot.lane.b32.xlu0 %v1572, 32
    %v1636 = vpop.permute.xlu0 %1635
    %1641 = vrot.lane.b32.xlu0 %v1617, 48
    %v1642 = vpop.permute.xlu0 %1641
    %1643 = vrot.lane.b32.xlu0 %v1620, 48
    %v1644 = vpop.permute.xlu0 %1643
    %v1647 = vsel %vm392, %v1473, %v1626
    %v1648 = vsel %vm392, %v1476, %v1628
    %v1649 = vsel %vm884, %v1647, %v1634
    %v1650 = vsel %vm884, %v1648, %v1636
    %v1651 = vsel %vm887, %v1649, %v1642
    %v1652 = vsel %vm887, %v1650, %v1644
    %v1653 = vpack.c.bf16 %v1652, %v1651
    %1654 = vrot.lane.b32.xlu0 %v1051, 64
    %v1655 = vpop.permute.xlu0 %1654
    %1656 = vrot.lane.b32.xlu0 %v1052, 64
    %v1657 = vpop.permute.xlu0 %1656
    %1658 = vrot.lane.b32.xlu0 %v1053, 64
    %v1659 = vpop.permute.xlu0 %1658
    %1660 = vrot.lane.b32.xlu0 %v1054, 64
    %v1661 = vpop.permute.xlu0 %1660
    %1666 = vrot.lane.b32.xlu0 %v1033, 64
    %v1667 = vpop.permute.xlu0 %1666
    %v1670 = vsel %vm135, %v1653, 0
    %1672 = vmatprep.subr.bf16.mxu0 0
    %1673 = vmatpush1.bf16.msra.mxu0 %v1655
    %1674 = vmatprep.subr.bf16.mxu0 0
    %1675 = vmatpush1.bf16.msra.mxu0 %v1657
    %1676 = vmatprep.subr.bf16.mxu0 0
    %1677 = vmatpush1.bf16.msra.mxu0 %v1659
    %1678 = vmatprep.subr.bf16.mxu0 0
    %1679 = vmatpush1.bf16.msra.mxu0 %v1661
    %1680 = vmatprep.subr.bf16.mxu0 0
    %1681 = vmatpush1.bf16.msra.mxu0 0
    %1682 = vmatprep.subr.bf16.mxu0 0
    %1683 = vmatpush1.bf16.msra.mxu0 0
    %1684 = vmatprep.subr.bf16.mxu0 0
    %1685 = vmatpush1.bf16.msra.mxu0 0
    %1686 = vmatprep.subr.bf16.mxu0 0
    %1687 = vmatpush1.bf16.msra.mxu0 0
    %1688 = vmatprep.subr.bf16.mxu0 0
    %1689 = vmatpush1.bf16.msra.mxu0 0
    %1690 = vmatprep.subr.bf16.mxu0 0
    %1691 = vmatpush1.bf16.msra.mxu0 0
    %1692 = vmatprep.subr.bf16.mxu0 0
    %1693 = vmatpush1.bf16.msra.mxu0 0
    %1694 = vmatprep.subr.bf16.mxu0 0
    %1695 = vmatpush1.bf16.msra.mxu0 0
    %1696 = vmatprep.subr.bf16.mxu0 0
    %1697 = vmatpush1.bf16.msra.mxu0 0
    %1698 = vmatprep.subr.bf16.mxu0 0
    %1699 = vmatpush1.bf16.msra.mxu0 0
    %1700 = vmatprep.subr.bf16.mxu0 0
    %1701 = vmatpush1.bf16.msra.mxu0 0
    %1702 = vmatprep.subr.bf16.mxu0 0
    %1703 = vmatpush1.bf16.msra.mxu0 0
    %1704 = vmatprep.mubr.bf16.mxu0 0
    %1705 = vmatmul.mubr.bf16.gmra.mrb[0].mxu0 %v1670
    %v1706 = vpop.f32.mrb[0].mxu0
    %v1707 = vadd.f32 %v1667, %v1706
    %v1708 = vpop.f32.mrb[0].mxu0
    %v1709 = vpop.f32.mrb[0].mxu0
    %v1710 = vadd.f32 %v1667, %v1709
    %v1711 = vpop.f32.mrb[0].mxu0
    %1712 = vdwg.mxu0
    %v1713 = vadd.f32 %v975, %v1707
    %v1714 = vadd.f32 %v976, %v1710
    %v1715 = vsel %vm135, %v1713, 0.0
    %1716 = vadd.xlane.f32.xlu0 %v1715
    %v1717 = vpop.xlane.xlu0 %1716
    %v1718 = vsel %vm135, %v1714, 0.0
    %1719 = vadd.xlane.f32.xlu0 %v1718
    %v1720 = vpop.xlane.xlu0 %1719
    %v1721 = vmul.f32 %v1717, %v188
    %v1722 = vmul.f32 %v1720, %v188
    %v1723 = vsub.f32 %v1713, %v1721
    %v1724 = vsub.f32 %v1714, %v1722
    %v1725 = vmul.f32 %v1723, %v1723
    %v1726 = vmul.f32 %v1724, %v1724
    %v1727 = vsel %vm135, %v1725, 0.0
    %1728 = vadd.xlane.f32.xlu0 %v1727
    %v1729 = vpop.xlane.xlu0 %1728
    %v1730 = vsel %vm135, %v1726, 0.0
    %1731 = vadd.xlane.f32.xlu0 %v1730
    %v1732 = vpop.xlane.xlu0 %1731
    %v1733 = vmul.f32 %v1729, 0.015873017
    %v1734 = vmul.f32 %v1732, 0.015873017
    %v1735 = vrsqrt.pop %v1733
    %v1736 = vmul.f32 %v1733, %v1735
    %vm1737 = vcmp.eq.f32.partialorder %v1733, inf
    %v1738 = vsel %vm1737, %v1733, %v1736
    %vm1739 = vcmp.eq.f32.partialorder %v1733, 0.0
    %v1740 = vand.u32 %v1733, 2147483648
    %v1741 = vsel %vm1739, %v1740, %v1738
    %v1742 = vrsqrt.pop %v1734
    %v1743 = vmul.f32 %v1734, %v1742
    %vm1744 = vcmp.eq.f32.partialorder %v1734, inf
    %v1745 = vsel %vm1744, %v1734, %v1743
    %vm1746 = vcmp.eq.f32.partialorder %v1734, 0.0
    %v1747 = vand.u32 %v1734, 2147483648
    %v1748 = vsel %vm1746, %v1747, %v1745
    %v1749 = vadd.f32 %v1741, 10000.0
    %v1750 = vadd.f32 %v1748, 10000.0
    %v1751 = vrcp.pop %v1749
    %v1752 = vrcp.pop %v1750
    %v1753 = vmul.f32 %v1723, %v1751
    %v1754 = vmul.f32 %v1724, %v1752
    %v1755 = vadd.f32 %v1753, 1.0
    %v1756 = vadd.f32 %v1754, 1.0
    %v1757 = vpack.c.bf16 %v1756, %v1755
    %v1758 = vld [vmem:[#allocation2 + $0xc] sm:$0xf]
    %v1759 = vld [vmem:[#allocation2 + $0x2c] sm:$0xf]
    %v1760 = vld [vmem:[#allocation2 + $0x4c] sm:$0xf]
    %v1761 = vld [vmem:[#allocation2 + $0x6c] sm:$0xf]
    %v1762 = vld [vmem:[#allocation2 + $0x8c] sm:$0xf]
    %v1763 = vld [vmem:[#allocation2 + $0xac] sm:$0xf]
    %v1764 = vld [vmem:[#allocation2 + $0xcc] sm:$0xf]
    %v1765 = vld [vmem:[#allocation2 + $0xec] sm:$0xf]
    %v1766 = vld [vmem:[%s5 + $0x3] sm:$0x1]
    %v1768 = vlaneseq
    %v1769 = vshrl.u32 %v1768, 7
    %v1770 = vsub.s32 0, %v1769
    %v1771 = vrot.slane %v1766, %v1770
    %v1781 = vunpack.c.l.b16 %v1758
    %v1782 = vunpack.c.l.b16 %v1759
    %v1783 = vunpack.c.l.b16 %v1760
    %v1784 = vunpack.c.l.b16 %v1761
    %v1785 = vunpack.c.l.b16 %v1762
    %v1786 = vunpack.c.l.b16 %v1763
    %v1787 = vunpack.c.l.b16 %v1764
    %v1788 = vunpack.c.l.b16 %v1765
    %v1789 = vpack.c.b16 %v1782, %v1781
    %v1790 = vpack.c.b16 %v1784, %v1783
    %v1791 = vpack.c.b16 %v1786, %v1785
    %v1792 = vpack.c.b16 %v1788, %v1787
    %v1798 = vsel %vm135, %v1757, 0
    %1800 = vmatprep.subr.bf16.mxu0 0
    %1801 = vmatpush1.bf16.msra.mxu0 %v1789
    %1802 = vmatprep.subr.bf16.mxu0 0
    %1803 = vmatpush1.bf16.msra.mxu0 %v1790
    %1804 = vmatprep.subr.bf16.mxu0 0
    %1805 = vmatpush1.bf16.msra.mxu0 %v1791
    %1806 = vmatprep.subr.bf16.mxu0 0
    %1807 = vmatpush1.bf16.msra.mxu0 %v1792
    %1808 = vmatprep.subr.bf16.mxu0 0
    %1809 = vmatpush1.bf16.msra.mxu0 0
    %1810 = vmatprep.subr.bf16.mxu0 0
    %1811 = vmatpush1.bf16.msra.mxu0 0
    %1812 = vmatprep.subr.bf16.mxu0 0
    %1813 = vmatpush1.bf16.msra.mxu0 0
    %1814 = vmatprep.subr.bf16.mxu0 0
    %1815 = vmatpush1.bf16.msra.mxu0 0
    %1816 = vmatprep.subr.bf16.mxu0 0
    %1817 = vmatpush1.bf16.msra.mxu0 0
    %1818 = vmatprep.subr.bf16.mxu0 0
    %1819 = vmatpush1.bf16.msra.mxu0 0
    %1820 = vmatprep.subr.bf16.mxu0 0
    %1821 = vmatpush1.bf16.msra.mxu0 0
    %1822 = vmatprep.subr.bf16.mxu0 0
    %1823 = vmatpush1.bf16.msra.mxu0 0
    %1824 = vmatprep.subr.bf16.mxu0 0
    %1825 = vmatpush1.bf16.msra.mxu0 0
    %1826 = vmatprep.subr.bf16.mxu0 0
    %1827 = vmatpush1.bf16.msra.mxu0 0
    %1828 = vmatprep.subr.bf16.mxu0 0
    %1829 = vmatpush1.bf16.msra.mxu0 0
    %1830 = vmatprep.subr.bf16.mxu0 0
    %1831 = vmatpush1.bf16.msra.mxu0 0
    %1832 = vmatprep.mubr.bf16.mxu0 0
    %1833 = vmatmul.mubr.bf16.gmra.mrb[0].mxu0 %v1798
    %v1834 = vpop.f32.mrb[0].mxu0
    %v1835 = vadd.f32 %v1771, %v1834
    %v1836 = vpop.f32.mrb[0].mxu0
    %v1837 = vpop.f32.mrb[0].mxu0
    %v1838 = vadd.f32 %v1771, %v1837
    %v1839 = vpop.f32.mrb[0].mxu0
    %1840 = vdwg.mxu0
    %v1841 = vmax.f32 %v1835, 0.0
    %v1842 = vmax.f32 %v1838, 0.0
    %v1843 = vpack.c.bf16 %v1842, %v1841
    %v1844 = vld [vmem:[#allocation7] sm:$0xf]
    %v1845 = vld [vmem:[#allocation7 + $0x4] sm:$0xf]
    %v1846 = vld [vmem:[#allocation7 + $0x8] sm:$0xf]
    %v1847 = vld [vmem:[#allocation7 + $0xc] sm:$0xf]
    %v1848 = vld [vmem:[#allocation7 + $0x10] sm:$0xf]
    %v1849 = vld [vmem:[#allocation7 + $0x14] sm:$0xf]
    %v1850 = vld [vmem:[#allocation7 + $0x18] sm:$0xf]
    %v1851 = vld [vmem:[#allocation7 + $0x1c] sm:$0xf]
    %v1852 = vld [vmem:[#allocation7 + $0x20] sm:$0xf]
    %v1853 = vld [vmem:[#allocation7 + $0x24] sm:$0xf]
    %v1854 = vld [vmem:[#allocation7 + $0x28] sm:$0xf]
    %v1855 = vld [vmem:[#allocation7 + $0x2c] sm:$0xf]
    %v1856 = vld [vmem:[#allocation7 + $0x30] sm:$0xf]
    %v1857 = vld [vmem:[#allocation7 + $0x34] sm:$0xf]
    %v1858 = vld [vmem:[#allocation7 + $0x38] sm:$0xf]
    %v1859 = vld [vmem:[#allocation7 + $0x3c] sm:$0xf]
    %v1876 = vunpack.c.l.b16 %v1844
    %v1877 = vunpack.c.l.b16 %v1845
    %v1878 = vunpack.c.l.b16 %v1846
    %v1879 = vunpack.c.l.b16 %v1847
    %v1880 = vunpack.c.l.b16 %v1848
    %v1881 = vunpack.c.l.b16 %v1849
    %v1882 = vunpack.c.l.b16 %v1850
    %v1883 = vunpack.c.l.b16 %v1851
    %v1884 = vunpack.c.l.b16 %v1852
    %v1885 = vunpack.c.l.b16 %v1853
    %v1886 = vunpack.c.l.b16 %v1854
    %v1887 = vunpack.c.l.b16 %v1855
    %v1888 = vunpack.c.l.b16 %v1856
    %v1889 = vunpack.c.l.b16 %v1857
    %v1890 = vunpack.c.l.b16 %v1858
    %v1891 = vunpack.c.l.b16 %v1859
    %v1892 = vpack.c.b16 %v1877, %v1876
    %v1893 = vpack.c.b16 %v1879, %v1878
    %v1894 = vpack.c.b16 %v1881, %v1880
    %v1895 = vpack.c.b16 %v1883, %v1882
    %v1896 = vpack.c.b16 %v1885, %v1884
    %v1897 = vpack.c.b16 %v1887, %v1886
    %v1898 = vpack.c.b16 %v1889, %v1888
    %v1899 = vpack.c.b16 %v1891, %v1890
    %1908 = vmatprep.subr.bf16.mxu0 0
    %1909 = vmatpush1.bf16.msra.mxu0 %v1892
    %1910 = vmatprep.subr.bf16.mxu0 0
    %1911 = vmatpush1.bf16.msra.mxu0 %v1893
    %1912 = vmatprep.subr.bf16.mxu0 0
    %1913 = vmatpush1.bf16.msra.mxu0 %v1894
    %1914 = vmatprep.subr.bf16.mxu0 0
    %1915 = vmatpush1.bf16.msra.mxu0 %v1895
    %1916 = vmatprep.subr.bf16.mxu0 0
    %1917 = vmatpush1.bf16.msra.mxu0 %v1896
    %1918 = vmatprep.subr.bf16.mxu0 0
    %1919 = vmatpush1.bf16.msra.mxu0 %v1897
    %1920 = vmatprep.subr.bf16.mxu0 0
    %1921 = vmatpush1.bf16.msra.mxu0 %v1898
    %1922 = vmatprep.subr.bf16.mxu0 0
    %1923 = vmatpush1.bf16.msra.mxu0 %v1899
    %1924 = vmatprep.subr.bf16.mxu0 0
    %1925 = vmatpush1.bf16.msra.mxu0 0
    %1926 = vmatprep.subr.bf16.mxu0 0
    %1927 = vmatpush1.bf16.msra.mxu0 0
    %1928 = vmatprep.subr.bf16.mxu0 0
    %1929 = vmatpush1.bf16.msra.mxu0 0
    %1930 = vmatprep.subr.bf16.mxu0 0
    %1931 = vmatpush1.bf16.msra.mxu0 0
    %1932 = vmatprep.subr.bf16.mxu0 0
    %1933 = vmatpush1.bf16.msra.mxu0 0
    %1934 = vmatprep.subr.bf16.mxu0 0
    %1935 = vmatpush1.bf16.msra.mxu0 0
    %1936 = vmatprep.subr.bf16.mxu0 0
    %1937 = vmatpush1.bf16.msra.mxu0 0
    %1938 = vmatprep.subr.bf16.mxu0 0
    %1939 = vmatpush1.bf16.msra.mxu0 0
    %1940 = vmatprep.mubr.bf16.mxu0 0
    %1941 = vmatmul.mubr.bf16.gmra.mrb[0].mxu0 %v1843
    %v1942 = vpop.f32.mrb[0].mxu0
    %v1943 = vadd.f32 0.0, %v1942
    %v1944 = vpop.f32.mrb[0].mxu0
    %v1945 = vpop.f32.mrb[0].mxu0
    %v1946 = vadd.f32 0.0, %v1945
    %v1947 = vpop.f32.mrb[0].mxu0
    %1948 = vdwg.mxu0
    %v1949 = vadd.f32 %v1713, %v1943
    %v1950 = vadd.f32 %v1714, %v1946
    %v1951 = vld [vmem:[%s5 + $0x4] sm:$0x1]
    %v1953 = vlaneseq
    %v1954 = vshrl.u32 %v1953, 7
    %v1955 = vsub.s32 0, %v1954
    %v1956 = vrot.slane %v1951, %v1955
    %v1958 = vadd.f32 %v1949, %v1956
    %v1959 = vadd.f32 %v1950, %v1956
    %v1960 = vsel %vm135, %v1958, 0.0
    %1961 = vadd.xlane.f32.xlu0 %v1960
    %v1962 = vpop.xlane.xlu0 %1961
    %v1963 = vsel %vm135, %v1959, 0.0
    %1964 = vadd.xlane.f32.xlu0 %v1963
    %v1965 = vpop.xlane.xlu0 %1964
    %v1966 = vmul.f32 %v1962, %v188
    %v1967 = vmul.f32 %v1965, %v188
    %v1968 = vsub.f32 %v1958, %v1966
    %v1969 = vsub.f32 %v1959, %v1967
    %v1970 = vmul.f32 %v1968, %v1968
    %v1971 = vmul.f32 %v1969, %v1969
    %v1972 = vsel %vm135, %v1970, 0.0
    %1973 = vadd.xlane.f32.xlu0 %v1972
    %v1974 = vpop.xlane.xlu0 %1973
    %v1975 = vsel %vm135, %v1971, 0.0
    %1976 = vadd.xlane.f32.xlu0 %v1975
    %v1977 = vpop.xlane.xlu0 %1976
    %v1978 = vmul.f32 %v1974, 0.015873017
    %v1979 = vmul.f32 %v1977, 0.015873017
    %v1980 = vrsqrt.pop %v1978
    %v1981 = vmul.f32 %v1978, %v1980
    %vm1982 = vcmp.eq.f32.partialorder %v1978, inf
    %v1983 = vsel %vm1982, %v1978, %v1981
    %vm1984 = vcmp.eq.f32.partialorder %v1978, 0.0
    %v1985 = vand.u32 %v1978, 2147483648
    %v1986 = vsel %vm1984, %v1985, %v1983
    %v1987 = vrsqrt.pop %v1979
    %v1988 = vmul.f32 %v1979, %v1987
    %vm1989 = vcmp.eq.f32.partialorder %v1979, inf
    %v1990 = vsel %vm1989, %v1979, %v1988
    %vm1991 = vcmp.eq.f32.partialorder %v1979, 0.0
    %v1992 = vand.u32 %v1979, 2147483648
    %v1993 = vsel %vm1991, %v1992, %v1990
    %v1994 = vadd.f32 %v1986, 10000.0
    %v1995 = vadd.f32 %v1993, 10000.0
    %v1996 = vrcp.pop %v1994
    %v1997 = vrcp.pop %v1995
    %v1998 = vmul.f32 %v1968, %v1996
    %v1999 = vmul.f32 %v1969, %v1997
    %v2000 = vadd.f32 %v1998, 1.0
    %v2001 = vadd.f32 %v1999, 1.0
    %v2002 = vpack.c.bf16 %v2001, %v2000
    %v2003 = vld [vmem:[#allocation2 + $0x10] sm:$0xff]
    %v2004 = vld [vmem:[#allocation2 + $0x30] sm:$0xff]
    %v2005 = vld [vmem:[#allocation2 + $0x50] sm:$0xff]
    %v2006 = vld [vmem:[#allocation2 + $0x70] sm:$0xff]
    %v2007 = vld [vmem:[#allocation2 + $0x90] sm:$0xff]
    %v2008 = vld [vmem:[#allocation2 + $0xb0] sm:$0xff]
    %v2009 = vld [vmem:[#allocation2 + $0xd0] sm:$0xff]
    %v2010 = vld [vmem:[#allocation2 + $0xf0] sm:$0xff]
    %v2011 = vld [vmem:[%s5 + $0x4] sm:$0x3]
    %v2013 = vlaneseq
    %v2014 = vshrl.u32 %v2013, 7
    %v2015 = vsub.s32 0, %v2014
    %v2016 = vrot.slane %v2011, %v2015
    %v2017 = vlaneseq
    %v2018 = vshrl.u32 %v2017, 7
    %v2019 = vsub.s32 1, %v2018
    %v2020 = vrot.slane %v2011, %v2019
    %v2029 = vunpack.c.l.b16 %v2003
    %v2030 = vunpack.c.h.b16 %v2003
    %v2031 = vunpack.c.l.b16 %v2004
    %v2032 = vunpack.c.h.b16 %v2004
    %v2033 = vunpack.c.l.b16 %v2005
    %v2034 = vunpack.c.h.b16 %v2005
    %v2035 = vunpack.c.l.b16 %v2006
    %v2036 = vunpack.c.h.b16 %v2006
    %v2037 = vunpack.c.l.b16 %v2007
    %v2038 = vunpack.c.h.b16 %v2007
    %v2039 = vunpack.c.l.b16 %v2008
    %v2040 = vunpack.c.h.b16 %v2008
    %v2041 = vunpack.c.l.b16 %v2009
    %v2042 = vunpack.c.h.b16 %v2009
    %v2043 = vunpack.c.l.b16 %v2010
    %v2044 = vunpack.c.h.b16 %v2010
    %v2045 = vpack.c.b16 %v2031, %v2029
    %v2046 = vpack.c.b16 %v2032, %v2030
    %v2047 = vpack.c.b16 %v2035, %v2033
    %v2048 = vpack.c.b16 %v2036, %v2034
    %v2049 = vpack.c.b16 %v2039, %v2037
    %v2050 = vpack.c.b16 %v2040, %v2038
    %v2051 = vpack.c.b16 %v2043, %v2041
    %v2052 = vpack.c.b16 %v2044, %v2042
    %2061 = vrot.lane.b32.xlu0 %v2016, 64
    %v2062 = vpop.permute.xlu0 %2061
    %2063 = vrot.lane.b32.xlu0 %v2020, 64
    %v2064 = vpop.permute.xlu0 %2063
    %v2065 = vsel %vm135, %v2062, %v2064
    %v2069 = vsel %vm135, %v2002, 0
    %2071 = vmatprep.subr.bf16.mxu0 %v2046
    %2072 = vmatpush1.bf16.msra.mxu0 %v2045
    %2073 = vmatprep.subr.bf16.mxu0 %v2048
    %2074 = vmatpush1.bf16.msra.mxu0 %v2047
    %2075 = vmatprep.subr.bf16.mxu0 %v2050
    %2076 = vmatpush1.bf16.msra.mxu0 %v2049
    %2077 = vmatprep.subr.bf16.mxu0 %v2052
    %2078 = vmatpush1.bf16.msra.mxu0 %v2051
    %2079 = vmatprep.subr.bf16.mxu0 0
    %2080 = vmatpush1.bf16.msra.mxu0 0
    %2081 = vmatprep.subr.bf16.mxu0 0
    %2082 = vmatpush1.bf16.msra.mxu0 0
    %2083 = vmatprep.subr.bf16.mxu0 0
    %2084 = vmatpush1.bf16.msra.mxu0 0
    %2085 = vmatprep.subr.bf16.mxu0 0
    %2086 = vmatpush1.bf16.msra.mxu0 0
    %2087 = vmatprep.subr.bf16.mxu0 0
    %2088 = vmatpush1.bf16.msra.mxu0 0
    %2089 = vmatprep.subr.bf16.mxu0 0
    %2090 = vmatpush1.bf16.msra.mxu0 0
    %2091 = vmatprep.subr.bf16.mxu0 0
    %2092 = vmatpush1.bf16.msra.mxu0 0
    %2093 = vmatprep.subr.bf16.mxu0 0
    %2094 = vmatpush1.bf16.msra.mxu0 0
    %2095 = vmatprep.subr.bf16.mxu0 0
    %2096 = vmatpush1.bf16.msra.mxu0 0
    %2097 = vmatprep.subr.bf16.mxu0 0
    %2098 = vmatpush1.bf16.msra.mxu0 0
    %2099 = vmatprep.subr.bf16.mxu0 0
    %2100 = vmatpush1.bf16.msra.mxu0 0
    %2101 = vmatprep.subr.bf16.mxu0 0
    %2102 = vmatpush1.bf16.msra.mxu0 0
    %2103 = vmatprep.mubr.bf16.mxu0 0
    %2104 = vmatmul.mubr.bf16.gmra.mrb[0].mxu0 %v2069
    %v2105 = vpop.f32.mrb[0].mxu0
    %v2106 = vadd.f32 %v2065, %v2105
    %v2107 = vpop.f32.mrb[0].mxu0
    %v2108 = vadd.f32 %v2064, %v2107
    %v2109 = vpop.f32.mrb[0].mxu0
    %v2110 = vadd.f32 %v2065, %v2109
    %v2111 = vpop.f32.mrb[0].mxu0
    %v2112 = vadd.f32 %v2064, %v2111
    %2113 = vdwg.mxu0
    %v2114 = vld [vmem:[#allocation2 + $0x14] sm:$0xf]
    %v2115 = vld [vmem:[#allocation2 + $0x34] sm:$0xf]
    %v2116 = vld [vmem:[#allocation2 + $0x54] sm:$0xf]
    %v2117 = vld [vmem:[#allocation2 + $0x74] sm:$0xf]
    %v2118 = vld [vmem:[#allocation2 + $0x94] sm:$0xf]
    %v2119 = vld [vmem:[#allocation2 + $0xb4] sm:$0xf]
    %v2120 = vld [vmem:[#allocation2 + $0xd4] sm:$0xf]
    %v2121 = vld [vmem:[#allocation2 + $0xf4] sm:$0xf]
    %v2122 = vld [vmem:[%s5 + $0x6] sm:$0x1]
    %2125 = vrot.lane.b32.xlu0 %v2106, 112
    %v2126 = vpop.permute.xlu0 %2125
    %2127 = vrot.lane.b32.xlu0 %v2110, 112
    %v2128 = vpop.permute.xlu0 %2127
    %2131 = vrot.lane.b32.xlu0 %v2106, 96
    %v2132 = vpop.permute.xlu0 %2131
    %2133 = vrot.lane.b32.xlu0 %v2110, 96
    %v2134 = vpop.permute.xlu0 %2133
    %2137 = vrot.lane.b32.xlu0 %v2106, 80
    %v2138 = vpop.permute.xlu0 %2137
    %2139 = vrot.lane.b32.xlu0 %v2110, 80
    %v2140 = vpop.permute.xlu0 %2139
    %v2143 = vpack.c.bf16 %v2110, %v2106
    %v2144 = vpack.c.bf16 %v2128, %v2126
    %v2145 = vpack.c.bf16 %v2134, %v2132
    %v2146 = vpack.c.bf16 %v2140, %v2138
    %2149 = vrot.lane.b32.xlu0 %v2108, 112
    %v2150 = vpop.permute.xlu0 %2149
    %2151 = vrot.lane.b32.xlu0 %v2112, 112
    %v2152 = vpop.permute.xlu0 %2151
    %2155 = vrot.lane.b32.xlu0 %v2108, 96
    %v2156 = vpop.permute.xlu0 %2155
    %2157 = vrot.lane.b32.xlu0 %v2112, 96
    %v2158 = vpop.permute.xlu0 %2157
    %2161 = vrot.lane.b32.xlu0 %v2108, 80
    %v2162 = vpop.permute.xlu0 %2161
    %2163 = vrot.lane.b32.xlu0 %v2112, 80
    %v2164 = vpop.permute.xlu0 %2163
    %v2167 = vpack.c.bf16 %v2112, %v2108
    %v2168 = vpack.c.bf16 %v2152, %v2150
    %v2169 = vpack.c.bf16 %v2158, %v2156
    %v2170 = vpack.c.bf16 %v2164, %v2162
    %2172 = vrot.lane.b32.xlu0 %v2143, 64
    %v2173 = vpop.permute.xlu0 %2172
    %v2175 = vsel %vm392, %v2143, 0
    %v2178 = vsel %vm392, %v2173, 0
    %2180 = vmatprep.subr.bf16.mxu0 0
    %2181 = vmatpush1.bf16.xpose.msra.mxu0 %v2178
    %2182 = vmatprep.subr.bf16.mxu0 0
    %2183 = vmatpush1.bf16.xpose.msra.mxu0 0
    %2184 = vmatprep.subr.bf16.mxu0 0
    %2185 = vmatpush1.bf16.xpose.msra.mxu0 0
    %2186 = vmatprep.subr.bf16.mxu0 0
    %2187 = vmatpush1.bf16.xpose.msra.mxu0 0
    %2188 = vmatprep.subr.bf16.mxu0 0
    %2189 = vmatpush1.bf16.xpose.msra.mxu0 0
    %2190 = vmatprep.subr.bf16.mxu0 0
    %2191 = vmatpush1.bf16.xpose.msra.mxu0 0
    %2192 = vmatprep.subr.bf16.mxu0 0
    %2193 = vmatpush1.bf16.xpose.msra.mxu0 0
    %2194 = vmatprep.subr.bf16.mxu0 0
    %2195 = vmatpush1.bf16.xpose.msra.mxu0 0
    %2196 = vmatprep.subr.bf16.mxu0 0
    %2197 = vmatpush1.bf16.xpose.msra.mxu0 0
    %2198 = vmatprep.subr.bf16.mxu0 0
    %2199 = vmatpush1.bf16.xpose.msra.mxu0 0
    %2200 = vmatprep.subr.bf16.mxu0 0
    %2201 = vmatpush1.bf16.xpose.msra.mxu0 0
    %2202 = vmatprep.subr.bf16.mxu0 0
    %2203 = vmatpush1.bf16.xpose.msra.mxu0 0
    %2204 = vmatprep.subr.bf16.mxu0 0
    %2205 = vmatpush1.bf16.xpose.msra.mxu0 0
    %2206 = vmatprep.subr.bf16.mxu0 0
    %2207 = vmatpush1.bf16.xpose.msra.mxu0 0
    %2208 = vmatprep.subr.bf16.mxu0 0
    %2209 = vmatpush1.bf16.xpose.msra.mxu0 0
    %2210 = vmatprep.subr.bf16.mxu0 0
    %2211 = vmatpush1.bf16.xpose.msra.mxu0 0
    %2212 = vmatprep.mubr.bf16.mxu0 0
    %2213 = vmatmul.mubr.bf16.gmra.mrb[0].mxu0 %v2175
    %v2214 = vpop.f32.mrb[0].mxu0
    %v2215 = vadd.f32 %v70, %v2214
    %v2216 = vpop.f32.mrb[0].mxu0
    %v2217 = vpop.f32.mrb[0].mxu0
    %v2218 = vadd.f32 %v71, %v2217
    %v2219 = vpop.f32.mrb[0].mxu0
    %2220 = vdwg.mxu0
    %2222 = vrot.lane.b32.xlu0 %v2144, 64
    %v2223 = vpop.permute.xlu0 %2222
    %v2225 = vsel %vm392, %v2144, 0
    %v2228 = vsel %vm392, %v2223, 0
    %2230 = vmatprep.subr.bf16.mxu0 0
    %2231 = vmatpush1.bf16.xpose.msra.mxu0 %v2228
    %2232 = vmatprep.subr.bf16.mxu0 0
    %2233 = vmatpush1.bf16.xpose.msra.mxu0 0
    %2234 = vmatprep.subr.bf16.mxu0 0
    %2235 = vmatpush1.bf16.xpose.msra.mxu0 0
    %2236 = vmatprep.subr.bf16.mxu0 0
    %2237 = vmatpush1.bf16.xpose.msra.mxu0 0
    %2238 = vmatprep.subr.bf16.mxu0 0
    %2239 = vmatpush1.bf16.xpose.msra.mxu0 0
    %2240 = vmatprep.subr.bf16.mxu0 0
    %2241 = vmatpush1.bf16.xpose.msra.mxu0 0
    %2242 = vmatprep.subr.bf16.mxu0 0
    %2243 = vmatpush1.bf16.xpose.msra.mxu0 0
    %2244 = vmatprep.subr.bf16.mxu0 0
    %2245 = vmatpush1.bf16.xpose.msra.mxu0 0
    %2246 = vmatprep.subr.bf16.mxu0 0
    %2247 = vmatpush1.bf16.xpose.msra.mxu0 0
    %2248 = vmatprep.subr.bf16.mxu0 0
    %2249 = vmatpush1.bf16.xpose.msra.mxu0 0
    %2250 = vmatprep.subr.bf16.mxu0 0
    %2251 = vmatpush1.bf16.xpose.msra.mxu0 0
    %2252 = vmatprep.subr.bf16.mxu0 0
    %2253 = vmatpush1.bf16.xpose.msra.mxu0 0
    %2254 = vmatprep.subr.bf16.mxu0 0
    %2255 = vmatpush1.bf16.xpose.msra.mxu0 0
    %2256 = vmatprep.subr.bf16.mxu0 0
    %2257 = vmatpush1.bf16.xpose.msra.mxu0 0
    %2258 = vmatprep.subr.bf16.mxu0 0
    %2259 = vmatpush1.bf16.xpose.msra.mxu0 0
    %2260 = vmatprep.subr.bf16.mxu0 0
    %2261 = vmatpush1.bf16.xpose.msra.mxu0 0
    %2262 = vmatprep.mubr.bf16.mxu0 0
    %2263 = vmatmul.mubr.bf16.gmra.mrb[0].mxu0 %v2225
    %v2264 = vpop.f32.mrb[0].mxu0
    %v2265 = vadd.f32 %v70, %v2264
    %v2266 = vpop.f32.mrb[0].mxu0
    %v2267 = vpop.f32.mrb[0].mxu0
    %v2268 = vadd.f32 %v71, %v2267
    %v2269 = vpop.f32.mrb[0].mxu0
    %2270 = vdwg.mxu0
    %2272 = vrot.lane.b32.xlu0 %v2145, 64
    %v2273 = vpop.permute.xlu0 %2272
    %v2275 = vsel %vm392, %v2145, 0
    %v2278 = vsel %vm392, %v2273, 0
    %2280 = vmatprep.subr.bf16.mxu0 0
    %2281 = vmatpush1.bf16.xpose.msra.mxu0 %v2278
    %2282 = vmatprep.subr.bf16.mxu0 0
    %2283 = vmatpush1.bf16.xpose.msra.mxu0 0
    %2284 = vmatprep.subr.bf16.mxu0 0
    %2285 = vmatpush1.bf16.xpose.msra.mxu0 0
    %2286 = vmatprep.subr.bf16.mxu0 0
    %2287 = vmatpush1.bf16.xpose.msra.mxu0 0
    %2288 = vmatprep.subr.bf16.mxu0 0
    %2289 = vmatpush1.bf16.xpose.msra.mxu0 0
    %2290 = vmatprep.subr.bf16.mxu0 0
    %2291 = vmatpush1.bf16.xpose.msra.mxu0 0
    %2292 = vmatprep.subr.bf16.mxu0 0
    %2293 = vmatpush1.bf16.xpose.msra.mxu0 0
    %2294 = vmatprep.subr.bf16.mxu0 0
    %2295 = vmatpush1.bf16.xpose.msra.mxu0 0
    %2296 = vmatprep.subr.bf16.mxu0 0
    %2297 = vmatpush1.bf16.xpose.msra.mxu0 0
    %2298 = vmatprep.subr.bf16.mxu0 0
    %2299 = vmatpush1.bf16.xpose.msra.mxu0 0
    %2300 = vmatprep.subr.bf16.mxu0 0
    %2301 = vmatpush1.bf16.xpose.msra.mxu0 0
    %2302 = vmatprep.subr.bf16.mxu0 0
    %2303 = vmatpush1.bf16.xpose.msra.mxu0 0
    %2304 = vmatprep.subr.bf16.mxu0 0
    %2305 = vmatpush1.bf16.xpose.msra.mxu0 0
    %2306 = vmatprep.subr.bf16.mxu0 0
    %2307 = vmatpush1.bf16.xpose.msra.mxu0 0
    %2308 = vmatprep.subr.bf16.mxu0 0
    %2309 = vmatpush1.bf16.xpose.msra.mxu0 0
    %2310 = vmatprep.subr.bf16.mxu0 0
    %2311 = vmatpush1.bf16.xpose.msra.mxu0 0
    %2312 = vmatprep.mubr.bf16.mxu0 0
    %2313 = vmatmul.mubr.bf16.gmra.mrb[0].mxu0 %v2275
    %v2314 = vpop.f32.mrb[0].mxu0
    %v2315 = vadd.f32 %v70, %v2314
    %v2316 = vpop.f32.mrb[0].mxu0
    %v2317 = vpop.f32.mrb[0].mxu0
    %v2318 = vadd.f32 %v71, %v2317
    %v2319 = vpop.f32.mrb[0].mxu0
    %2320 = vdwg.mxu0
    %2322 = vrot.lane.b32.xlu0 %v2146, 64
    %v2323 = vpop.permute.xlu0 %2322
    %v2325 = vsel %vm392, %v2146, 0
    %v2328 = vsel %vm392, %v2323, 0
    %2330 = vmatprep.subr.bf16.mxu0 0
    %2331 = vmatpush1.bf16.xpose.msra.mxu0 %v2328
    %2332 = vmatprep.subr.bf16.mxu0 0
    %2333 = vmatpush1.bf16.xpose.msra.mxu0 0
    %2334 = vmatprep.subr.bf16.mxu0 0
    %2335 = vmatpush1.bf16.xpose.msra.mxu0 0
    %2336 = vmatprep.subr.bf16.mxu0 0
    %2337 = vmatpush1.bf16.xpose.msra.mxu0 0
    %2338 = vmatprep.subr.bf16.mxu0 0
    %2339 = vmatpush1.bf16.xpose.msra.mxu0 0
    %2340 = vmatprep.subr.bf16.mxu0 0
    %2341 = vmatpush1.bf16.xpose.msra.mxu0 0
    %2342 = vmatprep.subr.bf16.mxu0 0
    %2343 = vmatpush1.bf16.xpose.msra.mxu0 0
    %2344 = vmatprep.subr.bf16.mxu0 0
    %2345 = vmatpush1.bf16.xpose.msra.mxu0 0
    %2346 = vmatprep.subr.bf16.mxu0 0
    %2347 = vmatpush1.bf16.xpose.msra.mxu0 0
    %2348 = vmatprep.subr.bf16.mxu0 0
    %2349 = vmatpush1.bf16.xpose.msra.mxu0 0
    %2350 = vmatprep.subr.bf16.mxu0 0
    %2351 = vmatpush1.bf16.xpose.msra.mxu0 0
    %2352 = vmatprep.subr.bf16.mxu0 0
    %2353 = vmatpush1.bf16.xpose.msra.mxu0 0
    %2354 = vmatprep.subr.bf16.mxu0 0
    %2355 = vmatpush1.bf16.xpose.msra.mxu0 0
    %2356 = vmatprep.subr.bf16.mxu0 0
    %2357 = vmatpush1.bf16.xpose.msra.mxu0 0
    %2358 = vmatprep.subr.bf16.mxu0 0
    %2359 = vmatpush1.bf16.xpose.msra.mxu0 0
    %2360 = vmatprep.subr.bf16.mxu0 0
    %2361 = vmatpush1.bf16.xpose.msra.mxu0 0
    %2362 = vmatprep.mubr.bf16.mxu0 0
    %2363 = vmatmul.mubr.bf16.gmra.mrb[0].mxu0 %v2325
    %v2364 = vpop.f32.mrb[0].mxu0
    %v2365 = vadd.f32 %v70, %v2364
    %v2366 = vpop.f32.mrb[0].mxu0
    %v2367 = vpop.f32.mrb[0].mxu0
    %v2368 = vadd.f32 %v71, %v2367
    %v2369 = vpop.f32.mrb[0].mxu0
    %2370 = vdwg.mxu0
    %v2371 = vsel %vm392, %v2215, -inf
    %2372 = vmax.xlane.f32.xlu0 %v2371
    %v2373 = vpop.xlane.xlu0 %2372
    %v2374 = vsel %vm392, %v2218, -inf
    %2375 = vmax.xlane.f32.xlu0 %v2374
    %v2376 = vpop.xlane.xlu0 %2375
    %v2377 = vsel %vm392, %v2265, -inf
    %2378 = vmax.xlane.f32.xlu0 %v2377
    %v2379 = vpop.xlane.xlu0 %2378
    %v2380 = vsel %vm392, %v2268, -inf
    %2381 = vmax.xlane.f32.xlu0 %v2380
    %v2382 = vpop.xlane.xlu0 %2381
    %v2383 = vsel %vm392, %v2315, -inf
    %2384 = vmax.xlane.f32.xlu0 %v2383
    %v2385 = vpop.xlane.xlu0 %2384
    %v2386 = vsel %vm392, %v2318, -inf
    %2387 = vmax.xlane.f32.xlu0 %v2386
    %v2388 = vpop.xlane.xlu0 %2387
    %v2389 = vsel %vm392, %v2365, -inf
    %2390 = vmax.xlane.f32.xlu0 %v2389
    %v2391 = vpop.xlane.xlu0 %2390
    %v2392 = vsel %vm392, %v2368, -inf
    %2393 = vmax.xlane.f32.xlu0 %v2392
    %v2394 = vpop.xlane.xlu0 %2393
    %v2395 = vsub.f32 %v2215, %v2373
    %v2396 = vsub.f32 %v2218, %v2376
    %v2397 = vsub.f32 %v2265, %v2379
    %v2398 = vsub.f32 %v2268, %v2382
    %v2399 = vsub.f32 %v2315, %v2385
    %v2400 = vsub.f32 %v2318, %v2388
    %v2401 = vsub.f32 %v2365, %v2391
    %v2402 = vsub.f32 %v2368, %v2394
    %v2403 = vmul.f32 %v2395, 1.442695
    %v2404 = vpow.pop %v2403
    %v2405 = vmul.f32 %v2396, 1.442695
    %v2406 = vpow.pop %v2405
    %v2407 = vmul.f32 %v2397, 1.442695
    %v2408 = vpow.pop %v2407
    %v2409 = vmul.f32 %v2398, 1.442695
    %v2410 = vpow.pop %v2409
    %v2411 = vmul.f32 %v2399, 1.442695
    %v2412 = vpow.pop %v2411
    %v2413 = vmul.f32 %v2400, 1.442695
    %v2414 = vpow.pop %v2413
    %v2415 = vmul.f32 %v2401, 1.442695
    %v2416 = vpow.pop %v2415
    %v2417 = vmul.f32 %v2402, 1.442695
    %v2418 = vpow.pop %v2417
    %v2419 = vsel %vm392, %v2404, 0.0
    %2420 = vadd.xlane.f32.xlu0 %v2419
    %v2421 = vpop.xlane.xlu0 %2420
    %v2422 = vsel %vm392, %v2406, 0.0
    %2423 = vadd.xlane.f32.xlu0 %v2422
    %v2424 = vpop.xlane.xlu0 %2423
    %v2425 = vsel %vm392, %v2408, 0.0
    %2426 = vadd.xlane.f32.xlu0 %v2425
    %v2427 = vpop.xlane.xlu0 %2426
    %v2428 = vsel %vm392, %v2410, 0.0
    %2429 = vadd.xlane.f32.xlu0 %v2428
    %v2430 = vpop.xlane.xlu0 %2429
    %v2431 = vsel %vm392, %v2412, 0.0
    %2432 = vadd.xlane.f32.xlu0 %v2431
    %v2433 = vpop.xlane.xlu0 %2432
    %v2434 = vsel %vm392, %v2414, 0.0
    %2435 = vadd.xlane.f32.xlu0 %v2434
    %v2436 = vpop.xlane.xlu0 %2435
    %v2437 = vsel %vm392, %v2416, 0.0
    %2438 = vadd.xlane.f32.xlu0 %v2437
    %v2439 = vpop.xlane.xlu0 %2438
    %v2440 = vsel %vm392, %v2418, 0.0
    %2441 = vadd.xlane.f32.xlu0 %v2440
    %v2442 = vpop.xlane.xlu0 %2441
    %v2443 = vrcp.pop %v2421
    %v2444 = vrcp.pop %v2424
    %v2445 = vrcp.pop %v2427
    %v2446 = vrcp.pop %v2430
    %v2447 = vrcp.pop %v2433
    %v2448 = vrcp.pop %v2436
    %v2449 = vrcp.pop %v2439
    %v2450 = vrcp.pop %v2442
    %v2451 = vmul.f32 %v2404, %v2443
    %v2452 = vmul.f32 %v2406, %v2444
    %v2453 = vmul.f32 %v2408, %v2445
    %v2454 = vmul.f32 %v2410, %v2446
    %v2455 = vmul.f32 %v2412, %v2447
    %v2456 = vmul.f32 %v2414, %v2448
    %v2457 = vmul.f32 %v2416, %v2449
    %v2458 = vmul.f32 %v2418, %v2450
    %v2459 = vpack.c.bf16 %v2452, %v2451
    %v2460 = vpack.c.bf16 %v2454, %v2453
    %v2461 = vpack.c.bf16 %v2456, %v2455
    %v2462 = vpack.c.bf16 %v2458, %v2457
    %v2464 = vsel %vm392, %v2459, 0
    %2466 = vmatprep.subr.bf16.mxu0 0
    %2467 = vmatpush1.bf16.msra.mxu0 %v2167
    %2468 = vmatprep.subr.bf16.mxu0 0
    %2469 = vmatpush1.bf16.msra.mxu0 0
    %2470 = vmatprep.subr.bf16.mxu0 0
    %2471 = vmatpush1.bf16.msra.mxu0 0
    %2472 = vmatprep.subr.bf16.mxu0 0
    %2473 = vmatpush1.bf16.msra.mxu0 0
    %2474 = vmatprep.subr.bf16.mxu0 0
    %2475 = vmatpush1.bf16.msra.mxu0 0
    %2476 = vmatprep.subr.bf16.mxu0 0
    %2477 = vmatpush1.bf16.msra.mxu0 0
    %2478 = vmatprep.subr.bf16.mxu0 0
    %2479 = vmatpush1.bf16.msra.mxu0 0
    %2480 = vmatprep.subr.bf16.mxu0 0
    %2481 = vmatpush1.bf16.msra.mxu0 0
    %2482 = vmatprep.subr.bf16.mxu0 0
    %2483 = vmatpush1.bf16.msra.mxu0 0
    %2484 = vmatprep.subr.bf16.mxu0 0
    %2485 = vmatpush1.bf16.msra.mxu0 0
    %2486 = vmatprep.subr.bf16.mxu0 0
    %2487 = vmatpush1.bf16.msra.mxu0 0
    %2488 = vmatprep.subr.bf16.mxu0 0
    %2489 = vmatpush1.bf16.msra.mxu0 0
    %2490 = vmatprep.subr.bf16.mxu0 0
    %2491 = vmatpush1.bf16.msra.mxu0 0
    %2492 = vmatprep.subr.bf16.mxu0 0
    %2493 = vmatpush1.bf16.msra.mxu0 0
    %2494 = vmatprep.subr.bf16.mxu0 0
    %2495 = vmatpush1.bf16.msra.mxu0 0
    %2496 = vmatprep.subr.bf16.mxu0 0
    %2497 = vmatpush1.bf16.msra.mxu0 0
    %2498 = vmatprep.mubr.bf16.mxu0 0
    %2499 = vmatmul.mubr.bf16.gmra.mrb[0].mxu0 %v2464
    %v2500 = vpop.f32.mrb[0].mxu0
    %v2501 = vadd.f32 0.0, %v2500
    %v2502 = vpop.f32.mrb[0].mxu0
    %v2503 = vpop.f32.mrb[0].mxu0
    %v2504 = vadd.f32 0.0, %v2503
    %v2505 = vpop.f32.mrb[0].mxu0
    %2506 = vdwg.mxu0
    %v2508 = vsel %vm392, %v2460, 0
    %2510 = vmatprep.subr.bf16.mxu0 0
    %2511 = vmatpush1.bf16.msra.mxu0 %v2168
    %2512 = vmatprep.subr.bf16.mxu0 0
    %2513 = vmatpush1.bf16.msra.mxu0 0
    %2514 = vmatprep.subr.bf16.mxu0 0
    %2515 = vmatpush1.bf16.msra.mxu0 0
    %2516 = vmatprep.subr.bf16.mxu0 0
    %2517 = vmatpush1.bf16.msra.mxu0 0
    %2518 = vmatprep.subr.bf16.mxu0 0
    %2519 = vmatpush1.bf16.msra.mxu0 0
    %2520 = vmatprep.subr.bf16.mxu0 0
    %2521 = vmatpush1.bf16.msra.mxu0 0
    %2522 = vmatprep.subr.bf16.mxu0 0
    %2523 = vmatpush1.bf16.msra.mxu0 0
    %2524 = vmatprep.subr.bf16.mxu0 0
    %2525 = vmatpush1.bf16.msra.mxu0 0
    %2526 = vmatprep.subr.bf16.mxu0 0
    %2527 = vmatpush1.bf16.msra.mxu0 0
    %2528 = vmatprep.subr.bf16.mxu0 0
    %2529 = vmatpush1.bf16.msra.mxu0 0
    %2530 = vmatprep.subr.bf16.mxu0 0
    %2531 = vmatpush1.bf16.msra.mxu0 0
    %2532 = vmatprep.subr.bf16.mxu0 0
    %2533 = vmatpush1.bf16.msra.mxu0 0
    %2534 = vmatprep.subr.bf16.mxu0 0
    %2535 = vmatpush1.bf16.msra.mxu0 0
    %2536 = vmatprep.subr.bf16.mxu0 0
    %2537 = vmatpush1.bf16.msra.mxu0 0
    %2538 = vmatprep.subr.bf16.mxu0 0
    %2539 = vmatpush1.bf16.msra.mxu0 0
    %2540 = vmatprep.subr.bf16.mxu0 0
    %2541 = vmatpush1.bf16.msra.mxu0 0
    %2542 = vmatprep.mubr.bf16.mxu0 0
    %2543 = vmatmul.mubr.bf16.gmra.mrb[0].mxu0 %v2508
    %v2544 = vpop.f32.mrb[0].mxu0
    %v2545 = vadd.f32 0.0, %v2544
    %v2546 = vpop.f32.mrb[0].mxu0
    %v2547 = vpop.f32.mrb[0].mxu0
    %v2548 = vadd.f32 0.0, %v2547
    %v2549 = vpop.f32.mrb[0].mxu0
    %2550 = vdwg.mxu0
    %v2552 = vsel %vm392, %v2461, 0
    %2554 = vmatprep.subr.bf16.mxu0 0
    %2555 = vmatpush1.bf16.msra.mxu0 %v2169
    %2556 = vmatprep.subr.bf16.mxu0 0
    %2557 = vmatpush1.bf16.msra.mxu0 0
    %2558 = vmatprep.subr.bf16.mxu0 0
    %2559 = vmatpush1.bf16.msra.mxu0 0
    %2560 = vmatprep.subr.bf16.mxu0 0
    %2561 = vmatpush1.bf16.msra.mxu0 0
    %2562 = vmatprep.subr.bf16.mxu0 0
    %2563 = vmatpush1.bf16.msra.mxu0 0
    %2564 = vmatprep.subr.bf16.mxu0 0
    %2565 = vmatpush1.bf16.msra.mxu0 0
    %2566 = vmatprep.subr.bf16.mxu0 0
    %2567 = vmatpush1.bf16.msra.mxu0 0
    %2568 = vmatprep.subr.bf16.mxu0 0
    %2569 = vmatpush1.bf16.msra.mxu0 0
    %2570 = vmatprep.subr.bf16.mxu0 0
    %2571 = vmatpush1.bf16.msra.mxu0 0
    %2572 = vmatprep.subr.bf16.mxu0 0
    %2573 = vmatpush1.bf16.msra.mxu0 0
    %2574 = vmatprep.subr.bf16.mxu0 0
    %2575 = vmatpush1.bf16.msra.mxu0 0
    %2576 = vmatprep.subr.bf16.mxu0 0
    %2577 = vmatpush1.bf16.msra.mxu0 0
    %2578 = vmatprep.subr.bf16.mxu0 0
    %2579 = vmatpush1.bf16.msra.mxu0 0
    %2580 = vmatprep.subr.bf16.mxu0 0
    %2581 = vmatpush1.bf16.msra.mxu0 0
    %2582 = vmatprep.subr.bf16.mxu0 0
    %2583 = vmatpush1.bf16.msra.mxu0 0
    %2584 = vmatprep.subr.bf16.mxu0 0
    %2585 = vmatpush1.bf16.msra.mxu0 0
    %2586 = vmatprep.mubr.bf16.mxu0 0
    %2587 = vmatmul.mubr.bf16.gmra.mrb[0].mxu0 %v2552
    %v2588 = vpop.f32.mrb[0].mxu0
    %v2589 = vadd.f32 0.0, %v2588
    %v2590 = vpop.f32.mrb[0].mxu0
    %v2591 = vpop.f32.mrb[0].mxu0
    %v2592 = vadd.f32 0.0, %v2591
    %v2593 = vpop.f32.mrb[0].mxu0
    %2594 = vdwg.mxu0
    %v2596 = vsel %vm392, %v2462, 0
    %2598 = vmatprep.subr.bf16.mxu0 0
    %2599 = vmatpush1.bf16.msra.mxu0 %v2170
    %2600 = vmatprep.subr.bf16.mxu0 0
    %2601 = vmatpush1.bf16.msra.mxu0 0
    %2602 = vmatprep.subr.bf16.mxu0 0
    %2603 = vmatpush1.bf16.msra.mxu0 0
    %2604 = vmatprep.subr.bf16.mxu0 0
    %2605 = vmatpush1.bf16.msra.mxu0 0
    %2606 = vmatprep.subr.bf16.mxu0 0
    %2607 = vmatpush1.bf16.msra.mxu0 0
    %2608 = vmatprep.subr.bf16.mxu0 0
    %2609 = vmatpush1.bf16.msra.mxu0 0
    %2610 = vmatprep.subr.bf16.mxu0 0
    %2611 = vmatpush1.bf16.msra.mxu0 0
    %2612 = vmatprep.subr.bf16.mxu0 0
    %2613 = vmatpush1.bf16.msra.mxu0 0
    %2614 = vmatprep.subr.bf16.mxu0 0
    %2615 = vmatpush1.bf16.msra.mxu0 0
    %2616 = vmatprep.subr.bf16.mxu0 0
    %2617 = vmatpush1.bf16.msra.mxu0 0
    %2618 = vmatprep.subr.bf16.mxu0 0
    %2619 = vmatpush1.bf16.msra.mxu0 0
    %2620 = vmatprep.subr.bf16.mxu0 0
    %2621 = vmatpush1.bf16.msra.mxu0 0
    %2622 = vmatprep.subr.bf16.mxu0 0
    %2623 = vmatpush1.bf16.msra.mxu0 0
    %2624 = vmatprep.subr.bf16.mxu0 0
    %2625 = vmatpush1.bf16.msra.mxu0 0
    %2626 = vmatprep.subr.bf16.mxu0 0
    %2627 = vmatpush1.bf16.msra.mxu0 0
    %2628 = vmatprep.subr.bf16.mxu0 0
    %2629 = vmatpush1.bf16.msra.mxu0 0
    %2630 = vmatprep.mubr.bf16.mxu0 0
    %2631 = vmatmul.mubr.bf16.gmra.mrb[0].mxu0 %v2596
    %v2632 = vpop.f32.mrb[0].mxu0
    %v2633 = vadd.f32 0.0, %v2632
    %v2634 = vpop.f32.mrb[0].mxu0
    %v2635 = vpop.f32.mrb[0].mxu0
    %v2636 = vadd.f32 0.0, %v2635
    %v2637 = vpop.f32.mrb[0].mxu0
    %2638 = vdwg.mxu0
    %2641 = vrot.lane.b32.xlu0 %v2545, 16
    %v2642 = vpop.permute.xlu0 %2641
    %2643 = vrot.lane.b32.xlu0 %v2548, 16
    %v2644 = vpop.permute.xlu0 %2643
    %2649 = vrot.lane.b32.xlu0 %v2589, 32
    %v2650 = vpop.permute.xlu0 %2649
    %2651 = vrot.lane.b32.xlu0 %v2592, 32
    %v2652 = vpop.permute.xlu0 %2651
    %2657 = vrot.lane.b32.xlu0 %v2633, 48
    %v2658 = vpop.permute.xlu0 %2657
    %2659 = vrot.lane.b32.xlu0 %v2636, 48
    %v2660 = vpop.permute.xlu0 %2659
    %v2663 = vsel %vm392, %v2501, %v2642
    %v2664 = vsel %vm392, %v2504, %v2644
    %v2665 = vsel %vm884, %v2663, %v2650
    %v2666 = vsel %vm884, %v2664, %v2652
    %v2667 = vsel %vm887, %v2665, %v2658
    %v2668 = vsel %vm887, %v2666, %v2660
    %v2669 = vpack.c.bf16 %v2668, %v2667
    %v2671 = vlaneseq
    %v2672 = vshrl.u32 %v2671, 7
    %v2673 = vsub.s32 0, %v2672
    %v2674 = vrot.slane %v2122, %v2673
    %v2684 = vunpack.c.l.b16 %v2114
    %v2685 = vunpack.c.l.b16 %v2115
    %v2686 = vunpack.c.l.b16 %v2116
    %v2687 = vunpack.c.l.b16 %v2117
    %v2688 = vunpack.c.l.b16 %v2118
    %v2689 = vunpack.c.l.b16 %v2119
    %v2690 = vunpack.c.l.b16 %v2120
    %v2691 = vunpack.c.l.b16 %v2121
    %v2692 = vpack.c.b16 %v2685, %v2684
    %v2693 = vpack.c.b16 %v2687, %v2686
    %v2694 = vpack.c.b16 %v2689, %v2688
    %v2695 = vpack.c.b16 %v2691, %v2690
    %2696 = vrot.lane.b32.xlu0 %v2692, 64
    %v2697 = vpop.permute.xlu0 %2696
    %2698 = vrot.lane.b32.xlu0 %v2693, 64
    %v2699 = vpop.permute.xlu0 %2698
    %2700 = vrot.lane.b32.xlu0 %v2694, 64
    %v2701 = vpop.permute.xlu0 %2700
    %2702 = vrot.lane.b32.xlu0 %v2695, 64
    %v2703 = vpop.permute.xlu0 %2702
    %v2709 = vsel %vm135, %v2669, 0
    %2711 = vmatprep.subr.bf16.mxu0 0
    %2712 = vmatpush1.bf16.msra.mxu0 %v2697
    %2713 = vmatprep.subr.bf16.mxu0 0
    %2714 = vmatpush1.bf16.msra.mxu0 %v2699
    %2715 = vmatprep.subr.bf16.mxu0 0
    %2716 = vmatpush1.bf16.msra.mxu0 %v2701
    %2717 = vmatprep.subr.bf16.mxu0 0
    %2718 = vmatpush1.bf16.msra.mxu0 %v2703
    %2719 = vmatprep.subr.bf16.mxu0 0
    %2720 = vmatpush1.bf16.msra.mxu0 0
    %2721 = vmatprep.subr.bf16.mxu0 0
    %2722 = vmatpush1.bf16.msra.mxu0 0
    %2723 = vmatprep.subr.bf16.mxu0 0
    %2724 = vmatpush1.bf16.msra.mxu0 0
    %2725 = vmatprep.subr.bf16.mxu0 0
    %2726 = vmatpush1.bf16.msra.mxu0 0
    %2727 = vmatprep.subr.bf16.mxu0 0
    %2728 = vmatpush1.bf16.msra.mxu0 0
    %2729 = vmatprep.subr.bf16.mxu0 0
    %2730 = vmatpush1.bf16.msra.mxu0 0
    %2731 = vmatprep.subr.bf16.mxu0 0
    %2732 = vmatpush1.bf16.msra.mxu0 0
    %2733 = vmatprep.subr.bf16.mxu0 0
    %2734 = vmatpush1.bf16.msra.mxu0 0
    %2735 = vmatprep.subr.bf16.mxu0 0
    %2736 = vmatpush1.bf16.msra.mxu0 0
    %2737 = vmatprep.subr.bf16.mxu0 0
    %2738 = vmatpush1.bf16.msra.mxu0 0
    %2739 = vmatprep.subr.bf16.mxu0 0
    %2740 = vmatpush1.bf16.msra.mxu0 0
    %2741 = vmatprep.subr.bf16.mxu0 0
    %2742 = vmatpush1.bf16.msra.mxu0 0
    %2743 = vmatprep.mubr.bf16.mxu0 0
    %2744 = vmatmul.mubr.bf16.gmra.mrb[0].mxu0 %v2709
    %v2745 = vpop.f32.mrb[0].mxu0
    %v2746 = vadd.f32 %v2674, %v2745
    %v2747 = vpop.f32.mrb[0].mxu0
    %v2748 = vpop.f32.mrb[0].mxu0
    %v2749 = vadd.f32 %v2674, %v2748
    %v2750 = vpop.f32.mrb[0].mxu0
    %2751 = vdwg.mxu0
    %v2752 = vadd.f32 %v1958, %v2746
    %v2753 = vadd.f32 %v1959, %v2749
    %v2754 = vsel %vm135, %v2752, 0.0
    %2755 = vadd.xlane.f32.xlu0 %v2754
    %v2756 = vpop.xlane.xlu0 %2755
    %v2757 = vsel %vm135, %v2753, 0.0
    %2758 = vadd.xlane.f32.xlu0 %v2757
    %v2759 = vpop.xlane.xlu0 %2758
    %v2760 = vmul.f32 %v2756, %v188
    %v2761 = vmul.f32 %v2759, %v188
    %v2762 = vsub.f32 %v2752, %v2760
    %v2763 = vsub.f32 %v2753, %v2761
    %v2764 = vmul.f32 %v2762, %v2762
    %v2765 = vmul.f32 %v2763, %v2763
    %v2766 = vsel %vm135, %v2764, 0.0
    %2767 = vadd.xlane.f32.xlu0 %v2766
    %v2768 = vpop.xlane.xlu0 %2767
    %v2769 = vsel %vm135, %v2765, 0.0
    %2770 = vadd.xlane.f32.xlu0 %v2769
    %v2771 = vpop.xlane.xlu0 %2770
    %v2772 = vmul.f32 %v2768, 0.015873017
    %v2773 = vmul.f32 %v2771, 0.015873017
    %v2774 = vrsqrt.pop %v2772
    %v2775 = vmul.f32 %v2772, %v2774
    %vm2776 = vcmp.eq.f32.partialorder %v2772, inf
    %v2777 = vsel %vm2776, %v2772, %v2775
    %vm2778 = vcmp.eq.f32.partialorder %v2772, 0.0
    %v2779 = vand.u32 %v2772, 2147483648
    %v2780 = vsel %vm2778, %v2779, %v2777
    %v2781 = vrsqrt.pop %v2773
    %v2782 = vmul.f32 %v2773, %v2781
    %vm2783 = vcmp.eq.f32.partialorder %v2773, inf
    %v2784 = vsel %vm2783, %v2773, %v2782
    %vm2785 = vcmp.eq.f32.partialorder %v2773, 0.0
    %v2786 = vand.u32 %v2773, 2147483648
    %v2787 = vsel %vm2785, %v2786, %v2784
    %v2788 = vadd.f32 %v2780, 10000.0
    %v2789 = vadd.f32 %v2787, 10000.0
    %v2790 = vrcp.pop %v2788
    %v2791 = vrcp.pop %v2789
    %v2792 = vmul.f32 %v2762, %v2790
    %v2793 = vmul.f32 %v2763, %v2791
    %v2794 = vadd.f32 %v2792, 1.0
    %v2795 = vadd.f32 %v2793, 1.0
    %v2796 = vpack.c.bf16 %v2795, %v2794
    %v2797 = vld [vmem:[#allocation2 + $0x18] sm:$0xf]
    %v2798 = vld [vmem:[#allocation2 + $0x38] sm:$0xf]
    %v2799 = vld [vmem:[#allocation2 + $0x58] sm:$0xf]
    %v2800 = vld [vmem:[#allocation2 + $0x78] sm:$0xf]
    %v2801 = vld [vmem:[#allocation2 + $0x98] sm:$0xf]
    %v2802 = vld [vmem:[#allocation2 + $0xb8] sm:$0xf]
    %v2803 = vld [vmem:[#allocation2 + $0xd8] sm:$0xf]
    %v2804 = vld [vmem:[#allocation2 + $0xf8] sm:$0xf]
    %v2805 = vld [vmem:[%s5 + $0x6] sm:$0x1]
    %v2807 = vlaneseq
    %v2808 = vshrl.u32 %v2807, 7
    %v2809 = vsub.s32 0, %v2808
    %v2810 = vrot.slane %v2805, %v2809
    %v2819 = vunpack.c.l.b16 %v2797
    %v2820 = vunpack.c.l.b16 %v2798
    %v2821 = vunpack.c.l.b16 %v2799
    %v2822 = vunpack.c.l.b16 %v2800
    %v2823 = vunpack.c.l.b16 %v2801
    %v2824 = vunpack.c.l.b16 %v2802
    %v2825 = vunpack.c.l.b16 %v2803
    %v2826 = vunpack.c.l.b16 %v2804
    %v2827 = vpack.c.b16 %v2820, %v2819
    %v2828 = vpack.c.b16 %v2822, %v2821
    %v2829 = vpack.c.b16 %v2824, %v2823
    %v2830 = vpack.c.b16 %v2826, %v2825
    %2835 = vrot.lane.b32.xlu0 %v2810, 64
    %v2836 = vpop.permute.xlu0 %2835
    %v2839 = vsel %vm135, %v2796, 0
    %2841 = vmatprep.subr.bf16.mxu0 0
    %2842 = vmatpush1.bf16.msra.mxu0 %v2827
    %2843 = vmatprep.subr.bf16.mxu0 0
    %2844 = vmatpush1.bf16.msra.mxu0 %v2828
    %2845 = vmatprep.subr.bf16.mxu0 0
    %2846 = vmatpush1.bf16.msra.mxu0 %v2829
    %2847 = vmatprep.subr.bf16.mxu0 0
    %2848 = vmatpush1.bf16.msra.mxu0 %v2830
    %2849 = vmatprep.subr.bf16.mxu0 0
    %2850 = vmatpush1.bf16.msra.mxu0 0
    %2851 = vmatprep.subr.bf16.mxu0 0
    %2852 = vmatpush1.bf16.msra.mxu0 0
    %2853 = vmatprep.subr.bf16.mxu0 0
    %2854 = vmatpush1.bf16.msra.mxu0 0
    %2855 = vmatprep.subr.bf16.mxu0 0
    %2856 = vmatpush1.bf16.msra.mxu0 0
    %2857 = vmatprep.subr.bf16.mxu0 0
    %2858 = vmatpush1.bf16.msra.mxu0 0
    %2859 = vmatprep.subr.bf16.mxu0 0
    %2860 = vmatpush1.bf16.msra.mxu0 0
    %2861 = vmatprep.subr.bf16.mxu0 0
    %2862 = vmatpush1.bf16.msra.mxu0 0
    %2863 = vmatprep.subr.bf16.mxu0 0
    %2864 = vmatpush1.bf16.msra.mxu0 0
    %2865 = vmatprep.subr.bf16.mxu0 0
    %2866 = vmatpush1.bf16.msra.mxu0 0
    %2867 = vmatprep.subr.bf16.mxu0 0
    %2868 = vmatpush1.bf16.msra.mxu0 0
    %2869 = vmatprep.subr.bf16.mxu0 0
    %2870 = vmatpush1.bf16.msra.mxu0 0
    %2871 = vmatprep.subr.bf16.mxu0 0
    %2872 = vmatpush1.bf16.msra.mxu0 0
    %2873 = vmatprep.mubr.bf16.mxu0 0
    %2874 = vmatmul.mubr.bf16.gmra.mrb[0].mxu0 %v2839
    %v2875 = vpop.f32.mrb[0].mxu0
    %v2876 = vadd.f32 %v2836, %v2875
    %v2877 = vpop.f32.mrb[0].mxu0
    %v2878 = vpop.f32.mrb[0].mxu0
    %v2879 = vadd.f32 %v2836, %v2878
    %v2880 = vpop.f32.mrb[0].mxu0
    %2881 = vdwg.mxu0
    %v2882 = vld [vmem:[%s5 + $0x7] sm:$0x1]
    %2885 = vrot.lane.b32.xlu0 %v2876, 112
    %v2886 = vpop.permute.xlu0 %2885
    %2887 = vrot.lane.b32.xlu0 %v2879, 112
    %v2888 = vpop.permute.xlu0 %2887
    %2891 = vrot.lane.b32.xlu0 %v2876, 96
    %v2892 = vpop.permute.xlu0 %2891
    %2893 = vrot.lane.b32.xlu0 %v2879, 96
    %v2894 = vpop.permute.xlu0 %2893
    %2897 = vrot.lane.b32.xlu0 %v2876, 80
    %v2898 = vpop.permute.xlu0 %2897
    %2899 = vrot.lane.b32.xlu0 %v2879, 80
    %v2900 = vpop.permute.xlu0 %2899
    %v2903 = vpack.c.bf16 %v2879, %v2876
    %v2904 = vpack.c.bf16 %v2888, %v2886
    %v2905 = vpack.c.bf16 %v2894, %v2892
    %v2906 = vpack.c.bf16 %v2900, %v2898
    %2909 = vrot.lane.b32.xlu0 %v176, 112
    %v2910 = vpop.permute.xlu0 %2909
    %2911 = vrot.lane.b32.xlu0 %v180, 112
    %v2912 = vpop.permute.xlu0 %2911
    %2915 = vrot.lane.b32.xlu0 %v176, 96
    %v2916 = vpop.permute.xlu0 %2915
    %2917 = vrot.lane.b32.xlu0 %v180, 96
    %v2918 = vpop.permute.xlu0 %2917
    %2921 = vrot.lane.b32.xlu0 %v176, 80
    %v2922 = vpop.permute.xlu0 %2921
    %2923 = vrot.lane.b32.xlu0 %v180, 80
    %v2924 = vpop.permute.xlu0 %2923
    %v2927 = vpack.c.bf16 %v180, %v176
    %v2928 = vpack.c.bf16 %v2912, %v2910
    %v2929 = vpack.c.bf16 %v2918, %v2916
    %v2930 = vpack.c.bf16 %v2924, %v2922
    %v2932 = vsel %vm392, %v2903, 0
    %v2935 = vsel %vm392, %v2927, 0
    %2937 = vmatprep.subr.bf16.mxu0 0
    %2938 = vmatpush1.bf16.xpose.msra.mxu0 %v2935
    %2939 = vmatprep.subr.bf16.mxu0 0
    %2940 = vmatpush1.bf16.xpose.msra.mxu0 0
    %2941 = vmatprep.subr.bf16.mxu0 0
    %2942 = vmatpush1.bf16.xpose.msra.mxu0 0
    %2943 = vmatprep.subr.bf16.mxu0 0
    %2944 = vmatpush1.bf16.xpose.msra.mxu0 0
    %2945 = vmatprep.subr.bf16.mxu0 0
    %2946 = vmatpush1.bf16.xpose.msra.mxu0 0
    %2947 = vmatprep.subr.bf16.mxu0 0
    %2948 = vmatpush1.bf16.xpose.msra.mxu0 0
    %2949 = vmatprep.subr.bf16.mxu0 0
    %2950 = vmatpush1.bf16.xpose.msra.mxu0 0
    %2951 = vmatprep.subr.bf16.mxu0 0
    %2952 = vmatpush1.bf16.xpose.msra.mxu0 0
    %2953 = vmatprep.subr.bf16.mxu0 0
    %2954 = vmatpush1.bf16.xpose.msra.mxu0 0
    %2955 = vmatprep.subr.bf16.mxu0 0
    %2956 = vmatpush1.bf16.xpose.msra.mxu0 0
    %2957 = vmatprep.subr.bf16.mxu0 0
    %2958 = vmatpush1.bf16.xpose.msra.mxu0 0
    %2959 = vmatprep.subr.bf16.mxu0 0
    %2960 = vmatpush1.bf16.xpose.msra.mxu0 0
    %2961 = vmatprep.subr.bf16.mxu0 0
    %2962 = vmatpush1.bf16.xpose.msra.mxu0 0
    %2963 = vmatprep.subr.bf16.mxu0 0
    %2964 = vmatpush1.bf16.xpose.msra.mxu0 0
    %2965 = vmatprep.subr.bf16.mxu0 0
    %2966 = vmatpush1.bf16.xpose.msra.mxu0 0
    %2967 = vmatprep.subr.bf16.mxu0 0
    %2968 = vmatpush1.bf16.xpose.msra.mxu0 0
    %2969 = vmatprep.mubr.bf16.mxu0 0
    %2970 = vmatmul.mubr.bf16.gmra.mrb[0].mxu0 %v2932
    %v2971 = vpop.f32.mrb[0].mxu0
    %v2972 = vadd.f32 %v72, %v2971
    %v2973 = vpop.f32.mrb[0].mxu0
    %v2974 = vpop.f32.mrb[0].mxu0
    %v2975 = vadd.f32 %v73, %v2974
    %v2976 = vpop.f32.mrb[0].mxu0
    %2977 = vdwg.mxu0
    %v2979 = vsel %vm392, %v2904, 0
    %v2982 = vsel %vm392, %v2928, 0
    %2984 = vmatprep.subr.bf16.mxu0 0
    %2985 = vmatpush1.bf16.xpose.msra.mxu0 %v2982
    %2986 = vmatprep.subr.bf16.mxu0 0
    %2987 = vmatpush1.bf16.xpose.msra.mxu0 0
    %2988 = vmatprep.subr.bf16.mxu0 0
    %2989 = vmatpush1.bf16.xpose.msra.mxu0 0
    %2990 = vmatprep.subr.bf16.mxu0 0
    %2991 = vmatpush1.bf16.xpose.msra.mxu0 0
    %2992 = vmatprep.subr.bf16.mxu0 0
    %2993 = vmatpush1.bf16.xpose.msra.mxu0 0
    %2994 = vmatprep.subr.bf16.mxu0 0
    %2995 = vmatpush1.bf16.xpose.msra.mxu0 0
    %2996 = vmatprep.subr.bf16.mxu0 0
    %2997 = vmatpush1.bf16.xpose.msra.mxu0 0
    %2998 = vmatprep.subr.bf16.mxu0 0
    %2999 = vmatpush1.bf16.xpose.msra.mxu0 0
    %3000 = vmatprep.subr.bf16.mxu0 0
    %3001 = vmatpush1.bf16.xpose.msra.mxu0 0
    %3002 = vmatprep.subr.bf16.mxu0 0
    %3003 = vmatpush1.bf16.xpose.msra.mxu0 0
    %3004 = vmatprep.subr.bf16.mxu0 0
    %3005 = vmatpush1.bf16.xpose.msra.mxu0 0
    %3006 = vmatprep.subr.bf16.mxu0 0
    %3007 = vmatpush1.bf16.xpose.msra.mxu0 0
    %3008 = vmatprep.subr.bf16.mxu0 0
    %3009 = vmatpush1.bf16.xpose.msra.mxu0 0
    %3010 = vmatprep.subr.bf16.mxu0 0
    %3011 = vmatpush1.bf16.xpose.msra.mxu0 0
    %3012 = vmatprep.subr.bf16.mxu0 0
    %3013 = vmatpush1.bf16.xpose.msra.mxu0 0
    %3014 = vmatprep.subr.bf16.mxu0 0
    %3015 = vmatpush1.bf16.xpose.msra.mxu0 0
    %3016 = vmatprep.mubr.bf16.mxu0 0
    %3017 = vmatmul.mubr.bf16.gmra.mrb[0].mxu0 %v2979
    %v3018 = vpop.f32.mrb[0].mxu0
    %v3019 = vadd.f32 %v72, %v3018
    %v3020 = vpop.f32.mrb[0].mxu0
    %v3021 = vpop.f32.mrb[0].mxu0
    %v3022 = vadd.f32 %v73, %v3021
    %v3023 = vpop.f32.mrb[0].mxu0
    %3024 = vdwg.mxu0
    %v3026 = vsel %vm392, %v2905, 0
    %v3029 = vsel %vm392, %v2929, 0
    %3031 = vmatprep.subr.bf16.mxu0 0
    %3032 = vmatpush1.bf16.xpose.msra.mxu0 %v3029
    %3033 = vmatprep.subr.bf16.mxu0 0
    %3034 = vmatpush1.bf16.xpose.msra.mxu0 0
    %3035 = vmatprep.subr.bf16.mxu0 0
    %3036 = vmatpush1.bf16.xpose.msra.mxu0 0
    %3037 = vmatprep.subr.bf16.mxu0 0
    %3038 = vmatpush1.bf16.xpose.msra.mxu0 0
    %3039 = vmatprep.subr.bf16.mxu0 0
    %3040 = vmatpush1.bf16.xpose.msra.mxu0 0
    %3041 = vmatprep.subr.bf16.mxu0 0
    %3042 = vmatpush1.bf16.xpose.msra.mxu0 0
    %3043 = vmatprep.subr.bf16.mxu0 0
    %3044 = vmatpush1.bf16.xpose.msra.mxu0 0
    %3045 = vmatprep.subr.bf16.mxu0 0
    %3046 = vmatpush1.bf16.xpose.msra.mxu0 0
    %3047 = vmatprep.subr.bf16.mxu0 0
    %3048 = vmatpush1.bf16.xpose.msra.mxu0 0
    %3049 = vmatprep.subr.bf16.mxu0 0
    %3050 = vmatpush1.bf16.xpose.msra.mxu0 0
    %3051 = vmatprep.subr.bf16.mxu0 0
    %3052 = vmatpush1.bf16.xpose.msra.mxu0 0
    %3053 = vmatprep.subr.bf16.mxu0 0
    %3054 = vmatpush1.bf16.xpose.msra.mxu0 0
    %3055 = vmatprep.subr.bf16.mxu0 0
    %3056 = vmatpush1.bf16.xpose.msra.mxu0 0
    %3057 = vmatprep.subr.bf16.mxu0 0
    %3058 = vmatpush1.bf16.xpose.msra.mxu0 0
    %3059 = vmatprep.subr.bf16.mxu0 0
    %3060 = vmatpush1.bf16.xpose.msra.mxu0 0
    %3061 = vmatprep.subr.bf16.mxu0 0
    %3062 = vmatpush1.bf16.xpose.msra.mxu0 0
    %3063 = vmatprep.mubr.bf16.mxu0 0
    %3064 = vmatmul.mubr.bf16.gmra.mrb[0].mxu0 %v3026
    %v3065 = vpop.f32.mrb[0].mxu0
    %v3066 = vadd.f32 %v72, %v3065
    %v3067 = vpop.f32.mrb[0].mxu0
    %v3068 = vpop.f32.mrb[0].mxu0
    %v3069 = vadd.f32 %v73, %v3068
    %v3070 = vpop.f32.mrb[0].mxu0
    %3071 = vdwg.mxu0
    %v3073 = vsel %vm392, %v2906, 0
    %v3076 = vsel %vm392, %v2930, 0
    %3078 = vmatprep.subr.bf16.mxu0 0
    %3079 = vmatpush1.bf16.xpose.msra.mxu0 %v3076
    %3080 = vmatprep.subr.bf16.mxu0 0
    %3081 = vmatpush1.bf16.xpose.msra.mxu0 0
    %3082 = vmatprep.subr.bf16.mxu0 0
    %3083 = vmatpush1.bf16.xpose.msra.mxu0 0
    %3084 = vmatprep.subr.bf16.mxu0 0
    %3085 = vmatpush1.bf16.xpose.msra.mxu0 0
    %3086 = vmatprep.subr.bf16.mxu0 0
    %3087 = vmatpush1.bf16.xpose.msra.mxu0 0
    %3088 = vmatprep.subr.bf16.mxu0 0
    %3089 = vmatpush1.bf16.xpose.msra.mxu0 0
    %3090 = vmatprep.subr.bf16.mxu0 0
    %3091 = vmatpush1.bf16.xpose.msra.mxu0 0
    %3092 = vmatprep.subr.bf16.mxu0 0
    %3093 = vmatpush1.bf16.xpose.msra.mxu0 0
    %3094 = vmatprep.subr.bf16.mxu0 0
    %3095 = vmatpush1.bf16.xpose.msra.mxu0 0
    %3096 = vmatprep.subr.bf16.mxu0 0
    %3097 = vmatpush1.bf16.xpose.msra.mxu0 0
    %3098 = vmatprep.subr.bf16.mxu0 0
    %3099 = vmatpush1.bf16.xpose.msra.mxu0 0
    %3100 = vmatprep.subr.bf16.mxu0 0
    %3101 = vmatpush1.bf16.xpose.msra.mxu0 0
    %3102 = vmatprep.subr.bf16.mxu0 0
    %3103 = vmatpush1.bf16.xpose.msra.mxu0 0
    %3104 = vmatprep.subr.bf16.mxu0 0
    %3105 = vmatpush1.bf16.xpose.msra.mxu0 0
    %3106 = vmatprep.subr.bf16.mxu0 0
    %3107 = vmatpush1.bf16.xpose.msra.mxu0 0
    %3108 = vmatprep.subr.bf16.mxu0 0
    %3109 = vmatpush1.bf16.xpose.msra.mxu0 0
    %3110 = vmatprep.mubr.bf16.mxu0 0
    %3111 = vmatmul.mubr.bf16.gmra.mrb[0].mxu0 %v3073
    %v3112 = vpop.f32.mrb[0].mxu0
    %v3113 = vadd.f32 %v72, %v3112
    %v3114 = vpop.f32.mrb[0].mxu0
    %v3115 = vpop.f32.mrb[0].mxu0
    %v3116 = vadd.f32 %v73, %v3115
    %v3117 = vpop.f32.mrb[0].mxu0
    %3118 = vdwg.mxu0
    %v3119 = vsel %vm392, %v2972, -inf
    %3120 = vmax.xlane.f32.xlu0 %v3119
    %v3121 = vpop.xlane.xlu0 %3120
    %v3122 = vsel %vm392, %v2975, -inf
    %3123 = vmax.xlane.f32.xlu0 %v3122
    %v3124 = vpop.xlane.xlu0 %3123
    %v3125 = vsel %vm392, %v3019, -inf
    %3126 = vmax.xlane.f32.xlu0 %v3125
    %v3127 = vpop.xlane.xlu0 %3126
    %v3128 = vsel %vm392, %v3022, -inf
    %3129 = vmax.xlane.f32.xlu0 %v3128
    %v3130 = vpop.xlane.xlu0 %3129
    %v3131 = vsel %vm392, %v3066, -inf
    %3132 = vmax.xlane.f32.xlu0 %v3131
    %v3133 = vpop.xlane.xlu0 %3132
    %v3134 = vsel %vm392, %v3069, -inf
    %3135 = vmax.xlane.f32.xlu0 %v3134
    %v3136 = vpop.xlane.xlu0 %3135
    %v3137 = vsel %vm392, %v3113, -inf
    %3138 = vmax.xlane.f32.xlu0 %v3137
    %v3139 = vpop.xlane.xlu0 %3138
    %v3140 = vsel %vm392, %v3116, -inf
    %3141 = vmax.xlane.f32.xlu0 %v3140
    %v3142 = vpop.xlane.xlu0 %3141
    %v3143 = vsub.f32 %v2972, %v3121
    %v3144 = vsub.f32 %v2975, %v3124
    %v3145 = vsub.f32 %v3019, %v3127
    %v3146 = vsub.f32 %v3022, %v3130
    %v3147 = vsub.f32 %v3066, %v3133
    %v3148 = vsub.f32 %v3069, %v3136
    %v3149 = vsub.f32 %v3113, %v3139
    %v3150 = vsub.f32 %v3116, %v3142
    %v3151 = vmul.f32 %v3143, 1.442695
    %v3152 = vpow.pop %v3151
    %v3153 = vmul.f32 %v3144, 1.442695
    %v3154 = vpow.pop %v3153
    %v3155 = vmul.f32 %v3145, 1.442695
    %v3156 = vpow.pop %v3155
    %v3157 = vmul.f32 %v3146, 1.442695
    %v3158 = vpow.pop %v3157
    %v3159 = vmul.f32 %v3147, 1.442695
    %v3160 = vpow.pop %v3159
    %v3161 = vmul.f32 %v3148, 1.442695
    %v3162 = vpow.pop %v3161
    %v3163 = vmul.f32 %v3149, 1.442695
    %v3164 = vpow.pop %v3163
    %v3165 = vmul.f32 %v3150, 1.442695
    %v3166 = vpow.pop %v3165
    %v3167 = vsel %vm392, %v3152, 0.0
    %3168 = vadd.xlane.f32.xlu0 %v3167
    %v3169 = vpop.xlane.xlu0 %3168
    %v3170 = vsel %vm392, %v3154, 0.0
    %3171 = vadd.xlane.f32.xlu0 %v3170
    %v3172 = vpop.xlane.xlu0 %3171
    %v3173 = vsel %vm392, %v3156, 0.0
    %3174 = vadd.xlane.f32.xlu0 %v3173
    %v3175 = vpop.xlane.xlu0 %3174
    %v3176 = vsel %vm392, %v3158, 0.0
    %3177 = vadd.xlane.f32.xlu0 %v3176
    %v3178 = vpop.xlane.xlu0 %3177
    %v3179 = vsel %vm392, %v3160, 0.0
    %3180 = vadd.xlane.f32.xlu0 %v3179
    %v3181 = vpop.xlane.xlu0 %3180
    %v3182 = vsel %vm392, %v3162, 0.0
    %3183 = vadd.xlane.f32.xlu0 %v3182
    %v3184 = vpop.xlane.xlu0 %3183
    %v3185 = vsel %vm392, %v3164, 0.0
    %3186 = vadd.xlane.f32.xlu0 %v3185
    %v3187 = vpop.xlane.xlu0 %3186
    %v3188 = vsel %vm392, %v3166, 0.0
    %3189 = vadd.xlane.f32.xlu0 %v3188
    %v3190 = vpop.xlane.xlu0 %3189
    %v3191 = vrcp.pop %v3169
    %v3192 = vrcp.pop %v3172
    %v3193 = vrcp.pop %v3175
    %v3194 = vrcp.pop %v3178
    %v3195 = vrcp.pop %v3181
    %v3196 = vrcp.pop %v3184
    %v3197 = vrcp.pop %v3187
    %v3198 = vrcp.pop %v3190
    %v3199 = vmul.f32 %v3152, %v3191
    %v3200 = vmul.f32 %v3154, %v3192
    %v3201 = vmul.f32 %v3156, %v3193
    %v3202 = vmul.f32 %v3158, %v3194
    %v3203 = vmul.f32 %v3160, %v3195
    %v3204 = vmul.f32 %v3162, %v3196
    %v3205 = vmul.f32 %v3164, %v3197
    %v3206 = vmul.f32 %v3166, %v3198
    %v3207 = vpack.c.bf16 %v3200, %v3199
    %v3208 = vpack.c.bf16 %v3202, %v3201
    %v3209 = vpack.c.bf16 %v3204, %v3203
    %v3210 = vpack.c.bf16 %v3206, %v3205
    %3212 = vrot.lane.b32.xlu0 %v2927, 64
    %v3213 = vpop.permute.xlu0 %3212
    %v3216 = vsel %vm392, %v3207, 0
    %3218 = vmatprep.subr.bf16.mxu0 0
    %3219 = vmatpush1.bf16.msra.mxu0 %v3213
    %3220 = vmatprep.subr.bf16.mxu0 0
    %3221 = vmatpush1.bf16.msra.mxu0 0
    %3222 = vmatprep.subr.bf16.mxu0 0
    %3223 = vmatpush1.bf16.msra.mxu0 0
    %3224 = vmatprep.subr.bf16.mxu0 0
    %3225 = vmatpush1.bf16.msra.mxu0 0
    %3226 = vmatprep.subr.bf16.mxu0 0
    %3227 = vmatpush1.bf16.msra.mxu0 0
    %3228 = vmatprep.subr.bf16.mxu0 0
    %3229 = vmatpush1.bf16.msra.mxu0 0
    %3230 = vmatprep.subr.bf16.mxu0 0
    %3231 = vmatpush1.bf16.msra.mxu0 0
    %3232 = vmatprep.subr.bf16.mxu0 0
    %3233 = vmatpush1.bf16.msra.mxu0 0
    %3234 = vmatprep.subr.bf16.mxu0 0
    %3235 = vmatpush1.bf16.msra.mxu0 0
    %3236 = vmatprep.subr.bf16.mxu0 0
    %3237 = vmatpush1.bf16.msra.mxu0 0
    %3238 = vmatprep.subr.bf16.mxu0 0
    %3239 = vmatpush1.bf16.msra.mxu0 0
    %3240 = vmatprep.subr.bf16.mxu0 0
    %3241 = vmatpush1.bf16.msra.mxu0 0
    %3242 = vmatprep.subr.bf16.mxu0 0
    %3243 = vmatpush1.bf16.msra.mxu0 0
    %3244 = vmatprep.subr.bf16.mxu0 0
    %3245 = vmatpush1.bf16.msra.mxu0 0
    %3246 = vmatprep.subr.bf16.mxu0 0
    %3247 = vmatpush1.bf16.msra.mxu0 0
    %3248 = vmatprep.subr.bf16.mxu0 0
    %3249 = vmatpush1.bf16.msra.mxu0 0
    %3250 = vmatprep.mubr.bf16.mxu0 0
    %3251 = vmatmul.mubr.bf16.gmra.mrb[0].mxu0 %v3216
    %v3252 = vpop.f32.mrb[0].mxu0
    %v3253 = vadd.f32 0.0, %v3252
    %v3254 = vpop.f32.mrb[0].mxu0
    %v3255 = vpop.f32.mrb[0].mxu0
    %v3256 = vadd.f32 0.0, %v3255
    %v3257 = vpop.f32.mrb[0].mxu0
    %3258 = vdwg.mxu0
    %3260 = vrot.lane.b32.xlu0 %v2928, 64
    %v3261 = vpop.permute.xlu0 %3260
    %v3264 = vsel %vm392, %v3208, 0
    %3266 = vmatprep.subr.bf16.mxu0 0
    %3267 = vmatpush1.bf16.msra.mxu0 %v3261
    %3268 = vmatprep.subr.bf16.mxu0 0
    %3269 = vmatpush1.bf16.msra.mxu0 0
    %3270 = vmatprep.subr.bf16.mxu0 0
    %3271 = vmatpush1.bf16.msra.mxu0 0
    %3272 = vmatprep.subr.bf16.mxu0 0
    %3273 = vmatpush1.bf16.msra.mxu0 0
    %3274 = vmatprep.subr.bf16.mxu0 0
    %3275 = vmatpush1.bf16.msra.mxu0 0
    %3276 = vmatprep.subr.bf16.mxu0 0
    %3277 = vmatpush1.bf16.msra.mxu0 0
    %3278 = vmatprep.subr.bf16.mxu0 0
    %3279 = vmatpush1.bf16.msra.mxu0 0
    %3280 = vmatprep.subr.bf16.mxu0 0
    %3281 = vmatpush1.bf16.msra.mxu0 0
    %3282 = vmatprep.subr.bf16.mxu0 0
    %3283 = vmatpush1.bf16.msra.mxu0 0
    %3284 = vmatprep.subr.bf16.mxu0 0
    %3285 = vmatpush1.bf16.msra.mxu0 0
    %3286 = vmatprep.subr.bf16.mxu0 0
    %3287 = vmatpush1.bf16.msra.mxu0 0
    %3288 = vmatprep.subr.bf16.mxu0 0
    %3289 = vmatpush1.bf16.msra.mxu0 0
    %3290 = vmatprep.subr.bf16.mxu0 0
    %3291 = vmatpush1.bf16.msra.mxu0 0
    %3292 = vmatprep.subr.bf16.mxu0 0
    %3293 = vmatpush1.bf16.msra.mxu0 0
    %3294 = vmatprep.subr.bf16.mxu0 0
    %3295 = vmatpush1.bf16.msra.mxu0 0
    %3296 = vmatprep.subr.bf16.mxu0 0
    %3297 = vmatpush1.bf16.msra.mxu0 0
    %3298 = vmatprep.mubr.bf16.mxu0 0
    %3299 = vmatmul.mubr.bf16.gmra.mrb[0].mxu0 %v3264
    %v3300 = vpop.f32.mrb[0].mxu0
    %v3301 = vadd.f32 0.0, %v3300
    %v3302 = vpop.f32.mrb[0].mxu0
    %v3303 = vpop.f32.mrb[0].mxu0
    %v3304 = vadd.f32 0.0, %v3303
    %v3305 = vpop.f32.mrb[0].mxu0
    %3306 = vdwg.mxu0
    %3308 = vrot.lane.b32.xlu0 %v2929, 64
    %v3309 = vpop.permute.xlu0 %3308
    %v3312 = vsel %vm392, %v3209, 0
    %3314 = vmatprep.subr.bf16.mxu0 0
    %3315 = vmatpush1.bf16.msra.mxu0 %v3309
    %3316 = vmatprep.subr.bf16.mxu0 0
    %3317 = vmatpush1.bf16.msra.mxu0 0
    %3318 = vmatprep.subr.bf16.mxu0 0
    %3319 = vmatpush1.bf16.msra.mxu0 0
    %3320 = vmatprep.subr.bf16.mxu0 0
    %3321 = vmatpush1.bf16.msra.mxu0 0
    %3322 = vmatprep.subr.bf16.mxu0 0
    %3323 = vmatpush1.bf16.msra.mxu0 0
    %3324 = vmatprep.subr.bf16.mxu0 0
    %3325 = vmatpush1.bf16.msra.mxu0 0
    %3326 = vmatprep.subr.bf16.mxu0 0
    %3327 = vmatpush1.bf16.msra.mxu0 0
    %3328 = vmatprep.subr.bf16.mxu0 0
    %3329 = vmatpush1.bf16.msra.mxu0 0
    %3330 = vmatprep.subr.bf16.mxu0 0
    %3331 = vmatpush1.bf16.msra.mxu0 0
    %3332 = vmatprep.subr.bf16.mxu0 0
    %3333 = vmatpush1.bf16.msra.mxu0 0
    %3334 = vmatprep.subr.bf16.mxu0 0
    %3335 = vmatpush1.bf16.msra.mxu0 0
    %3336 = vmatprep.subr.bf16.mxu0 0
    %3337 = vmatpush1.bf16.msra.mxu0 0
    %3338 = vmatprep.subr.bf16.mxu0 0
    %3339 = vmatpush1.bf16.msra.mxu0 0
    %3340 = vmatprep.subr.bf16.mxu0 0
    %3341 = vmatpush1.bf16.msra.mxu0 0
    %3342 = vmatprep.subr.bf16.mxu0 0
    %3343 = vmatpush1.bf16.msra.mxu0 0
    %3344 = vmatprep.subr.bf16.mxu0 0
    %3345 = vmatpush1.bf16.msra.mxu0 0
    %3346 = vmatprep.mubr.bf16.mxu0 0
    %3347 = vmatmul.mubr.bf16.gmra.mrb[0].mxu0 %v3312
    %v3348 = vpop.f32.mrb[0].mxu0
    %v3349 = vadd.f32 0.0, %v3348
    %v3350 = vpop.f32.mrb[0].mxu0
    %v3351 = vpop.f32.mrb[0].mxu0
    %v3352 = vadd.f32 0.0, %v3351
    %v3353 = vpop.f32.mrb[0].mxu0
    %3354 = vdwg.mxu0
    %3356 = vrot.lane.b32.xlu0 %v2930, 64
    %v3357 = vpop.permute.xlu0 %3356
    %v3360 = vsel %vm392, %v3210, 0
    %3362 = vmatprep.subr.bf16.mxu0 0
    %3363 = vmatpush1.bf16.msra.mxu0 %v3357
    %3364 = vmatprep.subr.bf16.mxu0 0
    %3365 = vmatpush1.bf16.msra.mxu0 0
    %3366 = vmatprep.subr.bf16.mxu0 0
    %3367 = vmatpush1.bf16.msra.mxu0 0
    %3368 = vmatprep.subr.bf16.mxu0 0
    %3369 = vmatpush1.bf16.msra.mxu0 0
    %3370 = vmatprep.subr.bf16.mxu0 0
    %3371 = vmatpush1.bf16.msra.mxu0 0
    %3372 = vmatprep.subr.bf16.mxu0 0
    %3373 = vmatpush1.bf16.msra.mxu0 0
    %3374 = vmatprep.subr.bf16.mxu0 0
    %3375 = vmatpush1.bf16.msra.mxu0 0
    %3376 = vmatprep.subr.bf16.mxu0 0
    %3377 = vmatpush1.bf16.msra.mxu0 0
    %3378 = vmatprep.subr.bf16.mxu0 0
    %3379 = vmatpush1.bf16.msra.mxu0 0
    %3380 = vmatprep.subr.bf16.mxu0 0
    %3381 = vmatpush1.bf16.msra.mxu0 0
    %3382 = vmatprep.subr.bf16.mxu0 0
    %3383 = vmatpush1.bf16.msra.mxu0 0
    %3384 = vmatprep.subr.bf16.mxu0 0
    %3385 = vmatpush1.bf16.msra.mxu0 0
    %3386 = vmatprep.subr.bf16.mxu0 0
    %3387 = vmatpush1.bf16.msra.mxu0 0
    %3388 = vmatprep.subr.bf16.mxu0 0
    %3389 = vmatpush1.bf16.msra.mxu0 0
    %3390 = vmatprep.subr.bf16.mxu0 0
    %3391 = vmatpush1.bf16.msra.mxu0 0
    %3392 = vmatprep.subr.bf16.mxu0 0
    %3393 = vmatpush1.bf16.msra.mxu0 0
    %3394 = vmatprep.mubr.bf16.mxu0 0
    %3395 = vmatmul.mubr.bf16.gmra.mrb[0].mxu0 %v3360
    %v3396 = vpop.f32.mrb[0].mxu0
    %v3397 = vadd.f32 0.0, %v3396
    %v3398 = vpop.f32.mrb[0].mxu0
    %v3399 = vpop.f32.mrb[0].mxu0
    %v3400 = vadd.f32 0.0, %v3399
    %v3401 = vpop.f32.mrb[0].mxu0
    %3402 = vdwg.mxu0
    %3405 = vrot.lane.b32.xlu0 %v3301, 16
    %v3406 = vpop.permute.xlu0 %3405
    %3407 = vrot.lane.b32.xlu0 %v3304, 16
    %v3408 = vpop.permute.xlu0 %3407
    %3413 = vrot.lane.b32.xlu0 %v3349, 32
    %v3414 = vpop.permute.xlu0 %3413
    %3415 = vrot.lane.b32.xlu0 %v3352, 32
    %v3416 = vpop.permute.xlu0 %3415
    %3421 = vrot.lane.b32.xlu0 %v3397, 48
    %v3422 = vpop.permute.xlu0 %3421
    %3423 = vrot.lane.b32.xlu0 %v3400, 48
    %v3424 = vpop.permute.xlu0 %3423
    %v3427 = vsel %vm392, %v3253, %v3406
    %v3428 = vsel %vm392, %v3256, %v3408
    %v3429 = vsel %vm884, %v3427, %v3414
    %v3430 = vsel %vm884, %v3428, %v3416
    %v3431 = vsel %vm887, %v3429, %v3422
    %v3432 = vsel %vm887, %v3430, %v3424
    %v3433 = vpack.c.bf16 %v3432, %v3431
    %v3435 = vlaneseq
    %v3436 = vshrl.u32 %v3435, 7
    %v3437 = vsub.s32 0, %v3436
    %v3438 = vrot.slane %v2882, %v3437
    %3440 = vrot.lane.b32.xlu0 %v2827, 64
    %v3441 = vpop.permute.xlu0 %3440
    %3442 = vrot.lane.b32.xlu0 %v2828, 64
    %v3443 = vpop.permute.xlu0 %3442
    %3444 = vrot.lane.b32.xlu0 %v2829, 64
    %v3445 = vpop.permute.xlu0 %3444
    %3446 = vrot.lane.b32.xlu0 %v2830, 64
    %v3447 = vpop.permute.xlu0 %3446
    %v3453 = vsel %vm135, %v3433, 0
    %3455 = vmatprep.subr.bf16.mxu0 0
    %3456 = vmatpush1.bf16.msra.mxu0 %v3441
    %3457 = vmatprep.subr.bf16.mxu0 0
    %3458 = vmatpush1.bf16.msra.mxu0 %v3443
    %3459 = vmatprep.subr.bf16.mxu0 0
    %3460 = vmatpush1.bf16.msra.mxu0 %v3445
    %3461 = vmatprep.subr.bf16.mxu0 0
    %3462 = vmatpush1.bf16.msra.mxu0 %v3447
    %3463 = vmatprep.subr.bf16.mxu0 0
    %3464 = vmatpush1.bf16.msra.mxu0 0
    %3465 = vmatprep.subr.bf16.mxu0 0
    %3466 = vmatpush1.bf16.msra.mxu0 0
    %3467 = vmatprep.subr.bf16.mxu0 0
    %3468 = vmatpush1.bf16.msra.mxu0 0
    %3469 = vmatprep.subr.bf16.mxu0 0
    %3470 = vmatpush1.bf16.msra.mxu0 0
    %3471 = vmatprep.subr.bf16.mxu0 0
    %3472 = vmatpush1.bf16.msra.mxu0 0
    %3473 = vmatprep.subr.bf16.mxu0 0
    %3474 = vmatpush1.bf16.msra.mxu0 0
    %3475 = vmatprep.subr.bf16.mxu0 0
    %3476 = vmatpush1.bf16.msra.mxu0 0
    %3477 = vmatprep.subr.bf16.mxu0 0
    %3478 = vmatpush1.bf16.msra.mxu0 0
    %3479 = vmatprep.subr.bf16.mxu0 0
    %3480 = vmatpush1.bf16.msra.mxu0 0
    %3481 = vmatprep.subr.bf16.mxu0 0
    %3482 = vmatpush1.bf16.msra.mxu0 0
    %3483 = vmatprep.subr.bf16.mxu0 0
    %3484 = vmatpush1.bf16.msra.mxu0 0
    %3485 = vmatprep.subr.bf16.mxu0 0
    %3486 = vmatpush1.bf16.msra.mxu0 0
    %3487 = vmatprep.mubr.bf16.mxu0 0
    %3488 = vmatmul.mubr.bf16.gmra.mrb[0].mxu0 %v3453
    %v3489 = vpop.f32.mrb[0].mxu0
    %v3490 = vadd.f32 %v3438, %v3489
    %v3491 = vpop.f32.mrb[0].mxu0
    %v3492 = vpop.f32.mrb[0].mxu0
    %v3493 = vadd.f32 %v3438, %v3492
    %v3494 = vpop.f32.mrb[0].mxu0
    %3495 = vdwg.mxu0
    %v3496 = vadd.f32 %v2752, %v3490
    %v3497 = vadd.f32 %v2753, %v3493
    %v3498 = vsel %vm135, %v3496, 0.0
    %3499 = vadd.xlane.f32.xlu0 %v3498
    %v3500 = vpop.xlane.xlu0 %3499
    %v3501 = vsel %vm135, %v3497, 0.0
    %3502 = vadd.xlane.f32.xlu0 %v3501
    %v3503 = vpop.xlane.xlu0 %3502
    %v3504 = vmul.f32 %v3500, %v188
    %v3505 = vmul.f32 %v3503, %v188
    %v3506 = vsub.f32 %v3496, %v3504
    %v3507 = vsub.f32 %v3497, %v3505
    %v3508 = vmul.f32 %v3506, %v3506
    %v3509 = vmul.f32 %v3507, %v3507
    %v3510 = vsel %vm135, %v3508, 0.0
    %3511 = vadd.xlane.f32.xlu0 %v3510
    %v3512 = vpop.xlane.xlu0 %3511
    %v3513 = vsel %vm135, %v3509, 0.0
    %3514 = vadd.xlane.f32.xlu0 %v3513
    %v3515 = vpop.xlane.xlu0 %3514
    %v3516 = vmul.f32 %v3512, 0.015873017
    %v3517 = vmul.f32 %v3515, 0.015873017
    %v3518 = vrsqrt.pop %v3516
    %v3519 = vmul.f32 %v3516, %v3518
    %vm3520 = vcmp.eq.f32.partialorder %v3516, inf
    %v3521 = vsel %vm3520, %v3516, %v3519
    %vm3522 = vcmp.eq.f32.partialorder %v3516, 0.0
    %v3523 = vand.u32 %v3516, 2147483648
    %v3524 = vsel %vm3522, %v3523, %v3521
    %v3525 = vrsqrt.pop %v3517
    %v3526 = vmul.f32 %v3517, %v3525
    %vm3527 = vcmp.eq.f32.partialorder %v3517, inf
    %v3528 = vsel %vm3527, %v3517, %v3526
    %vm3529 = vcmp.eq.f32.partialorder %v3517, 0.0
    %v3530 = vand.u32 %v3517, 2147483648
    %v3531 = vsel %vm3529, %v3530, %v3528
    %v3532 = vadd.f32 %v3524, 10000.0
    %v3533 = vadd.f32 %v3531, 10000.0
    %v3534 = vrcp.pop %v3532
    %v3535 = vrcp.pop %v3533
    %v3536 = vmul.f32 %v3506, %v3534
    %v3537 = vmul.f32 %v3507, %v3535
    %v3538 = vadd.f32 %v3536, 1.0
    %v3539 = vadd.f32 %v3537, 1.0
    %v3540 = vpack.c.bf16 %v3539, %v3538
    %v3541 = vld [vmem:[#allocation2 + $0x1c] sm:$0xf]
    %v3542 = vld [vmem:[#allocation2 + $0x3c] sm:$0xf]
    %v3543 = vld [vmem:[#allocation2 + $0x5c] sm:$0xf]
    %v3544 = vld [vmem:[#allocation2 + $0x7c] sm:$0xf]
    %v3545 = vld [vmem:[#allocation2 + $0x9c] sm:$0xf]
    %v3546 = vld [vmem:[#allocation2 + $0xbc] sm:$0xf]
    %v3547 = vld [vmem:[#allocation2 + $0xdc] sm:$0xf]
    %v3548 = vld [vmem:[#allocation2 + $0xfc] sm:$0xf]
    %v3549 = vld [vmem:[%s5 + $0x7] sm:$0x3]
    %v3551 = vlaneseq
    %v3552 = vshrl.u32 %v3551, 7
    %v3553 = vsub.s32 0, %v3552
    %v3554 = vrot.slane %v3549, %v3553
    %v3555 = vlaneseq
    %v3556 = vshrl.u32 %v3555, 7
    %v3557 = vsub.s32 1, %v3556
    %v3558 = vrot.slane %v3549, %v3557
    %v3567 = vunpack.c.l.b16 %v3541
    %v3568 = vunpack.c.l.b16 %v3542
    %v3569 = vunpack.c.l.b16 %v3543
    %v3570 = vunpack.c.l.b16 %v3544
    %v3571 = vunpack.c.l.b16 %v3545
    %v3572 = vunpack.c.l.b16 %v3546
    %v3573 = vunpack.c.l.b16 %v3547
    %v3574 = vunpack.c.l.b16 %v3548
    %v3575 = vpack.c.b16 %v3568, %v3567
    %v3576 = vpack.c.b16 %v3570, %v3569
    %v3577 = vpack.c.b16 %v3572, %v3571
    %v3578 = vpack.c.b16 %v3574, %v3573
    %3583 = vrot.lane.b32.xlu0 %v3554, 64
    %v3584 = vpop.permute.xlu0 %3583
    %3585 = vrot.lane.b32.xlu0 %v3558, 64
    %v3586 = vpop.permute.xlu0 %3585
    %v3587 = vsel %vm135, %v3584, %v3586
    %v3590 = vsel %vm135, %v3540, 0
    %3592 = vmatprep.subr.bf16.mxu0 0
    %3593 = vmatpush1.bf16.msra.mxu0 %v3575
    %3594 = vmatprep.subr.bf16.mxu0 0
    %3595 = vmatpush1.bf16.msra.mxu0 %v3576
    %3596 = vmatprep.subr.bf16.mxu0 0
    %3597 = vmatpush1.bf16.msra.mxu0 %v3577
    %3598 = vmatprep.subr.bf16.mxu0 0
    %3599 = vmatpush1.bf16.msra.mxu0 %v3578
    %3600 = vmatprep.subr.bf16.mxu0 0
    %3601 = vmatpush1.bf16.msra.mxu0 0
    %3602 = vmatprep.subr.bf16.mxu0 0
    %3603 = vmatpush1.bf16.msra.mxu0 0
    %3604 = vmatprep.subr.bf16.mxu0 0
    %3605 = vmatpush1.bf16.msra.mxu0 0
    %3606 = vmatprep.subr.bf16.mxu0 0
    %3607 = vmatpush1.bf16.msra.mxu0 0
    %3608 = vmatprep.subr.bf16.mxu0 0
    %3609 = vmatpush1.bf16.msra.mxu0 0
    %3610 = vmatprep.subr.bf16.mxu0 0
    %3611 = vmatpush1.bf16.msra.mxu0 0
    %3612 = vmatprep.subr.bf16.mxu0 0
    %3613 = vmatpush1.bf16.msra.mxu0 0
    %3614 = vmatprep.subr.bf16.mxu0 0
    %3615 = vmatpush1.bf16.msra.mxu0 0
    %3616 = vmatprep.subr.bf16.mxu0 0
    %3617 = vmatpush1.bf16.msra.mxu0 0
    %3618 = vmatprep.subr.bf16.mxu0 0
    %3619 = vmatpush1.bf16.msra.mxu0 0
    %3620 = vmatprep.subr.bf16.mxu0 0
    %3621 = vmatpush1.bf16.msra.mxu0 0
    %3622 = vmatprep.subr.bf16.mxu0 0
    %3623 = vmatpush1.bf16.msra.mxu0 0
    %3624 = vmatprep.mubr.bf16.mxu0 0
    %3625 = vmatmul.mubr.bf16.gmra.mrb[0].mxu0 %v3590
    %v3626 = vpop.f32.mrb[0].mxu0
    %v3627 = vadd.f32 %v3587, %v3626
    %v3628 = vpop.f32.mrb[0].mxu0
    %v3629 = vpop.f32.mrb[0].mxu0
    %v3630 = vadd.f32 %v3587, %v3629
    %v3631 = vpop.f32.mrb[0].mxu0
    %3632 = vdwg.mxu0
    %v3633 = vmax.f32 %v3627, 0.0
    %v3634 = vmax.f32 %v3630, 0.0
    %v3635 = vpack.c.bf16 %v3634, %v3633
    %v3636 = vld [vmem:[#allocation7] sm:$0xf]
    %v3637 = vld [vmem:[#allocation7 + $0x4] sm:$0xf]
    %v3638 = vld [vmem:[#allocation7 + $0x8] sm:$0xf]
    %v3639 = vld [vmem:[#allocation7 + $0xc] sm:$0xf]
    %v3640 = vld [vmem:[#allocation7 + $0x10] sm:$0xf]
    %v3641 = vld [vmem:[#allocation7 + $0x14] sm:$0xf]
    %v3642 = vld [vmem:[#allocation7 + $0x18] sm:$0xf]
    %v3643 = vld [vmem:[#allocation7 + $0x1c] sm:$0xf]
    %v3644 = vld [vmem:[#allocation7 + $0x20] sm:$0xf]
    %v3645 = vld [vmem:[#allocation7 + $0x24] sm:$0xf]
    %v3646 = vld [vmem:[#allocation7 + $0x28] sm:$0xf]
    %v3647 = vld [vmem:[#allocation7 + $0x2c] sm:$0xf]
    %v3648 = vld [vmem:[#allocation7 + $0x30] sm:$0xf]
    %v3649 = vld [vmem:[#allocation7 + $0x34] sm:$0xf]
    %v3650 = vld [vmem:[#allocation7 + $0x38] sm:$0xf]
    %v3651 = vld [vmem:[#allocation7 + $0x3c] sm:$0xf]
    %v3668 = vunpack.c.l.b16 %v3636
    %v3669 = vunpack.c.l.b16 %v3637
    %v3670 = vunpack.c.l.b16 %v3638
    %v3671 = vunpack.c.l.b16 %v3639
    %v3672 = vunpack.c.l.b16 %v3640
    %v3673 = vunpack.c.l.b16 %v3641
    %v3674 = vunpack.c.l.b16 %v3642
    %v3675 = vunpack.c.l.b16 %v3643
    %v3676 = vunpack.c.l.b16 %v3644
    %v3677 = vunpack.c.l.b16 %v3645
    %v3678 = vunpack.c.l.b16 %v3646
    %v3679 = vunpack.c.l.b16 %v3647
    %v3680 = vunpack.c.l.b16 %v3648
    %v3681 = vunpack.c.l.b16 %v3649
    %v3682 = vunpack.c.l.b16 %v3650
    %v3683 = vunpack.c.l.b16 %v3651
    %v3684 = vpack.c.b16 %v3669, %v3668
    %v3685 = vpack.c.b16 %v3671, %v3670
    %v3686 = vpack.c.b16 %v3673, %v3672
    %v3687 = vpack.c.b16 %v3675, %v3674
    %v3688 = vpack.c.b16 %v3677, %v3676
    %v3689 = vpack.c.b16 %v3679, %v3678
    %v3690 = vpack.c.b16 %v3681, %v3680
    %v3691 = vpack.c.b16 %v3683, %v3682
    %3692 = vrot.lane.b32.xlu0 %v3684, 64
    %v3693 = vpop.permute.xlu0 %3692
    %3694 = vrot.lane.b32.xlu0 %v3685, 64
    %v3695 = vpop.permute.xlu0 %3694
    %3696 = vrot.lane.b32.xlu0 %v3686, 64
    %v3697 = vpop.permute.xlu0 %3696
    %3698 = vrot.lane.b32.xlu0 %v3687, 64
    %v3699 = vpop.permute.xlu0 %3698
    %3700 = vrot.lane.b32.xlu0 %v3688, 64
    %v3701 = vpop.permute.xlu0 %3700
    %3702 = vrot.lane.b32.xlu0 %v3689, 64
    %v3703 = vpop.permute.xlu0 %3702
    %3704 = vrot.lane.b32.xlu0 %v3690, 64
    %v3705 = vpop.permute.xlu0 %3704
    %3706 = vrot.lane.b32.xlu0 %v3691, 64
    %v3707 = vpop.permute.xlu0 %3706
    %3716 = vmatprep.subr.bf16.mxu0 0
    %3717 = vmatpush1.bf16.msra.mxu0 %v3693
    %3718 = vmatprep.subr.bf16.mxu0 0
    %3719 = vmatpush1.bf16.msra.mxu0 %v3695
    %3720 = vmatprep.subr.bf16.mxu0 0
    %3721 = vmatpush1.bf16.msra.mxu0 %v3697
    %3722 = vmatprep.subr.bf16.mxu0 0
    %3723 = vmatpush1.bf16.msra.mxu0 %v3699
    %3724 = vmatprep.subr.bf16.mxu0 0
    %3725 = vmatpush1.bf16.msra.mxu0 %v3701
    %3726 = vmatprep.subr.bf16.mxu0 0
    %3727 = vmatpush1.bf16.msra.mxu0 %v3703
    %3728 = vmatprep.subr.bf16.mxu0 0
    %3729 = vmatpush1.bf16.msra.mxu0 %v3705
    %3730 = vmatprep.subr.bf16.mxu0 0
    %3731 = vmatpush1.bf16.msra.mxu0 %v3707
    %3732 = vmatprep.subr.bf16.mxu0 0
    %3733 = vmatpush1.bf16.msra.mxu0 0
    %3734 = vmatprep.subr.bf16.mxu0 0
    %3735 = vmatpush1.bf16.msra.mxu0 0
    %3736 = vmatprep.subr.bf16.mxu0 0
    %3737 = vmatpush1.bf16.msra.mxu0 0
    %3738 = vmatprep.subr.bf16.mxu0 0
    %3739 = vmatpush1.bf16.msra.mxu0 0
    %3740 = vmatprep.subr.bf16.mxu0 0
    %3741 = vmatpush1.bf16.msra.mxu0 0
    %3742 = vmatprep.subr.bf16.mxu0 0
    %3743 = vmatpush1.bf16.msra.mxu0 0
    %3744 = vmatprep.subr.bf16.mxu0 0
    %3745 = vmatpush1.bf16.msra.mxu0 0
    %3746 = vmatprep.subr.bf16.mxu0 0
    %3747 = vmatpush1.bf16.msra.mxu0 0
    %3748 = vmatprep.mubr.bf16.mxu0 0
    %3749 = vmatmul.mubr.bf16.gmra.mrb[0].mxu0 %v3635
    %v3750 = vpop.f32.mrb[0].mxu0
    %v3751 = vadd.f32 0.0, %v3750
    %v3752 = vpop.f32.mrb[0].mxu0
    %v3753 = vpop.f32.mrb[0].mxu0
    %v3754 = vadd.f32 0.0, %v3753
    %v3755 = vpop.f32.mrb[0].mxu0
    %3756 = vdwg.mxu0
    %v3757 = vadd.f32 %v3496, %v3751
    %v3758 = vadd.f32 %v3497, %v3754
    %v3759 = vld [vmem:[%s5 + $0x8] sm:$0x1]
    %v3761 = vlaneseq
    %v3762 = vshrl.u32 %v3761, 7
    %v3763 = vsub.s32 0, %v3762
    %v3764 = vrot.slane %v3759, %v3763
    %3765 = vrot.lane.b32.xlu0 %v3764, 64
    %v3766 = vpop.permute.xlu0 %3765
    %v3768 = vadd.f32 %v3757, %v3766
    %v3769 = vadd.f32 %v3758, %v3766
    %v3770 = vsel %vm135, %v3768, 0.0
    %3771 = vadd.xlane.f32.xlu0 %v3770
    %v3772 = vpop.xlane.xlu0 %3771
    %v3773 = vsel %vm135, %v3769, 0.0
    %3774 = vadd.xlane.f32.xlu0 %v3773
    %v3775 = vpop.xlane.xlu0 %3774
    %v3776 = vmul.f32 %v3772, %v188
    %v3777 = vmul.f32 %v3775, %v188
    %v3778 = vsub.f32 %v3768, %v3776
    %v3779 = vsub.f32 %v3769, %v3777
    %v3780 = vmul.f32 %v3778, %v3778
    %v3781 = vmul.f32 %v3779, %v3779
    %v3782 = vsel %vm135, %v3780, 0.0
    %3783 = vadd.xlane.f32.xlu0 %v3782
    %v3784 = vpop.xlane.xlu0 %3783
    %v3785 = vsel %vm135, %v3781, 0.0
    %3786 = vadd.xlane.f32.xlu0 %v3785
    %v3787 = vpop.xlane.xlu0 %3786
    %v3788 = vmul.f32 %v3784, 0.015873017
    %v3789 = vmul.f32 %v3787, 0.015873017
    %v3790 = vrsqrt.pop %v3788
    %v3791 = vmul.f32 %v3788, %v3790
    %vm3792 = vcmp.eq.f32.partialorder %v3788, inf
    %v3793 = vsel %vm3792, %v3788, %v3791
    %vm3794 = vcmp.eq.f32.partialorder %v3788, 0.0
    %v3795 = vand.u32 %v3788, 2147483648
    %v3796 = vsel %vm3794, %v3795, %v3793
    %v3797 = vrsqrt.pop %v3789
    %v3798 = vmul.f32 %v3789, %v3797
    %vm3799 = vcmp.eq.f32.partialorder %v3789, inf
    %v3800 = vsel %vm3799, %v3789, %v3798
    %vm3801 = vcmp.eq.f32.partialorder %v3789, 0.0
    %v3802 = vand.u32 %v3789, 2147483648
    %v3803 = vsel %vm3801, %v3802, %v3800
    %v3804 = vadd.f32 %v3796, 10000.0
    %v3805 = vadd.f32 %v3803, 10000.0
    %v3806 = vrcp.pop %v3804
    %v3807 = vrcp.pop %v3805
    %v3808 = vmul.f32 %v3778, %v3806
    %v3809 = vmul.f32 %v3779, %v3807
    %v3810 = vadd.f32 %v3808, 1.0
    %v3811 = vadd.f32 %v3809, 1.0
    %3813 = vrot.lane.b32.xlu0 %v3811, 64
    %v3814 = vpop.permute.xlu0 %3813
    %v3816 = vsel %vm135, %v3810, %v3814
    %3817 = vst [vmem:[#allocation8] sm:$0xff] %v3816
    // Predicated region
    $region38: #{tpu_custom_call.1} parent=1 // pred_check
      _
    $region39: #{tpu_custom_call.1} parent=1 // pred_check_branch
      %3819 = sbr.rel (0) target = $region41
    $region40: #{tpu_custom_call.1} parent=1 // pred_region
      %s3821 = ssub.s32 128, 128
      %3822 = vsyncadd [#allocation4], %s3821
      %s3824 = sshll.u32 [#allocation8], 4
      %s3825 = int_to_ptr.vmem [resolvable:$true] %s3824
      %3827 = dma.vmem_to_hbm [thread:$0]  %s3825, 128, %s6, [#allocation4]
    $region41: #{tpu_custom_call.1} parent=1 // pred_fallthru
      _
    // Predicated region
    $region42: #{tpu_custom_call.1} parent=1 // pred_check
      _
    $region43: #{tpu_custom_call.1} parent=1 // pred_check_branch
      %3829 = sbr.rel (0) target = $region45
    $region44: #{tpu_custom_call.1} parent=1 // pred_region
      %3830 = dma.done [#allocation4], 128
    $region45: #{tpu_custom_call.1} parent=1 // pred_fallthru
      _
    %3831 = vsyncpa [#allocation3], 1
    %3832 = vsyncpa [#allocation6], 1
    %3833 = vsyncpa [#allocation4], 1

</llo_original>
